<compile_context>
chip_gen: v7x
topology: tpu7x:2x2x1
jax: 0.10.0
libtpu: 0.0.40
codegen_flags: <defaults>
</compile_context>

<pallas_src>
import functools

import jax
import jax.numpy as jnp
import numpy as np
from jax.experimental import pallas as pl
from jax.experimental.pallas import tpu as pltpu


def _emb_kernel(coeff, start, delta, num_gaussians, dist_ref, out_ref):
    # dist_ref: (TE, 1) f32   current edge tile of distances
    # out_ref:  (TE, G) f32
    d = dist_ref[...]                                               # (TE, 1)
    g = jax.lax.broadcasted_iota(jnp.int32, (1, num_gaussians), 1)  # (1, G)
    off = jnp.float32(start) + jnp.float32(delta) * g.astype(jnp.float32)
    diff = d - off                                                  # (TE, G) VPU broadcast
    out_ref[...] = jnp.exp(jnp.float32(coeff) * (diff * diff))      # exp -> EUP


def emb_pallas(dist, start=0.0, stop=5.0, num_gaussians=50, tile_e=4096):
    """dist: (E,) f32 distances.  Returns (E, num_gaussians) f32."""
    E = dist.shape[0]
    G = int(num_gaussians)
    delta = (float(stop) - float(start)) / (G - 1)
    coeff = -0.5 / delta ** 2

    # Tile on sublane multiples; don't allocate a tile bigger than (padded) E.
    tile_e = max(8, min(int(tile_e), ((E + 7) // 8) * 8))
    tile_e = ((tile_e + 7) // 8) * 8
    n_tiles = pl.cdiv(E, tile_e)                 # ragged E: trailing block masked

    dist2d = dist.astype(jnp.float32).reshape(E, 1)

    kernel = functools.partial(_emb_kernel, coeff, float(start), delta, G)

    cost = pl.CostEstimate(
        flops=3 * E * G,
        transcendentals=E * G,
        bytes_accessed=4 * E * G + 4 * E,
    )

    return pl.pallas_call(
        kernel,
        out_shape=jax.ShapeDtypeStruct((E, G), jnp.float32),
        grid_spec=pltpu.PrefetchScalarGridSpec(
            num_scalar_prefetch=0,
            grid=(n_tiles,),
            in_specs=[pl.BlockSpec((tile_e, 1), lambda i: (i, 0))],   # dist tile
            out_specs=pl.BlockSpec((tile_e, G), lambda i: (i, 0)),
        ),
        compiler_params=pltpu.CompilerParams(
            dimension_semantics=("parallel",)),
        cost_estimate=cost,
    )(dist2d)


def emb_reference(dist, start=0.0, stop=5.0, num_gaussians=50):
    """Mirror of the PyTorch module (linspace offsets, same op order)."""
    offset = np.linspace(start, stop, num_gaussians, dtype=np.float32)
    coeff = -0.5 / float(offset[1] - offset[0]) ** 2
    d = dist.reshape(-1, 1) - jnp.asarray(offset).reshape(1, -1)
    return jnp.exp(coeff * (d * d))


if __name__ == "__main__":
    start, stop, num_gaussians = 0.0, 5.0, 50
    num_edges = 5000                      # deliberately not a multiple of any tile size

    key = jax.random.PRNGKey(0)
    dist = jax.random.uniform(key, (num_edges,), jnp.float32,
                              minval=0.0, maxval=stop)

    ref = emb_reference(dist, start, stop, num_gaussians)

    # Default large-tile path: grid = cdiv(5000, 4096) = 2 with a ragged tail.
    out = jax.block_until_ready(emb_pallas(dist, start, stop, num_gaussians))
    # Tolerance: in-kernel iota offsets differ from linspace by ~1 ulp of 5.0,
    # which (times |coeff|*2*|diff|) bounds the relative output error < 1e-4
    # wherever the output exceeds atol.
    np.testing.assert_allclose(np.asarray(out), np.asarray(ref),
                               rtol=1e-3, atol=1e-6)

    # Small-tile path: several full tiles + a ragged trailing block,
    # exercising the masked partial-block writeback.
    out_small = jax.block_until_ready(
        emb_pallas(dist, start, stop, num_gaussians, tile_e=1024))
    np.testing.assert_allclose(np.asarray(out_small), np.asarray(ref),
                               rtol=1e-3, atol=1e-6)

    print("KERNEL_OK")
</pallas_src>

<mosaic_0001>
module attributes {stable_mosaic.version = 11 : i64} {
  func.func @_emb_kernel(%arg0: i32, %arg1: memref<4096x1xf32, #tpu.memory_space<vmem>>, %arg2: memref<4096x50xf32, #tpu.memory_space<vmem>>) attributes {dimension_semantics = [#tpu.dimension_semantics<parallel>], iteration_bounds = array<i64: 2>, scalar_prefetch = 0 : i64, scratch_operands = 0 : i64, tpu.core_type = #tpu.core_type<tc>, window_params = [{transform_indices = @transform_0, window_bounds = array<i64: 4096, 1>}, {transform_indices = @transform_1, window_bounds = array<i64: 4096, 50>}]} {
    %c0 = arith.constant 0 : index
    %c0_0 = arith.constant 0 : index
    %0 = vector.load %arg1[%c0, %c0_0] : memref<4096x1xf32, #tpu.memory_space<vmem>>, vector<4096x1xf32>
    %1 = tpu.iota {dimensions = array<i32: 1>} : vector<1x50xi32>
    %2 = arith.sitofp %1 : vector<1x50xi32> to vector<1x50xf32>
    %cst = arith.constant 0.10204082 : f32
    %3 = vector.broadcast %cst : f32 to vector<1x50xf32>
    %4 = arith.mulf %3, %2 : vector<1x50xf32>
    %cst_1 = arith.constant 0.000000e+00 : f32
    %5 = vector.broadcast %cst_1 : f32 to vector<1x50xf32>
    %6 = arith.addf %5, %4 : vector<1x50xf32>
    %7 = vector.broadcast %0 : vector<4096x1xf32> to vector<4096x50xf32>
    %8 = vector.broadcast %6 : vector<1x50xf32> to vector<4096x50xf32>
    %9 = arith.subf %7, %8 : vector<4096x50xf32>
    %10 = arith.mulf %9, %9 : vector<4096x50xf32>
    %cst_2 = arith.constant -4.802000e+01 : f32
    %11 = vector.broadcast %cst_2 : f32 to vector<4096x50xf32>
    %12 = arith.mulf %11, %10 : vector<4096x50xf32>
    %13 = math.exp %12 : vector<4096x50xf32>
    %c0_3 = arith.constant 0 : index
    %c0_4 = arith.constant 0 : index
    %14 = vector.load %arg2[%c0_3, %c0_4] : memref<4096x50xf32, #tpu.memory_space<vmem>>, vector<4096x50xf32>
    tpu.vector_store %arg2[%c0_3, %c0_4], %13 {strides = array<i32>} : memref<4096x50xf32, #tpu.memory_space<vmem>>, vector<4096x50xf32>,
    return
  }
  func.func @transform_0(%arg0: i32) -> (i32, i32) {
    %c0_i32 = arith.constant 0 : i32
    %c0_i32_0 = arith.constant 0 : i32
    return %arg0, %c0_i32 : i32, i32
  }
  func.func @transform_1(%arg0: i32) -> (i32, i32) {
    %c0_i32 = arith.constant 0 : i32
    %c0_i32_0 = arith.constant 0 : i32
    return %arg0, %c0_i32 : i32, i32
  }
}

</mosaic_0001>

<llo_original>
// kernel: tpu_custom_call.1
$region0: #{tpu_custom_call.1}
  #allocation0 [shape = 'u32[]', space=smem, size = 0x4, offset = 0x4, fixed_abs, tag = 'smem constant byte address 0x4 - core index']
  #allocation1 [shape = 'u32[144,128]{1,0:T(1,128)}', space=vmem, size = 0x12000, scoped, tag = 'internal scratch']
  %s0 = inlined_call_operand.vmem [shape: f32[5000,1], index: 0, kind: input, shape index: {}]
  %s1 = inlined_call_operand.vmem [shape: f32[5000,50], index: 1, kind: output, shape index: {}]
  %s2 = sld [smem:[#allocation0]]
  $region85: #{tpu_custom_call.1} parent=0
    _
  %s4 = ssub.s32 1, %s2
  %s5 = scalar_select 0, %s4, %s2
  $region1: #{tpu_custom_call.1} parent=0
    #allocation2 [shape = 'u8[4194304]{0}', space=vmem, size = 0x400000, scoped, tag = 'output window, operand 0']
    loop: start=0, step=1, limit=4
    $region2: #{tpu_custom_call.1} parent=1 // loop_pre_header
      _
    $region3: #{tpu_custom_call.1} parent=1 // loop_header
      %s7 = sphi 0, %s11
      %p8 = scmp.ge.s32.totalorder %s7, 4
      %s17 = sphi 0, %s19
      %s20 = sphi 0, %s17
      %s21 = sphi 0, %s20
      %s37 = sphi 0, %s21
      %s43 = sphi 0, %s45
      %s46 = sphi 0, %s43
      %s47 = sphi 0, %s46
      %s63 = sphi 0, %s47
    $region4: #{tpu_custom_call.1} parent=1 // loop_header_branch
      %10 = sbr.rel (%p8) target = $region8
    $region5: #{tpu_custom_call.1} parent=1 // loop_body
      %s12 = ssub.s32 %s7, 1
      %s13 = ssub.s32 %s7, 2
      %s14 = sadd.s32 %s7, 1
      %s15 = ssub.s32 %s7, %s14
      %p16 = scmp.eq.s32.totalorder %s15, 0
      %s18 = sadd.s32 %s17, 1
      %s19 = scalar_select %p16, %s17, %s18
      %p22 = pneg %p16
      %p23 = scmp.eq.s32.totalorder %s7, 1
      %p24 = por %p22, %p23
      %p25 = scmp.ne.s32.totalorder %s17, %s20
      %p26 = scmp.eq.s32.totalorder %s7, 0
      %p27 = por %p25, %p26
      %p28 = scmp.ne.s32.totalorder %s17, %s20
      %p29 = scmp.eq.s32.totalorder %s12, 1
      %p30 = por %p28, %p29
      %p31 = scmp.ne.s32.totalorder %s20, %s21
      %p32 = scmp.eq.s32.totalorder %s12, 0
      %p33 = por %p31, %p32
      %p34 = scmp.ne.s32.totalorder %s20, %s21
      %p35 = scmp.eq.s32.totalorder %s13, 1
      %p36 = por %p34, %p35
      %p38 = scmp.ne.s32.totalorder %s21, %s37
      %p39 = scmp.eq.s32.totalorder %s13, 0
      %p40 = por %p38, %p39
      %s41 = ssub.s32 %s7, %s14
      %p42 = scmp.eq.s32.totalorder %s41, 0
      %s44 = sadd.s32 %s43, 1
      %s45 = scalar_select %p42, %s43, %s44
      %p48 = pneg %p42
      %p49 = scmp.eq.s32.totalorder %s7, 1
      %p50 = por %p48, %p49
      %p51 = scmp.ne.s32.totalorder %s43, %s46
      %p52 = scmp.eq.s32.totalorder %s7, 0
      %p53 = por %p51, %p52
      %p54 = scmp.ne.s32.totalorder %s43, %s46
      %p55 = scmp.eq.s32.totalorder %s12, 1
      %p56 = por %p54, %p55
      %p57 = scmp.ne.s32.totalorder %s46, %s47
      %p58 = scmp.eq.s32.totalorder %s12, 0
      %p59 = por %p57, %p58
      %p60 = scmp.ne.s32.totalorder %s46, %s47
      %p61 = scmp.eq.s32.totalorder %s13, 1
      %p62 = por %p60, %p61
      %p64 = scmp.ne.s32.totalorder %s47, %s63
      %p65 = scmp.eq.s32.totalorder %s13, 0
      %p66 = por %p64, %p65
      %p67 = scmp.le.s32.totalorder 1, %s7
      %p68 = scmp.lt.s32.totalorder %s7, 3
      %p69 = pnand %p67, %p68
      %p70 = pneg %p69
      // Predicated region
      $region9: #{tpu_custom_call.1} parent=5 // pred_check
        _
      $region10: #{tpu_custom_call.1} parent=5 // pred_check_branch
        %72 = sbr.rel (%p69) target = $region12
      $region11: #{tpu_custom_call.1} parent=5 // pred_region
        %s73 = ssub.s32 %s7, 1
      $region12: #{tpu_custom_call.1} parent=5 // pred_fallthru
        _
      %p74 = scmp.lt.s32.totalorder %s7, 2
      // Predicated region
      $region13: #{tpu_custom_call.1} parent=5 // pred_check
        %p75 = pneg %p74
      $region14: #{tpu_custom_call.1} parent=5 // pred_check_branch
        %77 = sbr.rel (%p75) target = $region16
      $region15: #{tpu_custom_call.1} parent=5 // pred_region
        // Predicated region
        $region17: #{tpu_custom_call.1} parent=15 // pred_check
          %p78 = pneg %p27
        $region18: #{tpu_custom_call.1} parent=15 // pred_check_branch
          %80 = sbr.rel (%p78) target = $region20
        $region19: #{tpu_custom_call.1} parent=15 // pred_region
          %s81 = smul.u32 512, %s7
          %s82 = ssub.s32 625, %s81
          %p83 = scmp.lt.s32.totalorder %s82, 512
          %s84 = scalar_select %p83, %s82, 512
          %s85 = smul.u32 128, %s84
          %p86 = scmp.lt.s32.totalorder %s81, 624
          %s87 = scalar_select %p86, %s81, 624
          %s88 = smul.addr %s87, 8
          %s89 = scalar_lea.vmem %s0, %s88
          %s90 = smul.u32 512, %s7
          %s91 = ssub.s32 625, %s90
          %p92 = scmp.lt.s32.totalorder %s91, 512
          %s93 = scalar_select %p92, %s91, 512
          %s94 = smul.u32 128, %s93
        $region20: #{tpu_custom_call.1} parent=15 // pred_fallthru
          _
      $region16: #{tpu_custom_call.1} parent=5 // pred_fallthru
        _
      %p95 = scmp.le.s32.totalorder 1, %s7
      %p96 = scmp.lt.s32.totalorder %s7, 3
      %p97 = pnand %p95, %p96
      %p98 = pneg %p97
      // Predicated region
      $region21: #{tpu_custom_call.1} parent=5 // pred_check
        _
      $region22: #{tpu_custom_call.1} parent=5 // pred_check_branch
        %100 = sbr.rel (%p97) target = $region24
      $region23: #{tpu_custom_call.1} parent=5 // pred_region
        %s101 = ssub.s32 %s7, 1
        %s102 = smul.u32 512, %s12
        %s103 = ssub.s32 625, %s102
        %p104 = scmp.lt.s32.totalorder %s103, 512
        %s105 = scalar_select %p104, %s103, 512
        %s106 = smul.u32 128, %s105
        %p107 = scmp.lt.s32.totalorder %s102, 624
        %s108 = scalar_select %p107, %s102, 624
        %s109 = smul.addr %s108, 8
        %s110 = scalar_lea.vmem %s0, %s109
        %p111 = pneg %p33
        %p112 = pneg %p30
        %p113 = pneg %p59
        %p114 = pneg %p56
        %s115 = sand.u32 %s46, 1
        %s116 = sand.u32 %s46, 1
        %s117 = smul.addr %s116, 4096
        %s118 = scalar_lea.vmem [#allocation2], %s117
        %s119 = smul.u32 512, %s12
        %s120 = ssub.s32 625, %s119
        %p121 = scmp.lt.s32.totalorder %s120, 512
        %s122 = scalar_select %p121, %s120, 512
        %s123 = smul.u32 128, %s122
        %p124 = scmp.lt.s32.totalorder %s119, 624
        %s125 = scalar_select %p124, %s119, 624
        %s126 = smul.addr %s125, 8
        %s127 = scalar_lea.vmem %s0, %s126
        %s128 = smul.u32 512, %s12
        %s129 = ssub.s32 625, %s128
        %p130 = scmp.lt.s32.totalorder %s129, 512
        %s131 = scalar_select %p130, %s129, 512
        %s132 = smul.u32 128, %s131
        %s133 = smul.u32 512, %s12
        %s134 = ssub.s32 625, %s133
        %p135 = scmp.lt.s32.totalorder %s134, 512
        %s136 = scalar_select %p135, %s134, 512
        %s137 = smul.u32 128, %s136
        %v138 = vld [vmem:[%s127] sm:$0xff]
        %v139 = vld [vmem:[%s127 + $0x8] sm:$0xff]
        %v140 = vld [vmem:[%s127 + $0x10] sm:$0xff]
        %v141 = vld [vmem:[%s127 + $0x18] sm:$0xff]
        %v142 = vld [vmem:[%s127 + $0x20] sm:$0xff]
        %v143 = vld [vmem:[%s127 + $0x28] sm:$0xff]
        %v144 = vld [vmem:[%s127 + $0x30] sm:$0xff]
        %v145 = vld [vmem:[%s127 + $0x38] sm:$0xff]
        %v146 = vld [vmem:[%s127 + $0x40] sm:$0xff]
        %v147 = vld [vmem:[%s127 + $0x48] sm:$0xff]
        %v148 = vld [vmem:[%s127 + $0x50] sm:$0xff]
        %v149 = vld [vmem:[%s127 + $0x58] sm:$0xff]
        %v150 = vld [vmem:[%s127 + $0x60] sm:$0xff]
        %v151 = vld [vmem:[%s127 + $0x68] sm:$0xff]
        %v152 = vld [vmem:[%s127 + $0x70] sm:$0xff]
        %v153 = vld [vmem:[%s127 + $0x78] sm:$0xff]
        %v154 = vld [vmem:[%s127 + $0x80] sm:$0xff]
        %v155 = vld [vmem:[%s127 + $0x88] sm:$0xff]
        %v156 = vld [vmem:[%s127 + $0x90] sm:$0xff]
        %v157 = vld [vmem:[%s127 + $0x98] sm:$0xff]
        %v158 = vld [vmem:[%s127 + $0xa0] sm:$0xff]
        %v159 = vld [vmem:[%s127 + $0xa8] sm:$0xff]
        %v160 = vld [vmem:[%s127 + $0xb0] sm:$0xff]
        %v161 = vld [vmem:[%s127 + $0xb8] sm:$0xff]
        %v162 = vld [vmem:[%s127 + $0xc0] sm:$0xff]
        %v163 = vld [vmem:[%s127 + $0xc8] sm:$0xff]
        %v164 = vld [vmem:[%s127 + $0xd0] sm:$0xff]
        %v165 = vld [vmem:[%s127 + $0xd8] sm:$0xff]
        %v166 = vld [vmem:[%s127 + $0xe0] sm:$0xff]
        %v167 = vld [vmem:[%s127 + $0xe8] sm:$0xff]
        %v168 = vld [vmem:[%s127 + $0xf0] sm:$0xff]
        %v169 = vld [vmem:[%s127 + $0xf8] sm:$0xff]
        %v170 = vld [vmem:[%s127 + $0x100] sm:$0xff]
        %v171 = vld [vmem:[%s127 + $0x108] sm:$0xff]
        %v172 = vld [vmem:[%s127 + $0x110] sm:$0xff]
        %v173 = vld [vmem:[%s127 + $0x118] sm:$0xff]
        %v174 = vld [vmem:[%s127 + $0x120] sm:$0xff]
        %v175 = vld [vmem:[%s127 + $0x128] sm:$0xff]
        %v176 = vld [vmem:[%s127 + $0x130] sm:$0xff]
        %v177 = vld [vmem:[%s127 + $0x138] sm:$0xff]
        %v178 = vld [vmem:[%s127 + $0x140] sm:$0xff]
        %v179 = vld [vmem:[%s127 + $0x148] sm:$0xff]
        %v180 = vld [vmem:[%s127 + $0x150] sm:$0xff]
        %v181 = vld [vmem:[%s127 + $0x158] sm:$0xff]
        %v182 = vld [vmem:[%s127 + $0x160] sm:$0xff]
        %v183 = vld [vmem:[%s127 + $0x168] sm:$0xff]
        %v184 = vld [vmem:[%s127 + $0x170] sm:$0xff]
        %v185 = vld [vmem:[%s127 + $0x178] sm:$0xff]
        %v186 = vld [vmem:[%s127 + $0x180] sm:$0xff]
        %v187 = vld [vmem:[%s127 + $0x188] sm:$0xff]
        %v188 = vld [vmem:[%s127 + $0x190] sm:$0xff]
        %v189 = vld [vmem:[%s127 + $0x198] sm:$0xff]
        %v190 = vld [vmem:[%s127 + $0x1a0] sm:$0xff]
        %v191 = vld [vmem:[%s127 + $0x1a8] sm:$0xff]
        %v192 = vld [vmem:[%s127 + $0x1b0] sm:$0xff]
        %v193 = vld [vmem:[%s127 + $0x1b8] sm:$0xff]
        %v194 = vld [vmem:[%s127 + $0x1c0] sm:$0xff]
        %v195 = vld [vmem:[%s127 + $0x1c8] sm:$0xff]
        %v196 = vld [vmem:[%s127 + $0x1d0] sm:$0xff]
        %v197 = vld [vmem:[%s127 + $0x1d8] sm:$0xff]
        %v198 = vld [vmem:[%s127 + $0x1e0] sm:$0xff]
        %v199 = vld [vmem:[%s127 + $0x1e8] sm:$0xff]
        %v200 = vld [vmem:[%s127 + $0x1f0] sm:$0xff]
        %v201 = vld [vmem:[%s127 + $0x1f8] sm:$0xff]
        %v202 = vld [vmem:[%s127 + $0x200] sm:$0xff]
        %v203 = vld [vmem:[%s127 + $0x208] sm:$0xff]
        %v204 = vld [vmem:[%s127 + $0x210] sm:$0xff]
        %v205 = vld [vmem:[%s127 + $0x218] sm:$0xff]
        %v206 = vld [vmem:[%s127 + $0x220] sm:$0xff]
        %v207 = vld [vmem:[%s127 + $0x228] sm:$0xff]
        %v208 = vld [vmem:[%s127 + $0x230] sm:$0xff]
        %v209 = vld [vmem:[%s127 + $0x238] sm:$0xff]
        %v210 = vld [vmem:[%s127 + $0x240] sm:$0xff]
        %v211 = vld [vmem:[%s127 + $0x248] sm:$0xff]
        %v212 = vld [vmem:[%s127 + $0x250] sm:$0xff]
        %v213 = vld [vmem:[%s127 + $0x258] sm:$0xff]
        %v214 = vld [vmem:[%s127 + $0x260] sm:$0xff]
        %v215 = vld [vmem:[%s127 + $0x268] sm:$0xff]
        %v216 = vld [vmem:[%s127 + $0x270] sm:$0xff]
        %v217 = vld [vmem:[%s127 + $0x278] sm:$0xff]
        %v218 = vld [vmem:[%s127 + $0x280] sm:$0xff]
        %v219 = vld [vmem:[%s127 + $0x288] sm:$0xff]
        %v220 = vld [vmem:[%s127 + $0x290] sm:$0xff]
        %v221 = vld [vmem:[%s127 + $0x298] sm:$0xff]
        %v222 = vld [vmem:[%s127 + $0x2a0] sm:$0xff]
        %v223 = vld [vmem:[%s127 + $0x2a8] sm:$0xff]
        %v224 = vld [vmem:[%s127 + $0x2b0] sm:$0xff]
        %v225 = vld [vmem:[%s127 + $0x2b8] sm:$0xff]
        %v226 = vld [vmem:[%s127 + $0x2c0] sm:$0xff]
        %v227 = vld [vmem:[%s127 + $0x2c8] sm:$0xff]
        %v228 = vld [vmem:[%s127 + $0x2d0] sm:$0xff]
        %v229 = vld [vmem:[%s127 + $0x2d8] sm:$0xff]
        %v230 = vld [vmem:[%s127 + $0x2e0] sm:$0xff]
        %v231 = vld [vmem:[%s127 + $0x2e8] sm:$0xff]
        %v232 = vld [vmem:[%s127 + $0x2f0] sm:$0xff]
        %v233 = vld [vmem:[%s127 + $0x2f8] sm:$0xff]
        %v234 = vld [vmem:[%s127 + $0x300] sm:$0xff]
        %v235 = vld [vmem:[%s127 + $0x308] sm:$0xff]
        %v236 = vld [vmem:[%s127 + $0x310] sm:$0xff]
        %v237 = vld [vmem:[%s127 + $0x318] sm:$0xff]
        %v238 = vld [vmem:[%s127 + $0x320] sm:$0xff]
        %v239 = vld [vmem:[%s127 + $0x328] sm:$0xff]
        %v240 = vld [vmem:[%s127 + $0x330] sm:$0xff]
        %v241 = vld [vmem:[%s127 + $0x338] sm:$0xff]
        %v242 = vld [vmem:[%s127 + $0x340] sm:$0xff]
        %v243 = vld [vmem:[%s127 + $0x348] sm:$0xff]
        %v244 = vld [vmem:[%s127 + $0x350] sm:$0xff]
        %v245 = vld [vmem:[%s127 + $0x358] sm:$0xff]
        %v246 = vld [vmem:[%s127 + $0x360] sm:$0xff]
        %v247 = vld [vmem:[%s127 + $0x368] sm:$0xff]
        %v248 = vld [vmem:[%s127 + $0x370] sm:$0xff]
        %v249 = vld [vmem:[%s127 + $0x378] sm:$0xff]
        %v250 = vld [vmem:[%s127 + $0x380] sm:$0xff]
        %v251 = vld [vmem:[%s127 + $0x388] sm:$0xff]
        %v252 = vld [vmem:[%s127 + $0x390] sm:$0xff]
        %v253 = vld [vmem:[%s127 + $0x398] sm:$0xff]
        %v254 = vld [vmem:[%s127 + $0x3a0] sm:$0xff]
        %v255 = vld [vmem:[%s127 + $0x3a8] sm:$0xff]
        %v256 = vld [vmem:[%s127 + $0x3b0] sm:$0xff]
        %v257 = vld [vmem:[%s127 + $0x3b8] sm:$0xff]
        %v258 = vld [vmem:[%s127 + $0x3c0] sm:$0xff]
        %v259 = vld [vmem:[%s127 + $0x3c8] sm:$0xff]
        %v260 = vld [vmem:[%s127 + $0x3d0] sm:$0xff]
        %v261 = vld [vmem:[%s127 + $0x3d8] sm:$0xff]
        %v262 = vld [vmem:[%s127 + $0x3e0] sm:$0xff]
        %v263 = vld [vmem:[%s127 + $0x3e8] sm:$0xff]
        %v264 = vld [vmem:[%s127 + $0x3f0] sm:$0xff]
        %v265 = vld [vmem:[%s127 + $0x3f8] sm:$0xff]
        %v266 = vld [vmem:[%s127 + $0x400] sm:$0xff]
        %v267 = vld [vmem:[%s127 + $0x408] sm:$0xff]
        %v268 = vld [vmem:[%s127 + $0x410] sm:$0xff]
        %v269 = vld [vmem:[%s127 + $0x418] sm:$0xff]
        %v270 = vld [vmem:[%s127 + $0x420] sm:$0xff]
        %v271 = vld [vmem:[%s127 + $0x428] sm:$0xff]
        %v272 = vld [vmem:[%s127 + $0x430] sm:$0xff]
        %v273 = vld [vmem:[%s127 + $0x438] sm:$0xff]
        %v274 = vld [vmem:[%s127 + $0x440] sm:$0xff]
        %v275 = vld [vmem:[%s127 + $0x448] sm:$0xff]
        %v276 = vld [vmem:[%s127 + $0x450] sm:$0xff]
        %v277 = vld [vmem:[%s127 + $0x458] sm:$0xff]
        %v278 = vld [vmem:[%s127 + $0x460] sm:$0xff]
        %v279 = vld [vmem:[%s127 + $0x468] sm:$0xff]
        %v280 = vld [vmem:[%s127 + $0x470] sm:$0xff]
        %v281 = vld [vmem:[%s127 + $0x478] sm:$0xff]
        %v282 = vld [vmem:[%s127 + $0x480] sm:$0xff]
        %v283 = vld [vmem:[%s127 + $0x488] sm:$0xff]
        %v284 = vld [vmem:[%s127 + $0x490] sm:$0xff]
        %v285 = vld [vmem:[%s127 + $0x498] sm:$0xff]
        %v286 = vld [vmem:[%s127 + $0x4a0] sm:$0xff]
        %v287 = vld [vmem:[%s127 + $0x4a8] sm:$0xff]
        %v288 = vld [vmem:[%s127 + $0x4b0] sm:$0xff]
        %v289 = vld [vmem:[%s127 + $0x4b8] sm:$0xff]
        %v290 = vld [vmem:[%s127 + $0x4c0] sm:$0xff]
        %v291 = vld [vmem:[%s127 + $0x4c8] sm:$0xff]
        %v292 = vld [vmem:[%s127 + $0x4d0] sm:$0xff]
        %v293 = vld [vmem:[%s127 + $0x4d8] sm:$0xff]
        %v294 = vld [vmem:[%s127 + $0x4e0] sm:$0xff]
        %v295 = vld [vmem:[%s127 + $0x4e8] sm:$0xff]
        %v296 = vld [vmem:[%s127 + $0x4f0] sm:$0xff]
        %v297 = vld [vmem:[%s127 + $0x4f8] sm:$0xff]
        %v298 = vld [vmem:[%s127 + $0x500] sm:$0xff]
        %v299 = vld [vmem:[%s127 + $0x508] sm:$0xff]
        %v300 = vld [vmem:[%s127 + $0x510] sm:$0xff]
        %v301 = vld [vmem:[%s127 + $0x518] sm:$0xff]
        %v302 = vld [vmem:[%s127 + $0x520] sm:$0xff]
        %v303 = vld [vmem:[%s127 + $0x528] sm:$0xff]
        %v304 = vld [vmem:[%s127 + $0x530] sm:$0xff]
        %v305 = vld [vmem:[%s127 + $0x538] sm:$0xff]
        %v306 = vld [vmem:[%s127 + $0x540] sm:$0xff]
        %v307 = vld [vmem:[%s127 + $0x548] sm:$0xff]
        %v308 = vld [vmem:[%s127 + $0x550] sm:$0xff]
        %v309 = vld [vmem:[%s127 + $0x558] sm:$0xff]
        %v310 = vld [vmem:[%s127 + $0x560] sm:$0xff]
        %v311 = vld [vmem:[%s127 + $0x568] sm:$0xff]
        %v312 = vld [vmem:[%s127 + $0x570] sm:$0xff]
        %v313 = vld [vmem:[%s127 + $0x578] sm:$0xff]
        %v314 = vld [vmem:[%s127 + $0x580] sm:$0xff]
        %v315 = vld [vmem:[%s127 + $0x588] sm:$0xff]
        %v316 = vld [vmem:[%s127 + $0x590] sm:$0xff]
        %v317 = vld [vmem:[%s127 + $0x598] sm:$0xff]
        %v318 = vld [vmem:[%s127 + $0x5a0] sm:$0xff]
        %v319 = vld [vmem:[%s127 + $0x5a8] sm:$0xff]
        %v320 = vld [vmem:[%s127 + $0x5b0] sm:$0xff]
        %v321 = vld [vmem:[%s127 + $0x5b8] sm:$0xff]
        %v322 = vld [vmem:[%s127 + $0x5c0] sm:$0xff]
        %v323 = vld [vmem:[%s127 + $0x5c8] sm:$0xff]
        %v324 = vld [vmem:[%s127 + $0x5d0] sm:$0xff]
        %v325 = vld [vmem:[%s127 + $0x5d8] sm:$0xff]
        %v326 = vld [vmem:[%s127 + $0x5e0] sm:$0xff]
        %v327 = vld [vmem:[%s127 + $0x5e8] sm:$0xff]
        %v328 = vld [vmem:[%s127 + $0x5f0] sm:$0xff]
        %v329 = vld [vmem:[%s127 + $0x5f8] sm:$0xff]
        %v330 = vld [vmem:[%s127 + $0x600] sm:$0xff]
        %v331 = vld [vmem:[%s127 + $0x608] sm:$0xff]
        %v332 = vld [vmem:[%s127 + $0x610] sm:$0xff]
        %v333 = vld [vmem:[%s127 + $0x618] sm:$0xff]
        %v334 = vld [vmem:[%s127 + $0x620] sm:$0xff]
        %v335 = vld [vmem:[%s127 + $0x628] sm:$0xff]
        %v336 = vld [vmem:[%s127 + $0x630] sm:$0xff]
        %v337 = vld [vmem:[%s127 + $0x638] sm:$0xff]
        %v338 = vld [vmem:[%s127 + $0x640] sm:$0xff]
        %v339 = vld [vmem:[%s127 + $0x648] sm:$0xff]
        %v340 = vld [vmem:[%s127 + $0x650] sm:$0xff]
        %v341 = vld [vmem:[%s127 + $0x658] sm:$0xff]
        %v342 = vld [vmem:[%s127 + $0x660] sm:$0xff]
        %v343 = vld [vmem:[%s127 + $0x668] sm:$0xff]
        %v344 = vld [vmem:[%s127 + $0x670] sm:$0xff]
        %v345 = vld [vmem:[%s127 + $0x678] sm:$0xff]
        %v346 = vld [vmem:[%s127 + $0x680] sm:$0xff]
        %v347 = vld [vmem:[%s127 + $0x688] sm:$0xff]
        %v348 = vld [vmem:[%s127 + $0x690] sm:$0xff]
        %v349 = vld [vmem:[%s127 + $0x698] sm:$0xff]
        %v350 = vld [vmem:[%s127 + $0x6a0] sm:$0xff]
        %v351 = vld [vmem:[%s127 + $0x6a8] sm:$0xff]
        %v352 = vld [vmem:[%s127 + $0x6b0] sm:$0xff]
        %v353 = vld [vmem:[%s127 + $0x6b8] sm:$0xff]
        %v354 = vld [vmem:[%s127 + $0x6c0] sm:$0xff]
        %v355 = vld [vmem:[%s127 + $0x6c8] sm:$0xff]
        %v356 = vld [vmem:[%s127 + $0x6d0] sm:$0xff]
        %v357 = vld [vmem:[%s127 + $0x6d8] sm:$0xff]
        %v358 = vld [vmem:[%s127 + $0x6e0] sm:$0xff]
        %v359 = vld [vmem:[%s127 + $0x6e8] sm:$0xff]
        %v360 = vld [vmem:[%s127 + $0x6f0] sm:$0xff]
        %v361 = vld [vmem:[%s127 + $0x6f8] sm:$0xff]
        %v362 = vld [vmem:[%s127 + $0x700] sm:$0xff]
        %v363 = vld [vmem:[%s127 + $0x708] sm:$0xff]
        %v364 = vld [vmem:[%s127 + $0x710] sm:$0xff]
        %v365 = vld [vmem:[%s127 + $0x718] sm:$0xff]
        %v366 = vld [vmem:[%s127 + $0x720] sm:$0xff]
        %v367 = vld [vmem:[%s127 + $0x728] sm:$0xff]
        %v368 = vld [vmem:[%s127 + $0x730] sm:$0xff]
        %v369 = vld [vmem:[%s127 + $0x738] sm:$0xff]
        %v370 = vld [vmem:[%s127 + $0x740] sm:$0xff]
        %v371 = vld [vmem:[%s127 + $0x748] sm:$0xff]
        %v372 = vld [vmem:[%s127 + $0x750] sm:$0xff]
        %v373 = vld [vmem:[%s127 + $0x758] sm:$0xff]
        %v374 = vld [vmem:[%s127 + $0x760] sm:$0xff]
        %v375 = vld [vmem:[%s127 + $0x768] sm:$0xff]
        %v376 = vld [vmem:[%s127 + $0x770] sm:$0xff]
        %v377 = vld [vmem:[%s127 + $0x778] sm:$0xff]
        %v378 = vld [vmem:[%s127 + $0x780] sm:$0xff]
        %v379 = vld [vmem:[%s127 + $0x788] sm:$0xff]
        %v380 = vld [vmem:[%s127 + $0x790] sm:$0xff]
        %v381 = vld [vmem:[%s127 + $0x798] sm:$0xff]
        %v382 = vld [vmem:[%s127 + $0x7a0] sm:$0xff]
        %v383 = vld [vmem:[%s127 + $0x7a8] sm:$0xff]
        %v384 = vld [vmem:[%s127 + $0x7b0] sm:$0xff]
        %v385 = vld [vmem:[%s127 + $0x7b8] sm:$0xff]
        %v386 = vld [vmem:[%s127 + $0x7c0] sm:$0xff]
        %v387 = vld [vmem:[%s127 + $0x7c8] sm:$0xff]
        %v388 = vld [vmem:[%s127 + $0x7d0] sm:$0xff]
        %v389 = vld [vmem:[%s127 + $0x7d8] sm:$0xff]
        %v390 = vld [vmem:[%s127 + $0x7e0] sm:$0xff]
        %v391 = vld [vmem:[%s127 + $0x7e8] sm:$0xff]
        %v392 = vld [vmem:[%s127 + $0x7f0] sm:$0xff]
        %v393 = vld [vmem:[%s127 + $0x7f8] sm:$0xff]
        %v394 = vld [vmem:[%s127 + $0x800] sm:$0xff]
        %v395 = vld [vmem:[%s127 + $0x808] sm:$0xff]
        %v396 = vld [vmem:[%s127 + $0x810] sm:$0xff]
        %v397 = vld [vmem:[%s127 + $0x818] sm:$0xff]
        %v398 = vld [vmem:[%s127 + $0x820] sm:$0xff]
        %v399 = vld [vmem:[%s127 + $0x828] sm:$0xff]
        %v400 = vld [vmem:[%s127 + $0x830] sm:$0xff]
        %v401 = vld [vmem:[%s127 + $0x838] sm:$0xff]
        %v402 = vld [vmem:[%s127 + $0x840] sm:$0xff]
        %v403 = vld [vmem:[%s127 + $0x848] sm:$0xff]
        %v404 = vld [vmem:[%s127 + $0x850] sm:$0xff]
        %v405 = vld [vmem:[%s127 + $0x858] sm:$0xff]
        %v406 = vld [vmem:[%s127 + $0x860] sm:$0xff]
        %v407 = vld [vmem:[%s127 + $0x868] sm:$0xff]
        %v408 = vld [vmem:[%s127 + $0x870] sm:$0xff]
        %v409 = vld [vmem:[%s127 + $0x878] sm:$0xff]
        %v410 = vld [vmem:[%s127 + $0x880] sm:$0xff]
        %v411 = vld [vmem:[%s127 + $0x888] sm:$0xff]
        %v412 = vld [vmem:[%s127 + $0x890] sm:$0xff]
        %v413 = vld [vmem:[%s127 + $0x898] sm:$0xff]
        %v414 = vld [vmem:[%s127 + $0x8a0] sm:$0xff]
        %v415 = vld [vmem:[%s127 + $0x8a8] sm:$0xff]
        %v416 = vld [vmem:[%s127 + $0x8b0] sm:$0xff]
        %v417 = vld [vmem:[%s127 + $0x8b8] sm:$0xff]
        %v418 = vld [vmem:[%s127 + $0x8c0] sm:$0xff]
        %v419 = vld [vmem:[%s127 + $0x8c8] sm:$0xff]
        %v420 = vld [vmem:[%s127 + $0x8d0] sm:$0xff]
        %v421 = vld [vmem:[%s127 + $0x8d8] sm:$0xff]
        %v422 = vld [vmem:[%s127 + $0x8e0] sm:$0xff]
        %v423 = vld [vmem:[%s127 + $0x8e8] sm:$0xff]
        %v424 = vld [vmem:[%s127 + $0x8f0] sm:$0xff]
        %v425 = vld [vmem:[%s127 + $0x8f8] sm:$0xff]
        %v426 = vld [vmem:[%s127 + $0x900] sm:$0xff]
        %v427 = vld [vmem:[%s127 + $0x908] sm:$0xff]
        %v428 = vld [vmem:[%s127 + $0x910] sm:$0xff]
        %v429 = vld [vmem:[%s127 + $0x918] sm:$0xff]
        %v430 = vld [vmem:[%s127 + $0x920] sm:$0xff]
        %v431 = vld [vmem:[%s127 + $0x928] sm:$0xff]
        %v432 = vld [vmem:[%s127 + $0x930] sm:$0xff]
        %v433 = vld [vmem:[%s127 + $0x938] sm:$0xff]
        %v434 = vld [vmem:[%s127 + $0x940] sm:$0xff]
        %v435 = vld [vmem:[%s127 + $0x948] sm:$0xff]
        %v436 = vld [vmem:[%s127 + $0x950] sm:$0xff]
        %v437 = vld [vmem:[%s127 + $0x958] sm:$0xff]
        %v438 = vld [vmem:[%s127 + $0x960] sm:$0xff]
        %v439 = vld [vmem:[%s127 + $0x968] sm:$0xff]
        %v440 = vld [vmem:[%s127 + $0x970] sm:$0xff]
        %v441 = vld [vmem:[%s127 + $0x978] sm:$0xff]
        %v442 = vld [vmem:[%s127 + $0x980] sm:$0xff]
        %v443 = vld [vmem:[%s127 + $0x988] sm:$0xff]
        %v444 = vld [vmem:[%s127 + $0x990] sm:$0xff]
        %v445 = vld [vmem:[%s127 + $0x998] sm:$0xff]
        %v446 = vld [vmem:[%s127 + $0x9a0] sm:$0xff]
        %v447 = vld [vmem:[%s127 + $0x9a8] sm:$0xff]
        %v448 = vld [vmem:[%s127 + $0x9b0] sm:$0xff]
        %v449 = vld [vmem:[%s127 + $0x9b8] sm:$0xff]
        %v450 = vld [vmem:[%s127 + $0x9c0] sm:$0xff]
        %v451 = vld [vmem:[%s127 + $0x9c8] sm:$0xff]
        %v452 = vld [vmem:[%s127 + $0x9d0] sm:$0xff]
        %v453 = vld [vmem:[%s127 + $0x9d8] sm:$0xff]
        %v454 = vld [vmem:[%s127 + $0x9e0] sm:$0xff]
        %v455 = vld [vmem:[%s127 + $0x9e8] sm:$0xff]
        %v456 = vld [vmem:[%s127 + $0x9f0] sm:$0xff]
        %v457 = vld [vmem:[%s127 + $0x9f8] sm:$0xff]
        %v458 = vld [vmem:[%s127 + $0xa00] sm:$0xff]
        %v459 = vld [vmem:[%s127 + $0xa08] sm:$0xff]
        %v460 = vld [vmem:[%s127 + $0xa10] sm:$0xff]
        %v461 = vld [vmem:[%s127 + $0xa18] sm:$0xff]
        %v462 = vld [vmem:[%s127 + $0xa20] sm:$0xff]
        %v463 = vld [vmem:[%s127 + $0xa28] sm:$0xff]
        %v464 = vld [vmem:[%s127 + $0xa30] sm:$0xff]
        %v465 = vld [vmem:[%s127 + $0xa38] sm:$0xff]
        %v466 = vld [vmem:[%s127 + $0xa40] sm:$0xff]
        %v467 = vld [vmem:[%s127 + $0xa48] sm:$0xff]
        %v468 = vld [vmem:[%s127 + $0xa50] sm:$0xff]
        %v469 = vld [vmem:[%s127 + $0xa58] sm:$0xff]
        %v470 = vld [vmem:[%s127 + $0xa60] sm:$0xff]
        %v471 = vld [vmem:[%s127 + $0xa68] sm:$0xff]
        %v472 = vld [vmem:[%s127 + $0xa70] sm:$0xff]
        %v473 = vld [vmem:[%s127 + $0xa78] sm:$0xff]
        %v474 = vld [vmem:[%s127 + $0xa80] sm:$0xff]
        %v475 = vld [vmem:[%s127 + $0xa88] sm:$0xff]
        %v476 = vld [vmem:[%s127 + $0xa90] sm:$0xff]
        %v477 = vld [vmem:[%s127 + $0xa98] sm:$0xff]
        %v478 = vld [vmem:[%s127 + $0xaa0] sm:$0xff]
        %v479 = vld [vmem:[%s127 + $0xaa8] sm:$0xff]
        %v480 = vld [vmem:[%s127 + $0xab0] sm:$0xff]
        %v481 = vld [vmem:[%s127 + $0xab8] sm:$0xff]
        %v482 = vld [vmem:[%s127 + $0xac0] sm:$0xff]
        %v483 = vld [vmem:[%s127 + $0xac8] sm:$0xff]
        %v484 = vld [vmem:[%s127 + $0xad0] sm:$0xff]
        %v485 = vld [vmem:[%s127 + $0xad8] sm:$0xff]
        %v486 = vld [vmem:[%s127 + $0xae0] sm:$0xff]
        %v487 = vld [vmem:[%s127 + $0xae8] sm:$0xff]
        %v488 = vld [vmem:[%s127 + $0xaf0] sm:$0xff]
        %v489 = vld [vmem:[%s127 + $0xaf8] sm:$0xff]
        %v490 = vld [vmem:[%s127 + $0xb00] sm:$0xff]
        %v491 = vld [vmem:[%s127 + $0xb08] sm:$0xff]
        %v492 = vld [vmem:[%s127 + $0xb10] sm:$0xff]
        %v493 = vld [vmem:[%s127 + $0xb18] sm:$0xff]
        %v494 = vld [vmem:[%s127 + $0xb20] sm:$0xff]
        %v495 = vld [vmem:[%s127 + $0xb28] sm:$0xff]
        %v496 = vld [vmem:[%s127 + $0xb30] sm:$0xff]
        %v497 = vld [vmem:[%s127 + $0xb38] sm:$0xff]
        %v498 = vld [vmem:[%s127 + $0xb40] sm:$0xff]
        %v499 = vld [vmem:[%s127 + $0xb48] sm:$0xff]
        %v500 = vld [vmem:[%s127 + $0xb50] sm:$0xff]
        %v501 = vld [vmem:[%s127 + $0xb58] sm:$0xff]
        %v502 = vld [vmem:[%s127 + $0xb60] sm:$0xff]
        %v503 = vld [vmem:[%s127 + $0xb68] sm:$0xff]
        %v504 = vld [vmem:[%s127 + $0xb70] sm:$0xff]
        %v505 = vld [vmem:[%s127 + $0xb78] sm:$0xff]
        %v506 = vld [vmem:[%s127 + $0xb80] sm:$0xff]
        %v507 = vld [vmem:[%s127 + $0xb88] sm:$0xff]
        %v508 = vld [vmem:[%s127 + $0xb90] sm:$0xff]
        %v509 = vld [vmem:[%s127 + $0xb98] sm:$0xff]
        %v510 = vld [vmem:[%s127 + $0xba0] sm:$0xff]
        %v511 = vld [vmem:[%s127 + $0xba8] sm:$0xff]
        %v512 = vld [vmem:[%s127 + $0xbb0] sm:$0xff]
        %v513 = vld [vmem:[%s127 + $0xbb8] sm:$0xff]
        %v514 = vld [vmem:[%s127 + $0xbc0] sm:$0xff]
        %v515 = vld [vmem:[%s127 + $0xbc8] sm:$0xff]
        %v516 = vld [vmem:[%s127 + $0xbd0] sm:$0xff]
        %v517 = vld [vmem:[%s127 + $0xbd8] sm:$0xff]
        %v518 = vld [vmem:[%s127 + $0xbe0] sm:$0xff]
        %v519 = vld [vmem:[%s127 + $0xbe8] sm:$0xff]
        %v520 = vld [vmem:[%s127 + $0xbf0] sm:$0xff]
        %v521 = vld [vmem:[%s127 + $0xbf8] sm:$0xff]
        %v522 = vld [vmem:[%s127 + $0xc00] sm:$0xff]
        %v523 = vld [vmem:[%s127 + $0xc08] sm:$0xff]
        %v524 = vld [vmem:[%s127 + $0xc10] sm:$0xff]
        %v525 = vld [vmem:[%s127 + $0xc18] sm:$0xff]
        %v526 = vld [vmem:[%s127 + $0xc20] sm:$0xff]
        %v527 = vld [vmem:[%s127 + $0xc28] sm:$0xff]
        %v528 = vld [vmem:[%s127 + $0xc30] sm:$0xff]
        %v529 = vld [vmem:[%s127 + $0xc38] sm:$0xff]
        %v530 = vld [vmem:[%s127 + $0xc40] sm:$0xff]
        %v531 = vld [vmem:[%s127 + $0xc48] sm:$0xff]
        %v532 = vld [vmem:[%s127 + $0xc50] sm:$0xff]
        %v533 = vld [vmem:[%s127 + $0xc58] sm:$0xff]
        %v534 = vld [vmem:[%s127 + $0xc60] sm:$0xff]
        %v535 = vld [vmem:[%s127 + $0xc68] sm:$0xff]
        %v536 = vld [vmem:[%s127 + $0xc70] sm:$0xff]
        %v537 = vld [vmem:[%s127 + $0xc78] sm:$0xff]
        %v538 = vld [vmem:[%s127 + $0xc80] sm:$0xff]
        %v539 = vld [vmem:[%s127 + $0xc88] sm:$0xff]
        %v540 = vld [vmem:[%s127 + $0xc90] sm:$0xff]
        %v541 = vld [vmem:[%s127 + $0xc98] sm:$0xff]
        %v542 = vld [vmem:[%s127 + $0xca0] sm:$0xff]
        %v543 = vld [vmem:[%s127 + $0xca8] sm:$0xff]
        %v544 = vld [vmem:[%s127 + $0xcb0] sm:$0xff]
        %v545 = vld [vmem:[%s127 + $0xcb8] sm:$0xff]
        %v546 = vld [vmem:[%s127 + $0xcc0] sm:$0xff]
        %v547 = vld [vmem:[%s127 + $0xcc8] sm:$0xff]
        %v548 = vld [vmem:[%s127 + $0xcd0] sm:$0xff]
        %v549 = vld [vmem:[%s127 + $0xcd8] sm:$0xff]
        %v550 = vld [vmem:[%s127 + $0xce0] sm:$0xff]
        %v551 = vld [vmem:[%s127 + $0xce8] sm:$0xff]
        %v552 = vld [vmem:[%s127 + $0xcf0] sm:$0xff]
        %v553 = vld [vmem:[%s127 + $0xcf8] sm:$0xff]
        %v554 = vld [vmem:[%s127 + $0xd00] sm:$0xff]
        %v555 = vld [vmem:[%s127 + $0xd08] sm:$0xff]
        %v556 = vld [vmem:[%s127 + $0xd10] sm:$0xff]
        %v557 = vld [vmem:[%s127 + $0xd18] sm:$0xff]
        %v558 = vld [vmem:[%s127 + $0xd20] sm:$0xff]
        %v559 = vld [vmem:[%s127 + $0xd28] sm:$0xff]
        %v560 = vld [vmem:[%s127 + $0xd30] sm:$0xff]
        %v561 = vld [vmem:[%s127 + $0xd38] sm:$0xff]
        %v562 = vld [vmem:[%s127 + $0xd40] sm:$0xff]
        %v563 = vld [vmem:[%s127 + $0xd48] sm:$0xff]
        %v564 = vld [vmem:[%s127 + $0xd50] sm:$0xff]
        %v565 = vld [vmem:[%s127 + $0xd58] sm:$0xff]
        %v566 = vld [vmem:[%s127 + $0xd60] sm:$0xff]
        %v567 = vld [vmem:[%s127 + $0xd68] sm:$0xff]
        %v568 = vld [vmem:[%s127 + $0xd70] sm:$0xff]
        %v569 = vld [vmem:[%s127 + $0xd78] sm:$0xff]
        %v570 = vld [vmem:[%s127 + $0xd80] sm:$0xff]
        %v571 = vld [vmem:[%s127 + $0xd88] sm:$0xff]
        %v572 = vld [vmem:[%s127 + $0xd90] sm:$0xff]
        %v573 = vld [vmem:[%s127 + $0xd98] sm:$0xff]
        %v574 = vld [vmem:[%s127 + $0xda0] sm:$0xff]
        %v575 = vld [vmem:[%s127 + $0xda8] sm:$0xff]
        %v576 = vld [vmem:[%s127 + $0xdb0] sm:$0xff]
        %v577 = vld [vmem:[%s127 + $0xdb8] sm:$0xff]
        %v578 = vld [vmem:[%s127 + $0xdc0] sm:$0xff]
        %v579 = vld [vmem:[%s127 + $0xdc8] sm:$0xff]
        %v580 = vld [vmem:[%s127 + $0xdd0] sm:$0xff]
        %v581 = vld [vmem:[%s127 + $0xdd8] sm:$0xff]
        %v582 = vld [vmem:[%s127 + $0xde0] sm:$0xff]
        %v583 = vld [vmem:[%s127 + $0xde8] sm:$0xff]
        %v584 = vld [vmem:[%s127 + $0xdf0] sm:$0xff]
        %v585 = vld [vmem:[%s127 + $0xdf8] sm:$0xff]
        %v586 = vld [vmem:[%s127 + $0xe00] sm:$0xff]
        %v587 = vld [vmem:[%s127 + $0xe08] sm:$0xff]
        %v588 = vld [vmem:[%s127 + $0xe10] sm:$0xff]
        %v589 = vld [vmem:[%s127 + $0xe18] sm:$0xff]
        %v590 = vld [vmem:[%s127 + $0xe20] sm:$0xff]
        %v591 = vld [vmem:[%s127 + $0xe28] sm:$0xff]
        %v592 = vld [vmem:[%s127 + $0xe30] sm:$0xff]
        %v593 = vld [vmem:[%s127 + $0xe38] sm:$0xff]
        %v594 = vld [vmem:[%s127 + $0xe40] sm:$0xff]
        %v595 = vld [vmem:[%s127 + $0xe48] sm:$0xff]
        %v596 = vld [vmem:[%s127 + $0xe50] sm:$0xff]
        %v597 = vld [vmem:[%s127 + $0xe58] sm:$0xff]
        %v598 = vld [vmem:[%s127 + $0xe60] sm:$0xff]
        %v599 = vld [vmem:[%s127 + $0xe68] sm:$0xff]
        %v600 = vld [vmem:[%s127 + $0xe70] sm:$0xff]
        %v601 = vld [vmem:[%s127 + $0xe78] sm:$0xff]
        %v602 = vld [vmem:[%s127 + $0xe80] sm:$0xff]
        %v603 = vld [vmem:[%s127 + $0xe88] sm:$0xff]
        %v604 = vld [vmem:[%s127 + $0xe90] sm:$0xff]
        %v605 = vld [vmem:[%s127 + $0xe98] sm:$0xff]
        %v606 = vld [vmem:[%s127 + $0xea0] sm:$0xff]
        %v607 = vld [vmem:[%s127 + $0xea8] sm:$0xff]
        %v608 = vld [vmem:[%s127 + $0xeb0] sm:$0xff]
        %v609 = vld [vmem:[%s127 + $0xeb8] sm:$0xff]
        %v610 = vld [vmem:[%s127 + $0xec0] sm:$0xff]
        %v611 = vld [vmem:[%s127 + $0xec8] sm:$0xff]
        %v612 = vld [vmem:[%s127 + $0xed0] sm:$0xff]
        %v613 = vld [vmem:[%s127 + $0xed8] sm:$0xff]
        %v614 = vld [vmem:[%s127 + $0xee0] sm:$0xff]
        %v615 = vld [vmem:[%s127 + $0xee8] sm:$0xff]
        %v616 = vld [vmem:[%s127 + $0xef0] sm:$0xff]
        %v617 = vld [vmem:[%s127 + $0xef8] sm:$0xff]
        %v618 = vld [vmem:[%s127 + $0xf00] sm:$0xff]
        %v619 = vld [vmem:[%s127 + $0xf08] sm:$0xff]
        %v620 = vld [vmem:[%s127 + $0xf10] sm:$0xff]
        %v621 = vld [vmem:[%s127 + $0xf18] sm:$0xff]
        %v622 = vld [vmem:[%s127 + $0xf20] sm:$0xff]
        %v623 = vld [vmem:[%s127 + $0xf28] sm:$0xff]
        %v624 = vld [vmem:[%s127 + $0xf30] sm:$0xff]
        %v625 = vld [vmem:[%s127 + $0xf38] sm:$0xff]
        %v626 = vld [vmem:[%s127 + $0xf40] sm:$0xff]
        %v627 = vld [vmem:[%s127 + $0xf48] sm:$0xff]
        %v628 = vld [vmem:[%s127 + $0xf50] sm:$0xff]
        %v629 = vld [vmem:[%s127 + $0xf58] sm:$0xff]
        %v630 = vld [vmem:[%s127 + $0xf60] sm:$0xff]
        %v631 = vld [vmem:[%s127 + $0xf68] sm:$0xff]
        %v632 = vld [vmem:[%s127 + $0xf70] sm:$0xff]
        %v633 = vld [vmem:[%s127 + $0xf78] sm:$0xff]
        %v634 = vld [vmem:[%s127 + $0xf80] sm:$0xff]
        %v635 = vld [vmem:[%s127 + $0xf88] sm:$0xff]
        %v636 = vld [vmem:[%s127 + $0xf90] sm:$0xff]
        %v637 = vld [vmem:[%s127 + $0xf98] sm:$0xff]
        %v638 = vld [vmem:[%s127 + $0xfa0] sm:$0xff]
        %v639 = vld [vmem:[%s127 + $0xfa8] sm:$0xff]
        %v640 = vld [vmem:[%s127 + $0xfb0] sm:$0xff]
        %v641 = vld [vmem:[%s127 + $0xfb8] sm:$0xff]
        %v642 = vld [vmem:[%s127 + $0xfc0] sm:$0xff]
        %v643 = vld [vmem:[%s127 + $0xfc8] sm:$0xff]
        %v644 = vld [vmem:[%s127 + $0xfd0] sm:$0xff]
        %v645 = vld [vmem:[%s127 + $0xfd8] sm:$0xff]
        %v646 = vld [vmem:[%s127 + $0xfe0] sm:$0xff]
        %v647 = vld [vmem:[%s127 + $0xfe8] sm:$0xff]
        %v648 = vld [vmem:[%s127 + $0xff0] sm:$0xff]
        %v649 = vld [vmem:[%s127 + $0xff8] sm:$0xff]
        %v650 = vlaneseq
        %v651 = vand.u32 %v650, 127
        %v652 = vcvt.s32.f32 %v651
        %v653 = vmul.f32 %v652, 0.10204082
        %v654 = vadd.f32 %v653, 0.0
        %656 = vset.pattern.permute.xlu0 0
        %657 = vperm.xlu0 %656, %v138
        %v658 = vpop.permute.xlu0 %657
        %661 = vset.pattern.permute.xlu0 0
        %662 = vperm.xlu0 %661, %v139
        %v663 = vpop.permute.xlu0 %662
        %666 = vset.pattern.permute.xlu0 0
        %667 = vperm.xlu0 %666, %v140
        %v668 = vpop.permute.xlu0 %667
        %671 = vset.pattern.permute.xlu0 0
        %672 = vperm.xlu0 %671, %v141
        %v673 = vpop.permute.xlu0 %672
        %676 = vset.pattern.permute.xlu0 0
        %677 = vperm.xlu0 %676, %v142
        %v678 = vpop.permute.xlu0 %677
        %681 = vset.pattern.permute.xlu0 0
        %682 = vperm.xlu0 %681, %v143
        %v683 = vpop.permute.xlu0 %682
        %686 = vset.pattern.permute.xlu0 0
        %687 = vperm.xlu0 %686, %v144
        %v688 = vpop.permute.xlu0 %687
        %691 = vset.pattern.permute.xlu0 0
        %692 = vperm.xlu0 %691, %v145
        %v693 = vpop.permute.xlu0 %692
        %696 = vset.pattern.permute.xlu0 0
        %697 = vperm.xlu0 %696, %v146
        %v698 = vpop.permute.xlu0 %697
        %701 = vset.pattern.permute.xlu0 0
        %702 = vperm.xlu0 %701, %v147
        %v703 = vpop.permute.xlu0 %702
        %706 = vset.pattern.permute.xlu0 0
        %707 = vperm.xlu0 %706, %v148
        %v708 = vpop.permute.xlu0 %707
        %711 = vset.pattern.permute.xlu0 0
        %712 = vperm.xlu0 %711, %v149
        %v713 = vpop.permute.xlu0 %712
        %716 = vset.pattern.permute.xlu0 0
        %717 = vperm.xlu0 %716, %v150
        %v718 = vpop.permute.xlu0 %717
        %721 = vset.pattern.permute.xlu0 0
        %722 = vperm.xlu0 %721, %v151
        %v723 = vpop.permute.xlu0 %722
        %726 = vset.pattern.permute.xlu0 0
        %727 = vperm.xlu0 %726, %v152
        %v728 = vpop.permute.xlu0 %727
        %731 = vset.pattern.permute.xlu0 0
        %732 = vperm.xlu0 %731, %v153
        %v733 = vpop.permute.xlu0 %732
        %736 = vset.pattern.permute.xlu0 0
        %737 = vperm.xlu0 %736, %v154
        %v738 = vpop.permute.xlu0 %737
        %741 = vset.pattern.permute.xlu0 0
        %742 = vperm.xlu0 %741, %v155
        %v743 = vpop.permute.xlu0 %742
        %746 = vset.pattern.permute.xlu0 0
        %747 = vperm.xlu0 %746, %v156
        %v748 = vpop.permute.xlu0 %747
        %751 = vset.pattern.permute.xlu0 0
        %752 = vperm.xlu0 %751, %v157
        %v753 = vpop.permute.xlu0 %752
        %756 = vset.pattern.permute.xlu0 0
        %757 = vperm.xlu0 %756, %v158
        %v758 = vpop.permute.xlu0 %757
        %761 = vset.pattern.permute.xlu0 0
        %762 = vperm.xlu0 %761, %v159
        %v763 = vpop.permute.xlu0 %762
        %766 = vset.pattern.permute.xlu0 0
        %767 = vperm.xlu0 %766, %v160
        %v768 = vpop.permute.xlu0 %767
        %771 = vset.pattern.permute.xlu0 0
        %772 = vperm.xlu0 %771, %v161
        %v773 = vpop.permute.xlu0 %772
        %776 = vset.pattern.permute.xlu0 0
        %777 = vperm.xlu0 %776, %v162
        %v778 = vpop.permute.xlu0 %777
        %781 = vset.pattern.permute.xlu0 0
        %782 = vperm.xlu0 %781, %v163
        %v783 = vpop.permute.xlu0 %782
        %786 = vset.pattern.permute.xlu0 0
        %787 = vperm.xlu0 %786, %v164
        %v788 = vpop.permute.xlu0 %787
        %791 = vset.pattern.permute.xlu0 0
        %792 = vperm.xlu0 %791, %v165
        %v793 = vpop.permute.xlu0 %792
        %796 = vset.pattern.permute.xlu0 0
        %797 = vperm.xlu0 %796, %v166
        %v798 = vpop.permute.xlu0 %797
        %801 = vset.pattern.permute.xlu0 0
        %802 = vperm.xlu0 %801, %v167
        %v803 = vpop.permute.xlu0 %802
        %806 = vset.pattern.permute.xlu0 0
        %807 = vperm.xlu0 %806, %v168
        %v808 = vpop.permute.xlu0 %807
        %811 = vset.pattern.permute.xlu0 0
        %812 = vperm.xlu0 %811, %v169
        %v813 = vpop.permute.xlu0 %812
        %816 = vset.pattern.permute.xlu0 0
        %817 = vperm.xlu0 %816, %v170
        %v818 = vpop.permute.xlu0 %817
        %821 = vset.pattern.permute.xlu0 0
        %822 = vperm.xlu0 %821, %v171
        %v823 = vpop.permute.xlu0 %822
        %826 = vset.pattern.permute.xlu0 0
        %827 = vperm.xlu0 %826, %v172
        %v828 = vpop.permute.xlu0 %827
        %831 = vset.pattern.permute.xlu0 0
        %832 = vperm.xlu0 %831, %v173
        %v833 = vpop.permute.xlu0 %832
        %836 = vset.pattern.permute.xlu0 0
        %837 = vperm.xlu0 %836, %v174
        %v838 = vpop.permute.xlu0 %837
        %841 = vset.pattern.permute.xlu0 0
        %842 = vperm.xlu0 %841, %v175
        %v843 = vpop.permute.xlu0 %842
        %846 = vset.pattern.permute.xlu0 0
        %847 = vperm.xlu0 %846, %v176
        %v848 = vpop.permute.xlu0 %847
        %851 = vset.pattern.permute.xlu0 0
        %852 = vperm.xlu0 %851, %v177
        %v853 = vpop.permute.xlu0 %852
        %856 = vset.pattern.permute.xlu0 0
        %857 = vperm.xlu0 %856, %v178
        %v858 = vpop.permute.xlu0 %857
        %861 = vset.pattern.permute.xlu0 0
        %862 = vperm.xlu0 %861, %v179
        %v863 = vpop.permute.xlu0 %862
        %866 = vset.pattern.permute.xlu0 0
        %867 = vperm.xlu0 %866, %v180
        %v868 = vpop.permute.xlu0 %867
        %871 = vset.pattern.permute.xlu0 0
        %872 = vperm.xlu0 %871, %v181
        %v873 = vpop.permute.xlu0 %872
        %876 = vset.pattern.permute.xlu0 0
        %877 = vperm.xlu0 %876, %v182
        %v878 = vpop.permute.xlu0 %877
        %881 = vset.pattern.permute.xlu0 0
        %882 = vperm.xlu0 %881, %v183
        %v883 = vpop.permute.xlu0 %882
        %886 = vset.pattern.permute.xlu0 0
        %887 = vperm.xlu0 %886, %v184
        %v888 = vpop.permute.xlu0 %887
        %891 = vset.pattern.permute.xlu0 0
        %892 = vperm.xlu0 %891, %v185
        %v893 = vpop.permute.xlu0 %892
        %896 = vset.pattern.permute.xlu0 0
        %897 = vperm.xlu0 %896, %v186
        %v898 = vpop.permute.xlu0 %897
        %901 = vset.pattern.permute.xlu0 0
        %902 = vperm.xlu0 %901, %v187
        %v903 = vpop.permute.xlu0 %902
        %906 = vset.pattern.permute.xlu0 0
        %907 = vperm.xlu0 %906, %v188
        %v908 = vpop.permute.xlu0 %907
        %911 = vset.pattern.permute.xlu0 0
        %912 = vperm.xlu0 %911, %v189
        %v913 = vpop.permute.xlu0 %912
        %916 = vset.pattern.permute.xlu0 0
        %917 = vperm.xlu0 %916, %v190
        %v918 = vpop.permute.xlu0 %917
        %921 = vset.pattern.permute.xlu0 0
        %922 = vperm.xlu0 %921, %v191
        %v923 = vpop.permute.xlu0 %922
        %926 = vset.pattern.permute.xlu0 0
        %927 = vperm.xlu0 %926, %v192
        %v928 = vpop.permute.xlu0 %927
        %931 = vset.pattern.permute.xlu0 0
        %932 = vperm.xlu0 %931, %v193
        %v933 = vpop.permute.xlu0 %932
        %936 = vset.pattern.permute.xlu0 0
        %937 = vperm.xlu0 %936, %v194
        %v938 = vpop.permute.xlu0 %937
        %941 = vset.pattern.permute.xlu0 0
        %942 = vperm.xlu0 %941, %v195
        %v943 = vpop.permute.xlu0 %942
        %946 = vset.pattern.permute.xlu0 0
        %947 = vperm.xlu0 %946, %v196
        %v948 = vpop.permute.xlu0 %947
        %951 = vset.pattern.permute.xlu0 0
        %952 = vperm.xlu0 %951, %v197
        %v953 = vpop.permute.xlu0 %952
        %956 = vset.pattern.permute.xlu0 0
        %957 = vperm.xlu0 %956, %v198
        %v958 = vpop.permute.xlu0 %957
        %961 = vset.pattern.permute.xlu0 0
        %962 = vperm.xlu0 %961, %v199
        %v963 = vpop.permute.xlu0 %962
        %966 = vset.pattern.permute.xlu0 0
        %967 = vperm.xlu0 %966, %v200
        %v968 = vpop.permute.xlu0 %967
        %971 = vset.pattern.permute.xlu0 0
        %972 = vperm.xlu0 %971, %v201
        %v973 = vpop.permute.xlu0 %972
        %976 = vset.pattern.permute.xlu0 0
        %977 = vperm.xlu0 %976, %v202
        %v978 = vpop.permute.xlu0 %977
        %981 = vset.pattern.permute.xlu0 0
        %982 = vperm.xlu0 %981, %v203
        %v983 = vpop.permute.xlu0 %982
        %986 = vset.pattern.permute.xlu0 0
        %987 = vperm.xlu0 %986, %v204
        %v988 = vpop.permute.xlu0 %987
        %991 = vset.pattern.permute.xlu0 0
        %992 = vperm.xlu0 %991, %v205
        %v993 = vpop.permute.xlu0 %992
        %996 = vset.pattern.permute.xlu0 0
        %997 = vperm.xlu0 %996, %v206
        %v998 = vpop.permute.xlu0 %997
        %1001 = vset.pattern.permute.xlu0 0
        %1002 = vperm.xlu0 %1001, %v207
        %v1003 = vpop.permute.xlu0 %1002
        %1006 = vset.pattern.permute.xlu0 0
        %1007 = vperm.xlu0 %1006, %v208
        %v1008 = vpop.permute.xlu0 %1007
        %1011 = vset.pattern.permute.xlu0 0
        %1012 = vperm.xlu0 %1011, %v209
        %v1013 = vpop.permute.xlu0 %1012
        %1016 = vset.pattern.permute.xlu0 0
        %1017 = vperm.xlu0 %1016, %v210
        %v1018 = vpop.permute.xlu0 %1017
        %1021 = vset.pattern.permute.xlu0 0
        %1022 = vperm.xlu0 %1021, %v211
        %v1023 = vpop.permute.xlu0 %1022
        %1026 = vset.pattern.permute.xlu0 0
        %1027 = vperm.xlu0 %1026, %v212
        %v1028 = vpop.permute.xlu0 %1027
        %1031 = vset.pattern.permute.xlu0 0
        %1032 = vperm.xlu0 %1031, %v213
        %v1033 = vpop.permute.xlu0 %1032
        %1036 = vset.pattern.permute.xlu0 0
        %1037 = vperm.xlu0 %1036, %v214
        %v1038 = vpop.permute.xlu0 %1037
        %1041 = vset.pattern.permute.xlu0 0
        %1042 = vperm.xlu0 %1041, %v215
        %v1043 = vpop.permute.xlu0 %1042
        %1046 = vset.pattern.permute.xlu0 0
        %1047 = vperm.xlu0 %1046, %v216
        %v1048 = vpop.permute.xlu0 %1047
        %1051 = vset.pattern.permute.xlu0 0
        %1052 = vperm.xlu0 %1051, %v217
        %v1053 = vpop.permute.xlu0 %1052
        %1056 = vset.pattern.permute.xlu0 0
        %1057 = vperm.xlu0 %1056, %v218
        %v1058 = vpop.permute.xlu0 %1057
        %1061 = vset.pattern.permute.xlu0 0
        %1062 = vperm.xlu0 %1061, %v219
        %v1063 = vpop.permute.xlu0 %1062
        %1066 = vset.pattern.permute.xlu0 0
        %1067 = vperm.xlu0 %1066, %v220
        %v1068 = vpop.permute.xlu0 %1067
        %1071 = vset.pattern.permute.xlu0 0
        %1072 = vperm.xlu0 %1071, %v221
        %v1073 = vpop.permute.xlu0 %1072
        %1076 = vset.pattern.permute.xlu0 0
        %1077 = vperm.xlu0 %1076, %v222
        %v1078 = vpop.permute.xlu0 %1077
        %1081 = vset.pattern.permute.xlu0 0
        %1082 = vperm.xlu0 %1081, %v223
        %v1083 = vpop.permute.xlu0 %1082
        %1086 = vset.pattern.permute.xlu0 0
        %1087 = vperm.xlu0 %1086, %v224
        %v1088 = vpop.permute.xlu0 %1087
        %1091 = vset.pattern.permute.xlu0 0
        %1092 = vperm.xlu0 %1091, %v225
        %v1093 = vpop.permute.xlu0 %1092
        %1096 = vset.pattern.permute.xlu0 0
        %1097 = vperm.xlu0 %1096, %v226
        %v1098 = vpop.permute.xlu0 %1097
        %1101 = vset.pattern.permute.xlu0 0
        %1102 = vperm.xlu0 %1101, %v227
        %v1103 = vpop.permute.xlu0 %1102
        %1106 = vset.pattern.permute.xlu0 0
        %1107 = vperm.xlu0 %1106, %v228
        %v1108 = vpop.permute.xlu0 %1107
        %1111 = vset.pattern.permute.xlu0 0
        %1112 = vperm.xlu0 %1111, %v229
        %v1113 = vpop.permute.xlu0 %1112
        %1116 = vset.pattern.permute.xlu0 0
        %1117 = vperm.xlu0 %1116, %v230
        %v1118 = vpop.permute.xlu0 %1117
        %1121 = vset.pattern.permute.xlu0 0
        %1122 = vperm.xlu0 %1121, %v231
        %v1123 = vpop.permute.xlu0 %1122
        %1126 = vset.pattern.permute.xlu0 0
        %1127 = vperm.xlu0 %1126, %v232
        %v1128 = vpop.permute.xlu0 %1127
        %1131 = vset.pattern.permute.xlu0 0
        %1132 = vperm.xlu0 %1131, %v233
        %v1133 = vpop.permute.xlu0 %1132
        %1136 = vset.pattern.permute.xlu0 0
        %1137 = vperm.xlu0 %1136, %v234
        %v1138 = vpop.permute.xlu0 %1137
        %1141 = vset.pattern.permute.xlu0 0
        %1142 = vperm.xlu0 %1141, %v235
        %v1143 = vpop.permute.xlu0 %1142
        %1146 = vset.pattern.permute.xlu0 0
        %1147 = vperm.xlu0 %1146, %v236
        %v1148 = vpop.permute.xlu0 %1147
        %1151 = vset.pattern.permute.xlu0 0
        %1152 = vperm.xlu0 %1151, %v237
        %v1153 = vpop.permute.xlu0 %1152
        %1156 = vset.pattern.permute.xlu0 0
        %1157 = vperm.xlu0 %1156, %v238
        %v1158 = vpop.permute.xlu0 %1157
        %1161 = vset.pattern.permute.xlu0 0
        %1162 = vperm.xlu0 %1161, %v239
        %v1163 = vpop.permute.xlu0 %1162
        %1166 = vset.pattern.permute.xlu0 0
        %1167 = vperm.xlu0 %1166, %v240
        %v1168 = vpop.permute.xlu0 %1167
        %1171 = vset.pattern.permute.xlu0 0
        %1172 = vperm.xlu0 %1171, %v241
        %v1173 = vpop.permute.xlu0 %1172
        %1176 = vset.pattern.permute.xlu0 0
        %1177 = vperm.xlu0 %1176, %v242
        %v1178 = vpop.permute.xlu0 %1177
        %1181 = vset.pattern.permute.xlu0 0
        %1182 = vperm.xlu0 %1181, %v243
        %v1183 = vpop.permute.xlu0 %1182
        %1186 = vset.pattern.permute.xlu0 0
        %1187 = vperm.xlu0 %1186, %v244
        %v1188 = vpop.permute.xlu0 %1187
        %1191 = vset.pattern.permute.xlu0 0
        %1192 = vperm.xlu0 %1191, %v245
        %v1193 = vpop.permute.xlu0 %1192
        %1196 = vset.pattern.permute.xlu0 0
        %1197 = vperm.xlu0 %1196, %v246
        %v1198 = vpop.permute.xlu0 %1197
        %1201 = vset.pattern.permute.xlu0 0
        %1202 = vperm.xlu0 %1201, %v247
        %v1203 = vpop.permute.xlu0 %1202
        %1206 = vset.pattern.permute.xlu0 0
        %1207 = vperm.xlu0 %1206, %v248
        %v1208 = vpop.permute.xlu0 %1207
        %1211 = vset.pattern.permute.xlu0 0
        %1212 = vperm.xlu0 %1211, %v249
        %v1213 = vpop.permute.xlu0 %1212
        %1216 = vset.pattern.permute.xlu0 0
        %1217 = vperm.xlu0 %1216, %v250
        %v1218 = vpop.permute.xlu0 %1217
        %1221 = vset.pattern.permute.xlu0 0
        %1222 = vperm.xlu0 %1221, %v251
        %v1223 = vpop.permute.xlu0 %1222
        %1226 = vset.pattern.permute.xlu0 0
        %1227 = vperm.xlu0 %1226, %v252
        %v1228 = vpop.permute.xlu0 %1227
        %1231 = vset.pattern.permute.xlu0 0
        %1232 = vperm.xlu0 %1231, %v253
        %v1233 = vpop.permute.xlu0 %1232
        %1236 = vset.pattern.permute.xlu0 0
        %1237 = vperm.xlu0 %1236, %v254
        %v1238 = vpop.permute.xlu0 %1237
        %1241 = vset.pattern.permute.xlu0 0
        %1242 = vperm.xlu0 %1241, %v255
        %v1243 = vpop.permute.xlu0 %1242
        %1246 = vset.pattern.permute.xlu0 0
        %1247 = vperm.xlu0 %1246, %v256
        %v1248 = vpop.permute.xlu0 %1247
        %1251 = vset.pattern.permute.xlu0 0
        %1252 = vperm.xlu0 %1251, %v257
        %v1253 = vpop.permute.xlu0 %1252
        %1256 = vset.pattern.permute.xlu0 0
        %1257 = vperm.xlu0 %1256, %v258
        %v1258 = vpop.permute.xlu0 %1257
        %1261 = vset.pattern.permute.xlu0 0
        %1262 = vperm.xlu0 %1261, %v259
        %v1263 = vpop.permute.xlu0 %1262
        %1266 = vset.pattern.permute.xlu0 0
        %1267 = vperm.xlu0 %1266, %v260
        %v1268 = vpop.permute.xlu0 %1267
        %1271 = vset.pattern.permute.xlu0 0
        %1272 = vperm.xlu0 %1271, %v261
        %v1273 = vpop.permute.xlu0 %1272
        %1276 = vset.pattern.permute.xlu0 0
        %1277 = vperm.xlu0 %1276, %v262
        %v1278 = vpop.permute.xlu0 %1277
        %1281 = vset.pattern.permute.xlu0 0
        %1282 = vperm.xlu0 %1281, %v263
        %v1283 = vpop.permute.xlu0 %1282
        %1286 = vset.pattern.permute.xlu0 0
        %1287 = vperm.xlu0 %1286, %v264
        %v1288 = vpop.permute.xlu0 %1287
        %1291 = vset.pattern.permute.xlu0 0
        %1292 = vperm.xlu0 %1291, %v265
        %v1293 = vpop.permute.xlu0 %1292
        %1296 = vset.pattern.permute.xlu0 0
        %1297 = vperm.xlu0 %1296, %v266
        %v1298 = vpop.permute.xlu0 %1297
        %1301 = vset.pattern.permute.xlu0 0
        %1302 = vperm.xlu0 %1301, %v267
        %v1303 = vpop.permute.xlu0 %1302
        %1306 = vset.pattern.permute.xlu0 0
        %1307 = vperm.xlu0 %1306, %v268
        %v1308 = vpop.permute.xlu0 %1307
        %1311 = vset.pattern.permute.xlu0 0
        %1312 = vperm.xlu0 %1311, %v269
        %v1313 = vpop.permute.xlu0 %1312
        %1316 = vset.pattern.permute.xlu0 0
        %1317 = vperm.xlu0 %1316, %v270
        %v1318 = vpop.permute.xlu0 %1317
        %1321 = vset.pattern.permute.xlu0 0
        %1322 = vperm.xlu0 %1321, %v271
        %v1323 = vpop.permute.xlu0 %1322
        %1326 = vset.pattern.permute.xlu0 0
        %1327 = vperm.xlu0 %1326, %v272
        %v1328 = vpop.permute.xlu0 %1327
        %1331 = vset.pattern.permute.xlu0 0
        %1332 = vperm.xlu0 %1331, %v273
        %v1333 = vpop.permute.xlu0 %1332
        %1336 = vset.pattern.permute.xlu0 0
        %1337 = vperm.xlu0 %1336, %v274
        %v1338 = vpop.permute.xlu0 %1337
        %1341 = vset.pattern.permute.xlu0 0
        %1342 = vperm.xlu0 %1341, %v275
        %v1343 = vpop.permute.xlu0 %1342
        %1346 = vset.pattern.permute.xlu0 0
        %1347 = vperm.xlu0 %1346, %v276
        %v1348 = vpop.permute.xlu0 %1347
        %1351 = vset.pattern.permute.xlu0 0
        %1352 = vperm.xlu0 %1351, %v277
        %v1353 = vpop.permute.xlu0 %1352
        %1356 = vset.pattern.permute.xlu0 0
        %1357 = vperm.xlu0 %1356, %v278
        %v1358 = vpop.permute.xlu0 %1357
        %1361 = vset.pattern.permute.xlu0 0
        %1362 = vperm.xlu0 %1361, %v279
        %v1363 = vpop.permute.xlu0 %1362
        %1366 = vset.pattern.permute.xlu0 0
        %1367 = vperm.xlu0 %1366, %v280
        %v1368 = vpop.permute.xlu0 %1367
        %1371 = vset.pattern.permute.xlu0 0
        %1372 = vperm.xlu0 %1371, %v281
        %v1373 = vpop.permute.xlu0 %1372
        %1376 = vset.pattern.permute.xlu0 0
        %1377 = vperm.xlu0 %1376, %v282
        %v1378 = vpop.permute.xlu0 %1377
        %1381 = vset.pattern.permute.xlu0 0
        %1382 = vperm.xlu0 %1381, %v283
        %v1383 = vpop.permute.xlu0 %1382
        %1386 = vset.pattern.permute.xlu0 0
        %1387 = vperm.xlu0 %1386, %v284
        %v1388 = vpop.permute.xlu0 %1387
        %1391 = vset.pattern.permute.xlu0 0
        %1392 = vperm.xlu0 %1391, %v285
        %v1393 = vpop.permute.xlu0 %1392
        %1396 = vset.pattern.permute.xlu0 0
        %1397 = vperm.xlu0 %1396, %v286
        %v1398 = vpop.permute.xlu0 %1397
        %1401 = vset.pattern.permute.xlu0 0
        %1402 = vperm.xlu0 %1401, %v287
        %v1403 = vpop.permute.xlu0 %1402
        %1406 = vset.pattern.permute.xlu0 0
        %1407 = vperm.xlu0 %1406, %v288
        %v1408 = vpop.permute.xlu0 %1407
        %1411 = vset.pattern.permute.xlu0 0
        %1412 = vperm.xlu0 %1411, %v289
        %v1413 = vpop.permute.xlu0 %1412
        %1416 = vset.pattern.permute.xlu0 0
        %1417 = vperm.xlu0 %1416, %v290
        %v1418 = vpop.permute.xlu0 %1417
        %1421 = vset.pattern.permute.xlu0 0
        %1422 = vperm.xlu0 %1421, %v291
        %v1423 = vpop.permute.xlu0 %1422
        %1426 = vset.pattern.permute.xlu0 0
        %1427 = vperm.xlu0 %1426, %v292
        %v1428 = vpop.permute.xlu0 %1427
        %1431 = vset.pattern.permute.xlu0 0
        %1432 = vperm.xlu0 %1431, %v293
        %v1433 = vpop.permute.xlu0 %1432
        %1436 = vset.pattern.permute.xlu0 0
        %1437 = vperm.xlu0 %1436, %v294
        %v1438 = vpop.permute.xlu0 %1437
        %1441 = vset.pattern.permute.xlu0 0
        %1442 = vperm.xlu0 %1441, %v295
        %v1443 = vpop.permute.xlu0 %1442
        %1446 = vset.pattern.permute.xlu0 0
        %1447 = vperm.xlu0 %1446, %v296
        %v1448 = vpop.permute.xlu0 %1447
        %1451 = vset.pattern.permute.xlu0 0
        %1452 = vperm.xlu0 %1451, %v297
        %v1453 = vpop.permute.xlu0 %1452
        %1456 = vset.pattern.permute.xlu0 0
        %1457 = vperm.xlu0 %1456, %v298
        %v1458 = vpop.permute.xlu0 %1457
        %1461 = vset.pattern.permute.xlu0 0
        %1462 = vperm.xlu0 %1461, %v299
        %v1463 = vpop.permute.xlu0 %1462
        %1466 = vset.pattern.permute.xlu0 0
        %1467 = vperm.xlu0 %1466, %v300
        %v1468 = vpop.permute.xlu0 %1467
        %1471 = vset.pattern.permute.xlu0 0
        %1472 = vperm.xlu0 %1471, %v301
        %v1473 = vpop.permute.xlu0 %1472
        %1476 = vset.pattern.permute.xlu0 0
        %1477 = vperm.xlu0 %1476, %v302
        %v1478 = vpop.permute.xlu0 %1477
        %1481 = vset.pattern.permute.xlu0 0
        %1482 = vperm.xlu0 %1481, %v303
        %v1483 = vpop.permute.xlu0 %1482
        %1486 = vset.pattern.permute.xlu0 0
        %1487 = vperm.xlu0 %1486, %v304
        %v1488 = vpop.permute.xlu0 %1487
        %1491 = vset.pattern.permute.xlu0 0
        %1492 = vperm.xlu0 %1491, %v305
        %v1493 = vpop.permute.xlu0 %1492
        %1496 = vset.pattern.permute.xlu0 0
        %1497 = vperm.xlu0 %1496, %v306
        %v1498 = vpop.permute.xlu0 %1497
        %1501 = vset.pattern.permute.xlu0 0
        %1502 = vperm.xlu0 %1501, %v307
        %v1503 = vpop.permute.xlu0 %1502
        %1506 = vset.pattern.permute.xlu0 0
        %1507 = vperm.xlu0 %1506, %v308
        %v1508 = vpop.permute.xlu0 %1507
        %1511 = vset.pattern.permute.xlu0 0
        %1512 = vperm.xlu0 %1511, %v309
        %v1513 = vpop.permute.xlu0 %1512
        %1516 = vset.pattern.permute.xlu0 0
        %1517 = vperm.xlu0 %1516, %v310
        %v1518 = vpop.permute.xlu0 %1517
        %1521 = vset.pattern.permute.xlu0 0
        %1522 = vperm.xlu0 %1521, %v311
        %v1523 = vpop.permute.xlu0 %1522
        %1526 = vset.pattern.permute.xlu0 0
        %1527 = vperm.xlu0 %1526, %v312
        %v1528 = vpop.permute.xlu0 %1527
        %1531 = vset.pattern.permute.xlu0 0
        %1532 = vperm.xlu0 %1531, %v313
        %v1533 = vpop.permute.xlu0 %1532
        %1536 = vset.pattern.permute.xlu0 0
        %1537 = vperm.xlu0 %1536, %v314
        %v1538 = vpop.permute.xlu0 %1537
        %1541 = vset.pattern.permute.xlu0 0
        %1542 = vperm.xlu0 %1541, %v315
        %v1543 = vpop.permute.xlu0 %1542
        %1546 = vset.pattern.permute.xlu0 0
        %1547 = vperm.xlu0 %1546, %v316
        %v1548 = vpop.permute.xlu0 %1547
        %1551 = vset.pattern.permute.xlu0 0
        %1552 = vperm.xlu0 %1551, %v317
        %v1553 = vpop.permute.xlu0 %1552
        %1556 = vset.pattern.permute.xlu0 0
        %1557 = vperm.xlu0 %1556, %v318
        %v1558 = vpop.permute.xlu0 %1557
        %1561 = vset.pattern.permute.xlu0 0
        %1562 = vperm.xlu0 %1561, %v319
        %v1563 = vpop.permute.xlu0 %1562
        %1566 = vset.pattern.permute.xlu0 0
        %1567 = vperm.xlu0 %1566, %v320
        %v1568 = vpop.permute.xlu0 %1567
        %1571 = vset.pattern.permute.xlu0 0
        %1572 = vperm.xlu0 %1571, %v321
        %v1573 = vpop.permute.xlu0 %1572
        %1576 = vset.pattern.permute.xlu0 0
        %1577 = vperm.xlu0 %1576, %v322
        %v1578 = vpop.permute.xlu0 %1577
        %1581 = vset.pattern.permute.xlu0 0
        %1582 = vperm.xlu0 %1581, %v323
        %v1583 = vpop.permute.xlu0 %1582
        %1586 = vset.pattern.permute.xlu0 0
        %1587 = vperm.xlu0 %1586, %v324
        %v1588 = vpop.permute.xlu0 %1587
        %1591 = vset.pattern.permute.xlu0 0
        %1592 = vperm.xlu0 %1591, %v325
        %v1593 = vpop.permute.xlu0 %1592
        %1596 = vset.pattern.permute.xlu0 0
        %1597 = vperm.xlu0 %1596, %v326
        %v1598 = vpop.permute.xlu0 %1597
        %1601 = vset.pattern.permute.xlu0 0
        %1602 = vperm.xlu0 %1601, %v327
        %v1603 = vpop.permute.xlu0 %1602
        %1606 = vset.pattern.permute.xlu0 0
        %1607 = vperm.xlu0 %1606, %v328
        %v1608 = vpop.permute.xlu0 %1607
        %1611 = vset.pattern.permute.xlu0 0
        %1612 = vperm.xlu0 %1611, %v329
        %v1613 = vpop.permute.xlu0 %1612
        %1616 = vset.pattern.permute.xlu0 0
        %1617 = vperm.xlu0 %1616, %v330
        %v1618 = vpop.permute.xlu0 %1617
        %1621 = vset.pattern.permute.xlu0 0
        %1622 = vperm.xlu0 %1621, %v331
        %v1623 = vpop.permute.xlu0 %1622
        %1626 = vset.pattern.permute.xlu0 0
        %1627 = vperm.xlu0 %1626, %v332
        %v1628 = vpop.permute.xlu0 %1627
        %1631 = vset.pattern.permute.xlu0 0
        %1632 = vperm.xlu0 %1631, %v333
        %v1633 = vpop.permute.xlu0 %1632
        %1636 = vset.pattern.permute.xlu0 0
        %1637 = vperm.xlu0 %1636, %v334
        %v1638 = vpop.permute.xlu0 %1637
        %1641 = vset.pattern.permute.xlu0 0
        %1642 = vperm.xlu0 %1641, %v335
        %v1643 = vpop.permute.xlu0 %1642
        %1646 = vset.pattern.permute.xlu0 0
        %1647 = vperm.xlu0 %1646, %v336
        %v1648 = vpop.permute.xlu0 %1647
        %1651 = vset.pattern.permute.xlu0 0
        %1652 = vperm.xlu0 %1651, %v337
        %v1653 = vpop.permute.xlu0 %1652
        %1656 = vset.pattern.permute.xlu0 0
        %1657 = vperm.xlu0 %1656, %v338
        %v1658 = vpop.permute.xlu0 %1657
        %1661 = vset.pattern.permute.xlu0 0
        %1662 = vperm.xlu0 %1661, %v339
        %v1663 = vpop.permute.xlu0 %1662
        %1666 = vset.pattern.permute.xlu0 0
        %1667 = vperm.xlu0 %1666, %v340
        %v1668 = vpop.permute.xlu0 %1667
        %1671 = vset.pattern.permute.xlu0 0
        %1672 = vperm.xlu0 %1671, %v341
        %v1673 = vpop.permute.xlu0 %1672
        %1676 = vset.pattern.permute.xlu0 0
        %1677 = vperm.xlu0 %1676, %v342
        %v1678 = vpop.permute.xlu0 %1677
        %1681 = vset.pattern.permute.xlu0 0
        %1682 = vperm.xlu0 %1681, %v343
        %v1683 = vpop.permute.xlu0 %1682
        %1686 = vset.pattern.permute.xlu0 0
        %1687 = vperm.xlu0 %1686, %v344
        %v1688 = vpop.permute.xlu0 %1687
        %1691 = vset.pattern.permute.xlu0 0
        %1692 = vperm.xlu0 %1691, %v345
        %v1693 = vpop.permute.xlu0 %1692
        %1696 = vset.pattern.permute.xlu0 0
        %1697 = vperm.xlu0 %1696, %v346
        %v1698 = vpop.permute.xlu0 %1697
        %1701 = vset.pattern.permute.xlu0 0
        %1702 = vperm.xlu0 %1701, %v347
        %v1703 = vpop.permute.xlu0 %1702
        %1706 = vset.pattern.permute.xlu0 0
        %1707 = vperm.xlu0 %1706, %v348
        %v1708 = vpop.permute.xlu0 %1707
        %1711 = vset.pattern.permute.xlu0 0
        %1712 = vperm.xlu0 %1711, %v349
        %v1713 = vpop.permute.xlu0 %1712
        %1716 = vset.pattern.permute.xlu0 0
        %1717 = vperm.xlu0 %1716, %v350
        %v1718 = vpop.permute.xlu0 %1717
        %1721 = vset.pattern.permute.xlu0 0
        %1722 = vperm.xlu0 %1721, %v351
        %v1723 = vpop.permute.xlu0 %1722
        %1726 = vset.pattern.permute.xlu0 0
        %1727 = vperm.xlu0 %1726, %v352
        %v1728 = vpop.permute.xlu0 %1727
        %1731 = vset.pattern.permute.xlu0 0
        %1732 = vperm.xlu0 %1731, %v353
        %v1733 = vpop.permute.xlu0 %1732
        %1736 = vset.pattern.permute.xlu0 0
        %1737 = vperm.xlu0 %1736, %v354
        %v1738 = vpop.permute.xlu0 %1737
        %1741 = vset.pattern.permute.xlu0 0
        %1742 = vperm.xlu0 %1741, %v355
        %v1743 = vpop.permute.xlu0 %1742
        %1746 = vset.pattern.permute.xlu0 0
        %1747 = vperm.xlu0 %1746, %v356
        %v1748 = vpop.permute.xlu0 %1747
        %1751 = vset.pattern.permute.xlu0 0
        %1752 = vperm.xlu0 %1751, %v357
        %v1753 = vpop.permute.xlu0 %1752
        %1756 = vset.pattern.permute.xlu0 0
        %1757 = vperm.xlu0 %1756, %v358
        %v1758 = vpop.permute.xlu0 %1757
        %1761 = vset.pattern.permute.xlu0 0
        %1762 = vperm.xlu0 %1761, %v359
        %v1763 = vpop.permute.xlu0 %1762
        %1766 = vset.pattern.permute.xlu0 0
        %1767 = vperm.xlu0 %1766, %v360
        %v1768 = vpop.permute.xlu0 %1767
        %1771 = vset.pattern.permute.xlu0 0
        %1772 = vperm.xlu0 %1771, %v361
        %v1773 = vpop.permute.xlu0 %1772
        %1776 = vset.pattern.permute.xlu0 0
        %1777 = vperm.xlu0 %1776, %v362
        %v1778 = vpop.permute.xlu0 %1777
        %1781 = vset.pattern.permute.xlu0 0
        %1782 = vperm.xlu0 %1781, %v363
        %v1783 = vpop.permute.xlu0 %1782
        %1786 = vset.pattern.permute.xlu0 0
        %1787 = vperm.xlu0 %1786, %v364
        %v1788 = vpop.permute.xlu0 %1787
        %1791 = vset.pattern.permute.xlu0 0
        %1792 = vperm.xlu0 %1791, %v365
        %v1793 = vpop.permute.xlu0 %1792
        %1796 = vset.pattern.permute.xlu0 0
        %1797 = vperm.xlu0 %1796, %v366
        %v1798 = vpop.permute.xlu0 %1797
        %1801 = vset.pattern.permute.xlu0 0
        %1802 = vperm.xlu0 %1801, %v367
        %v1803 = vpop.permute.xlu0 %1802
        %1806 = vset.pattern.permute.xlu0 0
        %1807 = vperm.xlu0 %1806, %v368
        %v1808 = vpop.permute.xlu0 %1807
        %1811 = vset.pattern.permute.xlu0 0
        %1812 = vperm.xlu0 %1811, %v369
        %v1813 = vpop.permute.xlu0 %1812
        %1816 = vset.pattern.permute.xlu0 0
        %1817 = vperm.xlu0 %1816, %v370
        %v1818 = vpop.permute.xlu0 %1817
        %1821 = vset.pattern.permute.xlu0 0
        %1822 = vperm.xlu0 %1821, %v371
        %v1823 = vpop.permute.xlu0 %1822
        %1826 = vset.pattern.permute.xlu0 0
        %1827 = vperm.xlu0 %1826, %v372
        %v1828 = vpop.permute.xlu0 %1827
        %1831 = vset.pattern.permute.xlu0 0
        %1832 = vperm.xlu0 %1831, %v373
        %v1833 = vpop.permute.xlu0 %1832
        %1836 = vset.pattern.permute.xlu0 0
        %1837 = vperm.xlu0 %1836, %v374
        %v1838 = vpop.permute.xlu0 %1837
        %1841 = vset.pattern.permute.xlu0 0
        %1842 = vperm.xlu0 %1841, %v375
        %v1843 = vpop.permute.xlu0 %1842
        %1846 = vset.pattern.permute.xlu0 0
        %1847 = vperm.xlu0 %1846, %v376
        %v1848 = vpop.permute.xlu0 %1847
        %1851 = vset.pattern.permute.xlu0 0
        %1852 = vperm.xlu0 %1851, %v377
        %v1853 = vpop.permute.xlu0 %1852
        %1856 = vset.pattern.permute.xlu0 0
        %1857 = vperm.xlu0 %1856, %v378
        %v1858 = vpop.permute.xlu0 %1857
        %1861 = vset.pattern.permute.xlu0 0
        %1862 = vperm.xlu0 %1861, %v379
        %v1863 = vpop.permute.xlu0 %1862
        %1866 = vset.pattern.permute.xlu0 0
        %1867 = vperm.xlu0 %1866, %v380
        %v1868 = vpop.permute.xlu0 %1867
        %1871 = vset.pattern.permute.xlu0 0
        %1872 = vperm.xlu0 %1871, %v381
        %v1873 = vpop.permute.xlu0 %1872
        %1876 = vset.pattern.permute.xlu0 0
        %1877 = vperm.xlu0 %1876, %v382
        %v1878 = vpop.permute.xlu0 %1877
        %1881 = vset.pattern.permute.xlu0 0
        %1882 = vperm.xlu0 %1881, %v383
        %v1883 = vpop.permute.xlu0 %1882
        %1886 = vset.pattern.permute.xlu0 0
        %1887 = vperm.xlu0 %1886, %v384
        %v1888 = vpop.permute.xlu0 %1887
        %1891 = vset.pattern.permute.xlu0 0
        %1892 = vperm.xlu0 %1891, %v385
        %v1893 = vpop.permute.xlu0 %1892
        %1896 = vset.pattern.permute.xlu0 0
        %1897 = vperm.xlu0 %1896, %v386
        %v1898 = vpop.permute.xlu0 %1897
        %1901 = vset.pattern.permute.xlu0 0
        %1902 = vperm.xlu0 %1901, %v387
        %v1903 = vpop.permute.xlu0 %1902
        %1906 = vset.pattern.permute.xlu0 0
        %1907 = vperm.xlu0 %1906, %v388
        %v1908 = vpop.permute.xlu0 %1907
        %1911 = vset.pattern.permute.xlu0 0
        %1912 = vperm.xlu0 %1911, %v389
        %v1913 = vpop.permute.xlu0 %1912
        %1916 = vset.pattern.permute.xlu0 0
        %1917 = vperm.xlu0 %1916, %v390
        %v1918 = vpop.permute.xlu0 %1917
        %1921 = vset.pattern.permute.xlu0 0
        %1922 = vperm.xlu0 %1921, %v391
        %v1923 = vpop.permute.xlu0 %1922
        %1926 = vset.pattern.permute.xlu0 0
        %1927 = vperm.xlu0 %1926, %v392
        %v1928 = vpop.permute.xlu0 %1927
        %1931 = vset.pattern.permute.xlu0 0
        %1932 = vperm.xlu0 %1931, %v393
        %v1933 = vpop.permute.xlu0 %1932
        %1936 = vset.pattern.permute.xlu0 0
        %1937 = vperm.xlu0 %1936, %v394
        %v1938 = vpop.permute.xlu0 %1937
        %1941 = vset.pattern.permute.xlu0 0
        %1942 = vperm.xlu0 %1941, %v395
        %v1943 = vpop.permute.xlu0 %1942
        %1946 = vset.pattern.permute.xlu0 0
        %1947 = vperm.xlu0 %1946, %v396
        %v1948 = vpop.permute.xlu0 %1947
        %1951 = vset.pattern.permute.xlu0 0
        %1952 = vperm.xlu0 %1951, %v397
        %v1953 = vpop.permute.xlu0 %1952
        %1956 = vset.pattern.permute.xlu0 0
        %1957 = vperm.xlu0 %1956, %v398
        %v1958 = vpop.permute.xlu0 %1957
        %1961 = vset.pattern.permute.xlu0 0
        %1962 = vperm.xlu0 %1961, %v399
        %v1963 = vpop.permute.xlu0 %1962
        %1966 = vset.pattern.permute.xlu0 0
        %1967 = vperm.xlu0 %1966, %v400
        %v1968 = vpop.permute.xlu0 %1967
        %1971 = vset.pattern.permute.xlu0 0
        %1972 = vperm.xlu0 %1971, %v401
        %v1973 = vpop.permute.xlu0 %1972
        %1976 = vset.pattern.permute.xlu0 0
        %1977 = vperm.xlu0 %1976, %v402
        %v1978 = vpop.permute.xlu0 %1977
        %1981 = vset.pattern.permute.xlu0 0
        %1982 = vperm.xlu0 %1981, %v403
        %v1983 = vpop.permute.xlu0 %1982
        %1986 = vset.pattern.permute.xlu0 0
        %1987 = vperm.xlu0 %1986, %v404
        %v1988 = vpop.permute.xlu0 %1987
        %1991 = vset.pattern.permute.xlu0 0
        %1992 = vperm.xlu0 %1991, %v405
        %v1993 = vpop.permute.xlu0 %1992
        %1996 = vset.pattern.permute.xlu0 0
        %1997 = vperm.xlu0 %1996, %v406
        %v1998 = vpop.permute.xlu0 %1997
        %2001 = vset.pattern.permute.xlu0 0
        %2002 = vperm.xlu0 %2001, %v407
        %v2003 = vpop.permute.xlu0 %2002
        %2006 = vset.pattern.permute.xlu0 0
        %2007 = vperm.xlu0 %2006, %v408
        %v2008 = vpop.permute.xlu0 %2007
        %2011 = vset.pattern.permute.xlu0 0
        %2012 = vperm.xlu0 %2011, %v409
        %v2013 = vpop.permute.xlu0 %2012
        %2016 = vset.pattern.permute.xlu0 0
        %2017 = vperm.xlu0 %2016, %v410
        %v2018 = vpop.permute.xlu0 %2017
        %2021 = vset.pattern.permute.xlu0 0
        %2022 = vperm.xlu0 %2021, %v411
        %v2023 = vpop.permute.xlu0 %2022
        %2026 = vset.pattern.permute.xlu0 0
        %2027 = vperm.xlu0 %2026, %v412
        %v2028 = vpop.permute.xlu0 %2027
        %2031 = vset.pattern.permute.xlu0 0
        %2032 = vperm.xlu0 %2031, %v413
        %v2033 = vpop.permute.xlu0 %2032
        %2036 = vset.pattern.permute.xlu0 0
        %2037 = vperm.xlu0 %2036, %v414
        %v2038 = vpop.permute.xlu0 %2037
        %2041 = vset.pattern.permute.xlu0 0
        %2042 = vperm.xlu0 %2041, %v415
        %v2043 = vpop.permute.xlu0 %2042
        %2046 = vset.pattern.permute.xlu0 0
        %2047 = vperm.xlu0 %2046, %v416
        %v2048 = vpop.permute.xlu0 %2047
        %2051 = vset.pattern.permute.xlu0 0
        %2052 = vperm.xlu0 %2051, %v417
        %v2053 = vpop.permute.xlu0 %2052
        %2056 = vset.pattern.permute.xlu0 0
        %2057 = vperm.xlu0 %2056, %v418
        %v2058 = vpop.permute.xlu0 %2057
        %2061 = vset.pattern.permute.xlu0 0
        %2062 = vperm.xlu0 %2061, %v419
        %v2063 = vpop.permute.xlu0 %2062
        %2066 = vset.pattern.permute.xlu0 0
        %2067 = vperm.xlu0 %2066, %v420
        %v2068 = vpop.permute.xlu0 %2067
        %2071 = vset.pattern.permute.xlu0 0
        %2072 = vperm.xlu0 %2071, %v421
        %v2073 = vpop.permute.xlu0 %2072
        %2076 = vset.pattern.permute.xlu0 0
        %2077 = vperm.xlu0 %2076, %v422
        %v2078 = vpop.permute.xlu0 %2077
        %2081 = vset.pattern.permute.xlu0 0
        %2082 = vperm.xlu0 %2081, %v423
        %v2083 = vpop.permute.xlu0 %2082
        %2086 = vset.pattern.permute.xlu0 0
        %2087 = vperm.xlu0 %2086, %v424
        %v2088 = vpop.permute.xlu0 %2087
        %2091 = vset.pattern.permute.xlu0 0
        %2092 = vperm.xlu0 %2091, %v425
        %v2093 = vpop.permute.xlu0 %2092
        %2096 = vset.pattern.permute.xlu0 0
        %2097 = vperm.xlu0 %2096, %v426
        %v2098 = vpop.permute.xlu0 %2097
        %2101 = vset.pattern.permute.xlu0 0
        %2102 = vperm.xlu0 %2101, %v427
        %v2103 = vpop.permute.xlu0 %2102
        %2106 = vset.pattern.permute.xlu0 0
        %2107 = vperm.xlu0 %2106, %v428
        %v2108 = vpop.permute.xlu0 %2107
        %2111 = vset.pattern.permute.xlu0 0
        %2112 = vperm.xlu0 %2111, %v429
        %v2113 = vpop.permute.xlu0 %2112
        %2116 = vset.pattern.permute.xlu0 0
        %2117 = vperm.xlu0 %2116, %v430
        %v2118 = vpop.permute.xlu0 %2117
        %2121 = vset.pattern.permute.xlu0 0
        %2122 = vperm.xlu0 %2121, %v431
        %v2123 = vpop.permute.xlu0 %2122
        %2126 = vset.pattern.permute.xlu0 0
        %2127 = vperm.xlu0 %2126, %v432
        %v2128 = vpop.permute.xlu0 %2127
        %2131 = vset.pattern.permute.xlu0 0
        %2132 = vperm.xlu0 %2131, %v433
        %v2133 = vpop.permute.xlu0 %2132
        %2136 = vset.pattern.permute.xlu0 0
        %2137 = vperm.xlu0 %2136, %v434
        %v2138 = vpop.permute.xlu0 %2137
        %2141 = vset.pattern.permute.xlu0 0
        %2142 = vperm.xlu0 %2141, %v435
        %v2143 = vpop.permute.xlu0 %2142
        %2146 = vset.pattern.permute.xlu0 0
        %2147 = vperm.xlu0 %2146, %v436
        %v2148 = vpop.permute.xlu0 %2147
        %2151 = vset.pattern.permute.xlu0 0
        %2152 = vperm.xlu0 %2151, %v437
        %v2153 = vpop.permute.xlu0 %2152
        %2156 = vset.pattern.permute.xlu0 0
        %2157 = vperm.xlu0 %2156, %v438
        %v2158 = vpop.permute.xlu0 %2157
        %2161 = vset.pattern.permute.xlu0 0
        %2162 = vperm.xlu0 %2161, %v439
        %v2163 = vpop.permute.xlu0 %2162
        %2166 = vset.pattern.permute.xlu0 0
        %2167 = vperm.xlu0 %2166, %v440
        %v2168 = vpop.permute.xlu0 %2167
        %2171 = vset.pattern.permute.xlu0 0
        %2172 = vperm.xlu0 %2171, %v441
        %v2173 = vpop.permute.xlu0 %2172
        %2176 = vset.pattern.permute.xlu0 0
        %2177 = vperm.xlu0 %2176, %v442
        %v2178 = vpop.permute.xlu0 %2177
        %2181 = vset.pattern.permute.xlu0 0
        %2182 = vperm.xlu0 %2181, %v443
        %v2183 = vpop.permute.xlu0 %2182
        %2186 = vset.pattern.permute.xlu0 0
        %2187 = vperm.xlu0 %2186, %v444
        %v2188 = vpop.permute.xlu0 %2187
        %2191 = vset.pattern.permute.xlu0 0
        %2192 = vperm.xlu0 %2191, %v445
        %v2193 = vpop.permute.xlu0 %2192
        %2196 = vset.pattern.permute.xlu0 0
        %2197 = vperm.xlu0 %2196, %v446
        %v2198 = vpop.permute.xlu0 %2197
        %2201 = vset.pattern.permute.xlu0 0
        %2202 = vperm.xlu0 %2201, %v447
        %v2203 = vpop.permute.xlu0 %2202
        %2206 = vset.pattern.permute.xlu0 0
        %2207 = vperm.xlu0 %2206, %v448
        %v2208 = vpop.permute.xlu0 %2207
        %2211 = vset.pattern.permute.xlu0 0
        %2212 = vperm.xlu0 %2211, %v449
        %v2213 = vpop.permute.xlu0 %2212
        %2216 = vset.pattern.permute.xlu0 0
        %2217 = vperm.xlu0 %2216, %v450
        %v2218 = vpop.permute.xlu0 %2217
        %2221 = vset.pattern.permute.xlu0 0
        %2222 = vperm.xlu0 %2221, %v451
        %v2223 = vpop.permute.xlu0 %2222
        %2226 = vset.pattern.permute.xlu0 0
        %2227 = vperm.xlu0 %2226, %v452
        %v2228 = vpop.permute.xlu0 %2227
        %2231 = vset.pattern.permute.xlu0 0
        %2232 = vperm.xlu0 %2231, %v453
        %v2233 = vpop.permute.xlu0 %2232
        %2236 = vset.pattern.permute.xlu0 0
        %2237 = vperm.xlu0 %2236, %v454
        %v2238 = vpop.permute.xlu0 %2237
        %2241 = vset.pattern.permute.xlu0 0
        %2242 = vperm.xlu0 %2241, %v455
        %v2243 = vpop.permute.xlu0 %2242
        %2246 = vset.pattern.permute.xlu0 0
        %2247 = vperm.xlu0 %2246, %v456
        %v2248 = vpop.permute.xlu0 %2247
        %2251 = vset.pattern.permute.xlu0 0
        %2252 = vperm.xlu0 %2251, %v457
        %v2253 = vpop.permute.xlu0 %2252
        %2256 = vset.pattern.permute.xlu0 0
        %2257 = vperm.xlu0 %2256, %v458
        %v2258 = vpop.permute.xlu0 %2257
        %2261 = vset.pattern.permute.xlu0 0
        %2262 = vperm.xlu0 %2261, %v459
        %v2263 = vpop.permute.xlu0 %2262
        %2266 = vset.pattern.permute.xlu0 0
        %2267 = vperm.xlu0 %2266, %v460
        %v2268 = vpop.permute.xlu0 %2267
        %2271 = vset.pattern.permute.xlu0 0
        %2272 = vperm.xlu0 %2271, %v461
        %v2273 = vpop.permute.xlu0 %2272
        %2276 = vset.pattern.permute.xlu0 0
        %2277 = vperm.xlu0 %2276, %v462
        %v2278 = vpop.permute.xlu0 %2277
        %2281 = vset.pattern.permute.xlu0 0
        %2282 = vperm.xlu0 %2281, %v463
        %v2283 = vpop.permute.xlu0 %2282
        %2286 = vset.pattern.permute.xlu0 0
        %2287 = vperm.xlu0 %2286, %v464
        %v2288 = vpop.permute.xlu0 %2287
        %2291 = vset.pattern.permute.xlu0 0
        %2292 = vperm.xlu0 %2291, %v465
        %v2293 = vpop.permute.xlu0 %2292
        %2296 = vset.pattern.permute.xlu0 0
        %2297 = vperm.xlu0 %2296, %v466
        %v2298 = vpop.permute.xlu0 %2297
        %2301 = vset.pattern.permute.xlu0 0
        %2302 = vperm.xlu0 %2301, %v467
        %v2303 = vpop.permute.xlu0 %2302
        %2306 = vset.pattern.permute.xlu0 0
        %2307 = vperm.xlu0 %2306, %v468
        %v2308 = vpop.permute.xlu0 %2307
        %2311 = vset.pattern.permute.xlu0 0
        %2312 = vperm.xlu0 %2311, %v469
        %v2313 = vpop.permute.xlu0 %2312
        %2316 = vset.pattern.permute.xlu0 0
        %2317 = vperm.xlu0 %2316, %v470
        %v2318 = vpop.permute.xlu0 %2317
        %2321 = vset.pattern.permute.xlu0 0
        %2322 = vperm.xlu0 %2321, %v471
        %v2323 = vpop.permute.xlu0 %2322
        %2326 = vset.pattern.permute.xlu0 0
        %2327 = vperm.xlu0 %2326, %v472
        %v2328 = vpop.permute.xlu0 %2327
        %2331 = vset.pattern.permute.xlu0 0
        %2332 = vperm.xlu0 %2331, %v473
        %v2333 = vpop.permute.xlu0 %2332
        %2336 = vset.pattern.permute.xlu0 0
        %2337 = vperm.xlu0 %2336, %v474
        %v2338 = vpop.permute.xlu0 %2337
        %2341 = vset.pattern.permute.xlu0 0
        %2342 = vperm.xlu0 %2341, %v475
        %v2343 = vpop.permute.xlu0 %2342
        %2346 = vset.pattern.permute.xlu0 0
        %2347 = vperm.xlu0 %2346, %v476
        %v2348 = vpop.permute.xlu0 %2347
        %2351 = vset.pattern.permute.xlu0 0
        %2352 = vperm.xlu0 %2351, %v477
        %v2353 = vpop.permute.xlu0 %2352
        %2356 = vset.pattern.permute.xlu0 0
        %2357 = vperm.xlu0 %2356, %v478
        %v2358 = vpop.permute.xlu0 %2357
        %2361 = vset.pattern.permute.xlu0 0
        %2362 = vperm.xlu0 %2361, %v479
        %v2363 = vpop.permute.xlu0 %2362
        %2366 = vset.pattern.permute.xlu0 0
        %2367 = vperm.xlu0 %2366, %v480
        %v2368 = vpop.permute.xlu0 %2367
        %2371 = vset.pattern.permute.xlu0 0
        %2372 = vperm.xlu0 %2371, %v481
        %v2373 = vpop.permute.xlu0 %2372
        %2376 = vset.pattern.permute.xlu0 0
        %2377 = vperm.xlu0 %2376, %v482
        %v2378 = vpop.permute.xlu0 %2377
        %2381 = vset.pattern.permute.xlu0 0
        %2382 = vperm.xlu0 %2381, %v483
        %v2383 = vpop.permute.xlu0 %2382
        %2386 = vset.pattern.permute.xlu0 0
        %2387 = vperm.xlu0 %2386, %v484
        %v2388 = vpop.permute.xlu0 %2387
        %2391 = vset.pattern.permute.xlu0 0
        %2392 = vperm.xlu0 %2391, %v485
        %v2393 = vpop.permute.xlu0 %2392
        %2396 = vset.pattern.permute.xlu0 0
        %2397 = vperm.xlu0 %2396, %v486
        %v2398 = vpop.permute.xlu0 %2397
        %2401 = vset.pattern.permute.xlu0 0
        %2402 = vperm.xlu0 %2401, %v487
        %v2403 = vpop.permute.xlu0 %2402
        %2406 = vset.pattern.permute.xlu0 0
        %2407 = vperm.xlu0 %2406, %v488
        %v2408 = vpop.permute.xlu0 %2407
        %2411 = vset.pattern.permute.xlu0 0
        %2412 = vperm.xlu0 %2411, %v489
        %v2413 = vpop.permute.xlu0 %2412
        %2416 = vset.pattern.permute.xlu0 0
        %2417 = vperm.xlu0 %2416, %v490
        %v2418 = vpop.permute.xlu0 %2417
        %2421 = vset.pattern.permute.xlu0 0
        %2422 = vperm.xlu0 %2421, %v491
        %v2423 = vpop.permute.xlu0 %2422
        %2426 = vset.pattern.permute.xlu0 0
        %2427 = vperm.xlu0 %2426, %v492
        %v2428 = vpop.permute.xlu0 %2427
        %2431 = vset.pattern.permute.xlu0 0
        %2432 = vperm.xlu0 %2431, %v493
        %v2433 = vpop.permute.xlu0 %2432
        %2436 = vset.pattern.permute.xlu0 0
        %2437 = vperm.xlu0 %2436, %v494
        %v2438 = vpop.permute.xlu0 %2437
        %2441 = vset.pattern.permute.xlu0 0
        %2442 = vperm.xlu0 %2441, %v495
        %v2443 = vpop.permute.xlu0 %2442
        %2446 = vset.pattern.permute.xlu0 0
        %2447 = vperm.xlu0 %2446, %v496
        %v2448 = vpop.permute.xlu0 %2447
        %2451 = vset.pattern.permute.xlu0 0
        %2452 = vperm.xlu0 %2451, %v497
        %v2453 = vpop.permute.xlu0 %2452
        %2456 = vset.pattern.permute.xlu0 0
        %2457 = vperm.xlu0 %2456, %v498
        %v2458 = vpop.permute.xlu0 %2457
        %2461 = vset.pattern.permute.xlu0 0
        %2462 = vperm.xlu0 %2461, %v499
        %v2463 = vpop.permute.xlu0 %2462
        %2466 = vset.pattern.permute.xlu0 0
        %2467 = vperm.xlu0 %2466, %v500
        %v2468 = vpop.permute.xlu0 %2467
        %2471 = vset.pattern.permute.xlu0 0
        %2472 = vperm.xlu0 %2471, %v501
        %v2473 = vpop.permute.xlu0 %2472
        %2476 = vset.pattern.permute.xlu0 0
        %2477 = vperm.xlu0 %2476, %v502
        %v2478 = vpop.permute.xlu0 %2477
        %2481 = vset.pattern.permute.xlu0 0
        %2482 = vperm.xlu0 %2481, %v503
        %v2483 = vpop.permute.xlu0 %2482
        %2486 = vset.pattern.permute.xlu0 0
        %2487 = vperm.xlu0 %2486, %v504
        %v2488 = vpop.permute.xlu0 %2487
        %2491 = vset.pattern.permute.xlu0 0
        %2492 = vperm.xlu0 %2491, %v505
        %v2493 = vpop.permute.xlu0 %2492
        %2496 = vset.pattern.permute.xlu0 0
        %2497 = vperm.xlu0 %2496, %v506
        %v2498 = vpop.permute.xlu0 %2497
        %2501 = vset.pattern.permute.xlu0 0
        %2502 = vperm.xlu0 %2501, %v507
        %v2503 = vpop.permute.xlu0 %2502
        %2506 = vset.pattern.permute.xlu0 0
        %2507 = vperm.xlu0 %2506, %v508
        %v2508 = vpop.permute.xlu0 %2507
        %2511 = vset.pattern.permute.xlu0 0
        %2512 = vperm.xlu0 %2511, %v509
        %v2513 = vpop.permute.xlu0 %2512
        %2516 = vset.pattern.permute.xlu0 0
        %2517 = vperm.xlu0 %2516, %v510
        %v2518 = vpop.permute.xlu0 %2517
        %2521 = vset.pattern.permute.xlu0 0
        %2522 = vperm.xlu0 %2521, %v511
        %v2523 = vpop.permute.xlu0 %2522
        %2526 = vset.pattern.permute.xlu0 0
        %2527 = vperm.xlu0 %2526, %v512
        %v2528 = vpop.permute.xlu0 %2527
        %2531 = vset.pattern.permute.xlu0 0
        %2532 = vperm.xlu0 %2531, %v513
        %v2533 = vpop.permute.xlu0 %2532
        %2536 = vset.pattern.permute.xlu0 0
        %2537 = vperm.xlu0 %2536, %v514
        %v2538 = vpop.permute.xlu0 %2537
        %2541 = vset.pattern.permute.xlu0 0
        %2542 = vperm.xlu0 %2541, %v515
        %v2543 = vpop.permute.xlu0 %2542
        %2546 = vset.pattern.permute.xlu0 0
        %2547 = vperm.xlu0 %2546, %v516
        %v2548 = vpop.permute.xlu0 %2547
        %2551 = vset.pattern.permute.xlu0 0
        %2552 = vperm.xlu0 %2551, %v517
        %v2553 = vpop.permute.xlu0 %2552
        %2556 = vset.pattern.permute.xlu0 0
        %2557 = vperm.xlu0 %2556, %v518
        %v2558 = vpop.permute.xlu0 %2557
        %2561 = vset.pattern.permute.xlu0 0
        %2562 = vperm.xlu0 %2561, %v519
        %v2563 = vpop.permute.xlu0 %2562
        %2566 = vset.pattern.permute.xlu0 0
        %2567 = vperm.xlu0 %2566, %v520
        %v2568 = vpop.permute.xlu0 %2567
        %2571 = vset.pattern.permute.xlu0 0
        %2572 = vperm.xlu0 %2571, %v521
        %v2573 = vpop.permute.xlu0 %2572
        %2576 = vset.pattern.permute.xlu0 0
        %2577 = vperm.xlu0 %2576, %v522
        %v2578 = vpop.permute.xlu0 %2577
        %2581 = vset.pattern.permute.xlu0 0
        %2582 = vperm.xlu0 %2581, %v523
        %v2583 = vpop.permute.xlu0 %2582
        %2586 = vset.pattern.permute.xlu0 0
        %2587 = vperm.xlu0 %2586, %v524
        %v2588 = vpop.permute.xlu0 %2587
        %2591 = vset.pattern.permute.xlu0 0
        %2592 = vperm.xlu0 %2591, %v525
        %v2593 = vpop.permute.xlu0 %2592
        %2596 = vset.pattern.permute.xlu0 0
        %2597 = vperm.xlu0 %2596, %v526
        %v2598 = vpop.permute.xlu0 %2597
        %2601 = vset.pattern.permute.xlu0 0
        %2602 = vperm.xlu0 %2601, %v527
        %v2603 = vpop.permute.xlu0 %2602
        %2606 = vset.pattern.permute.xlu0 0
        %2607 = vperm.xlu0 %2606, %v528
        %v2608 = vpop.permute.xlu0 %2607
        %2611 = vset.pattern.permute.xlu0 0
        %2612 = vperm.xlu0 %2611, %v529
        %v2613 = vpop.permute.xlu0 %2612
        %2616 = vset.pattern.permute.xlu0 0
        %2617 = vperm.xlu0 %2616, %v530
        %v2618 = vpop.permute.xlu0 %2617
        %2621 = vset.pattern.permute.xlu0 0
        %2622 = vperm.xlu0 %2621, %v531
        %v2623 = vpop.permute.xlu0 %2622
        %2626 = vset.pattern.permute.xlu0 0
        %2627 = vperm.xlu0 %2626, %v532
        %v2628 = vpop.permute.xlu0 %2627
        %2631 = vset.pattern.permute.xlu0 0
        %2632 = vperm.xlu0 %2631, %v533
        %v2633 = vpop.permute.xlu0 %2632
        %2636 = vset.pattern.permute.xlu0 0
        %2637 = vperm.xlu0 %2636, %v534
        %v2638 = vpop.permute.xlu0 %2637
        %2641 = vset.pattern.permute.xlu0 0
        %2642 = vperm.xlu0 %2641, %v535
        %v2643 = vpop.permute.xlu0 %2642
        %2646 = vset.pattern.permute.xlu0 0
        %2647 = vperm.xlu0 %2646, %v536
        %v2648 = vpop.permute.xlu0 %2647
        %2651 = vset.pattern.permute.xlu0 0
        %2652 = vperm.xlu0 %2651, %v537
        %v2653 = vpop.permute.xlu0 %2652
        %2656 = vset.pattern.permute.xlu0 0
        %2657 = vperm.xlu0 %2656, %v538
        %v2658 = vpop.permute.xlu0 %2657
        %2661 = vset.pattern.permute.xlu0 0
        %2662 = vperm.xlu0 %2661, %v539
        %v2663 = vpop.permute.xlu0 %2662
        %2666 = vset.pattern.permute.xlu0 0
        %2667 = vperm.xlu0 %2666, %v540
        %v2668 = vpop.permute.xlu0 %2667
        %2671 = vset.pattern.permute.xlu0 0
        %2672 = vperm.xlu0 %2671, %v541
        %v2673 = vpop.permute.xlu0 %2672
        %2676 = vset.pattern.permute.xlu0 0
        %2677 = vperm.xlu0 %2676, %v542
        %v2678 = vpop.permute.xlu0 %2677
        %2681 = vset.pattern.permute.xlu0 0
        %2682 = vperm.xlu0 %2681, %v543
        %v2683 = vpop.permute.xlu0 %2682
        %2686 = vset.pattern.permute.xlu0 0
        %2687 = vperm.xlu0 %2686, %v544
        %v2688 = vpop.permute.xlu0 %2687
        %2691 = vset.pattern.permute.xlu0 0
        %2692 = vperm.xlu0 %2691, %v545
        %v2693 = vpop.permute.xlu0 %2692
        %2696 = vset.pattern.permute.xlu0 0
        %2697 = vperm.xlu0 %2696, %v546
        %v2698 = vpop.permute.xlu0 %2697
        %2701 = vset.pattern.permute.xlu0 0
        %2702 = vperm.xlu0 %2701, %v547
        %v2703 = vpop.permute.xlu0 %2702
        %2706 = vset.pattern.permute.xlu0 0
        %2707 = vperm.xlu0 %2706, %v548
        %v2708 = vpop.permute.xlu0 %2707
        %2711 = vset.pattern.permute.xlu0 0
        %2712 = vperm.xlu0 %2711, %v549
        %v2713 = vpop.permute.xlu0 %2712
        %2716 = vset.pattern.permute.xlu0 0
        %2717 = vperm.xlu0 %2716, %v550
        %v2718 = vpop.permute.xlu0 %2717
        %2721 = vset.pattern.permute.xlu0 0
        %2722 = vperm.xlu0 %2721, %v551
        %v2723 = vpop.permute.xlu0 %2722
        %2726 = vset.pattern.permute.xlu0 0
        %2727 = vperm.xlu0 %2726, %v552
        %v2728 = vpop.permute.xlu0 %2727
        %2731 = vset.pattern.permute.xlu0 0
        %2732 = vperm.xlu0 %2731, %v553
        %v2733 = vpop.permute.xlu0 %2732
        %2736 = vset.pattern.permute.xlu0 0
        %2737 = vperm.xlu0 %2736, %v554
        %v2738 = vpop.permute.xlu0 %2737
        %2741 = vset.pattern.permute.xlu0 0
        %2742 = vperm.xlu0 %2741, %v555
        %v2743 = vpop.permute.xlu0 %2742
        %2746 = vset.pattern.permute.xlu0 0
        %2747 = vperm.xlu0 %2746, %v556
        %v2748 = vpop.permute.xlu0 %2747
        %2751 = vset.pattern.permute.xlu0 0
        %2752 = vperm.xlu0 %2751, %v557
        %v2753 = vpop.permute.xlu0 %2752
        %2756 = vset.pattern.permute.xlu0 0
        %2757 = vperm.xlu0 %2756, %v558
        %v2758 = vpop.permute.xlu0 %2757
        %2761 = vset.pattern.permute.xlu0 0
        %2762 = vperm.xlu0 %2761, %v559
        %v2763 = vpop.permute.xlu0 %2762
        %2766 = vset.pattern.permute.xlu0 0
        %2767 = vperm.xlu0 %2766, %v560
        %v2768 = vpop.permute.xlu0 %2767
        %2771 = vset.pattern.permute.xlu0 0
        %2772 = vperm.xlu0 %2771, %v561
        %v2773 = vpop.permute.xlu0 %2772
        %2776 = vset.pattern.permute.xlu0 0
        %2777 = vperm.xlu0 %2776, %v562
        %v2778 = vpop.permute.xlu0 %2777
        %2781 = vset.pattern.permute.xlu0 0
        %2782 = vperm.xlu0 %2781, %v563
        %v2783 = vpop.permute.xlu0 %2782
        %2786 = vset.pattern.permute.xlu0 0
        %2787 = vperm.xlu0 %2786, %v564
        %v2788 = vpop.permute.xlu0 %2787
        %2791 = vset.pattern.permute.xlu0 0
        %2792 = vperm.xlu0 %2791, %v565
        %v2793 = vpop.permute.xlu0 %2792
        %2796 = vset.pattern.permute.xlu0 0
        %2797 = vperm.xlu0 %2796, %v566
        %v2798 = vpop.permute.xlu0 %2797
        %2801 = vset.pattern.permute.xlu0 0
        %2802 = vperm.xlu0 %2801, %v567
        %v2803 = vpop.permute.xlu0 %2802
        %2806 = vset.pattern.permute.xlu0 0
        %2807 = vperm.xlu0 %2806, %v568
        %v2808 = vpop.permute.xlu0 %2807
        %2811 = vset.pattern.permute.xlu0 0
        %2812 = vperm.xlu0 %2811, %v569
        %v2813 = vpop.permute.xlu0 %2812
        %2816 = vset.pattern.permute.xlu0 0
        %2817 = vperm.xlu0 %2816, %v570
        %v2818 = vpop.permute.xlu0 %2817
        %2821 = vset.pattern.permute.xlu0 0
        %2822 = vperm.xlu0 %2821, %v571
        %v2823 = vpop.permute.xlu0 %2822
        %2826 = vset.pattern.permute.xlu0 0
        %2827 = vperm.xlu0 %2826, %v572
        %v2828 = vpop.permute.xlu0 %2827
        %2831 = vset.pattern.permute.xlu0 0
        %2832 = vperm.xlu0 %2831, %v573
        %v2833 = vpop.permute.xlu0 %2832
        %2836 = vset.pattern.permute.xlu0 0
        %2837 = vperm.xlu0 %2836, %v574
        %v2838 = vpop.permute.xlu0 %2837
        %2841 = vset.pattern.permute.xlu0 0
        %2842 = vperm.xlu0 %2841, %v575
        %v2843 = vpop.permute.xlu0 %2842
        %2846 = vset.pattern.permute.xlu0 0
        %2847 = vperm.xlu0 %2846, %v576
        %v2848 = vpop.permute.xlu0 %2847
        %2851 = vset.pattern.permute.xlu0 0
        %2852 = vperm.xlu0 %2851, %v577
        %v2853 = vpop.permute.xlu0 %2852
        %2856 = vset.pattern.permute.xlu0 0
        %2857 = vperm.xlu0 %2856, %v578
        %v2858 = vpop.permute.xlu0 %2857
        %2861 = vset.pattern.permute.xlu0 0
        %2862 = vperm.xlu0 %2861, %v579
        %v2863 = vpop.permute.xlu0 %2862
        %2866 = vset.pattern.permute.xlu0 0
        %2867 = vperm.xlu0 %2866, %v580
        %v2868 = vpop.permute.xlu0 %2867
        %2871 = vset.pattern.permute.xlu0 0
        %2872 = vperm.xlu0 %2871, %v581
        %v2873 = vpop.permute.xlu0 %2872
        %2876 = vset.pattern.permute.xlu0 0
        %2877 = vperm.xlu0 %2876, %v582
        %v2878 = vpop.permute.xlu0 %2877
        %2881 = vset.pattern.permute.xlu0 0
        %2882 = vperm.xlu0 %2881, %v583
        %v2883 = vpop.permute.xlu0 %2882
        %2886 = vset.pattern.permute.xlu0 0
        %2887 = vperm.xlu0 %2886, %v584
        %v2888 = vpop.permute.xlu0 %2887
        %2891 = vset.pattern.permute.xlu0 0
        %2892 = vperm.xlu0 %2891, %v585
        %v2893 = vpop.permute.xlu0 %2892
        %2896 = vset.pattern.permute.xlu0 0
        %2897 = vperm.xlu0 %2896, %v586
        %v2898 = vpop.permute.xlu0 %2897
        %2901 = vset.pattern.permute.xlu0 0
        %2902 = vperm.xlu0 %2901, %v587
        %v2903 = vpop.permute.xlu0 %2902
        %2906 = vset.pattern.permute.xlu0 0
        %2907 = vperm.xlu0 %2906, %v588
        %v2908 = vpop.permute.xlu0 %2907
        %2911 = vset.pattern.permute.xlu0 0
        %2912 = vperm.xlu0 %2911, %v589
        %v2913 = vpop.permute.xlu0 %2912
        %2916 = vset.pattern.permute.xlu0 0
        %2917 = vperm.xlu0 %2916, %v590
        %v2918 = vpop.permute.xlu0 %2917
        %2921 = vset.pattern.permute.xlu0 0
        %2922 = vperm.xlu0 %2921, %v591
        %v2923 = vpop.permute.xlu0 %2922
        %2926 = vset.pattern.permute.xlu0 0
        %2927 = vperm.xlu0 %2926, %v592
        %v2928 = vpop.permute.xlu0 %2927
        %2931 = vset.pattern.permute.xlu0 0
        %2932 = vperm.xlu0 %2931, %v593
        %v2933 = vpop.permute.xlu0 %2932
        %2936 = vset.pattern.permute.xlu0 0
        %2937 = vperm.xlu0 %2936, %v594
        %v2938 = vpop.permute.xlu0 %2937
        %2941 = vset.pattern.permute.xlu0 0
        %2942 = vperm.xlu0 %2941, %v595
        %v2943 = vpop.permute.xlu0 %2942
        %2946 = vset.pattern.permute.xlu0 0
        %2947 = vperm.xlu0 %2946, %v596
        %v2948 = vpop.permute.xlu0 %2947
        %2951 = vset.pattern.permute.xlu0 0
        %2952 = vperm.xlu0 %2951, %v597
        %v2953 = vpop.permute.xlu0 %2952
        %2956 = vset.pattern.permute.xlu0 0
        %2957 = vperm.xlu0 %2956, %v598
        %v2958 = vpop.permute.xlu0 %2957
        %2961 = vset.pattern.permute.xlu0 0
        %2962 = vperm.xlu0 %2961, %v599
        %v2963 = vpop.permute.xlu0 %2962
        %2966 = vset.pattern.permute.xlu0 0
        %2967 = vperm.xlu0 %2966, %v600
        %v2968 = vpop.permute.xlu0 %2967
        %2971 = vset.pattern.permute.xlu0 0
        %2972 = vperm.xlu0 %2971, %v601
        %v2973 = vpop.permute.xlu0 %2972
        %2976 = vset.pattern.permute.xlu0 0
        %2977 = vperm.xlu0 %2976, %v602
        %v2978 = vpop.permute.xlu0 %2977
        %2981 = vset.pattern.permute.xlu0 0
        %2982 = vperm.xlu0 %2981, %v603
        %v2983 = vpop.permute.xlu0 %2982
        %2986 = vset.pattern.permute.xlu0 0
        %2987 = vperm.xlu0 %2986, %v604
        %v2988 = vpop.permute.xlu0 %2987
        %2991 = vset.pattern.permute.xlu0 0
        %2992 = vperm.xlu0 %2991, %v605
        %v2993 = vpop.permute.xlu0 %2992
        %2996 = vset.pattern.permute.xlu0 0
        %2997 = vperm.xlu0 %2996, %v606
        %v2998 = vpop.permute.xlu0 %2997
        %3001 = vset.pattern.permute.xlu0 0
        %3002 = vperm.xlu0 %3001, %v607
        %v3003 = vpop.permute.xlu0 %3002
        %3006 = vset.pattern.permute.xlu0 0
        %3007 = vperm.xlu0 %3006, %v608
        %v3008 = vpop.permute.xlu0 %3007
        %3011 = vset.pattern.permute.xlu0 0
        %3012 = vperm.xlu0 %3011, %v609
        %v3013 = vpop.permute.xlu0 %3012
        %3016 = vset.pattern.permute.xlu0 0
        %3017 = vperm.xlu0 %3016, %v610
        %v3018 = vpop.permute.xlu0 %3017
        %3021 = vset.pattern.permute.xlu0 0
        %3022 = vperm.xlu0 %3021, %v611
        %v3023 = vpop.permute.xlu0 %3022
        %3026 = vset.pattern.permute.xlu0 0
        %3027 = vperm.xlu0 %3026, %v612
        %v3028 = vpop.permute.xlu0 %3027
        %3031 = vset.pattern.permute.xlu0 0
        %3032 = vperm.xlu0 %3031, %v613
        %v3033 = vpop.permute.xlu0 %3032
        %3036 = vset.pattern.permute.xlu0 0
        %3037 = vperm.xlu0 %3036, %v614
        %v3038 = vpop.permute.xlu0 %3037
        %3041 = vset.pattern.permute.xlu0 0
        %3042 = vperm.xlu0 %3041, %v615
        %v3043 = vpop.permute.xlu0 %3042
        %3046 = vset.pattern.permute.xlu0 0
        %3047 = vperm.xlu0 %3046, %v616
        %v3048 = vpop.permute.xlu0 %3047
        %3051 = vset.pattern.permute.xlu0 0
        %3052 = vperm.xlu0 %3051, %v617
        %v3053 = vpop.permute.xlu0 %3052
        %3056 = vset.pattern.permute.xlu0 0
        %3057 = vperm.xlu0 %3056, %v618
        %v3058 = vpop.permute.xlu0 %3057
        %3061 = vset.pattern.permute.xlu0 0
        %3062 = vperm.xlu0 %3061, %v619
        %v3063 = vpop.permute.xlu0 %3062
        %3066 = vset.pattern.permute.xlu0 0
        %3067 = vperm.xlu0 %3066, %v620
        %v3068 = vpop.permute.xlu0 %3067
        %3071 = vset.pattern.permute.xlu0 0
        %3072 = vperm.xlu0 %3071, %v621
        %v3073 = vpop.permute.xlu0 %3072
        %3076 = vset.pattern.permute.xlu0 0
        %3077 = vperm.xlu0 %3076, %v622
        %v3078 = vpop.permute.xlu0 %3077
        %3081 = vset.pattern.permute.xlu0 0
        %3082 = vperm.xlu0 %3081, %v623
        %v3083 = vpop.permute.xlu0 %3082
        %3086 = vset.pattern.permute.xlu0 0
        %3087 = vperm.xlu0 %3086, %v624
        %v3088 = vpop.permute.xlu0 %3087
        %3091 = vset.pattern.permute.xlu0 0
        %3092 = vperm.xlu0 %3091, %v625
        %v3093 = vpop.permute.xlu0 %3092
        %3096 = vset.pattern.permute.xlu0 0
        %3097 = vperm.xlu0 %3096, %v626
        %v3098 = vpop.permute.xlu0 %3097
        %3101 = vset.pattern.permute.xlu0 0
        %3102 = vperm.xlu0 %3101, %v627
        %v3103 = vpop.permute.xlu0 %3102
        %3106 = vset.pattern.permute.xlu0 0
        %3107 = vperm.xlu0 %3106, %v628
        %v3108 = vpop.permute.xlu0 %3107
        %3111 = vset.pattern.permute.xlu0 0
        %3112 = vperm.xlu0 %3111, %v629
        %v3113 = vpop.permute.xlu0 %3112
        %3116 = vset.pattern.permute.xlu0 0
        %3117 = vperm.xlu0 %3116, %v630
        %v3118 = vpop.permute.xlu0 %3117
        %3121 = vset.pattern.permute.xlu0 0
        %3122 = vperm.xlu0 %3121, %v631
        %v3123 = vpop.permute.xlu0 %3122
        %3126 = vset.pattern.permute.xlu0 0
        %3127 = vperm.xlu0 %3126, %v632
        %v3128 = vpop.permute.xlu0 %3127
        %3131 = vset.pattern.permute.xlu0 0
        %3132 = vperm.xlu0 %3131, %v633
        %v3133 = vpop.permute.xlu0 %3132
        %3136 = vset.pattern.permute.xlu0 0
        %3137 = vperm.xlu0 %3136, %v634
        %v3138 = vpop.permute.xlu0 %3137
        %3141 = vset.pattern.permute.xlu0 0
        %3142 = vperm.xlu0 %3141, %v635
        %v3143 = vpop.permute.xlu0 %3142
        %3146 = vset.pattern.permute.xlu0 0
        %3147 = vperm.xlu0 %3146, %v636
        %v3148 = vpop.permute.xlu0 %3147
        %3151 = vset.pattern.permute.xlu0 0
        %3152 = vperm.xlu0 %3151, %v637
        %v3153 = vpop.permute.xlu0 %3152
        %3156 = vset.pattern.permute.xlu0 0
        %3157 = vperm.xlu0 %3156, %v638
        %v3158 = vpop.permute.xlu0 %3157
        %3161 = vset.pattern.permute.xlu0 0
        %3162 = vperm.xlu0 %3161, %v639
        %v3163 = vpop.permute.xlu0 %3162
        %3166 = vset.pattern.permute.xlu0 0
        %3167 = vperm.xlu0 %3166, %v640
        %v3168 = vpop.permute.xlu0 %3167
        %3171 = vset.pattern.permute.xlu0 0
        %3172 = vperm.xlu0 %3171, %v641
        %v3173 = vpop.permute.xlu0 %3172
        %3176 = vset.pattern.permute.xlu0 0
        %3177 = vperm.xlu0 %3176, %v642
        %v3178 = vpop.permute.xlu0 %3177
        %3181 = vset.pattern.permute.xlu0 0
        %3182 = vperm.xlu0 %3181, %v643
        %v3183 = vpop.permute.xlu0 %3182
        %3186 = vset.pattern.permute.xlu0 0
        %3187 = vperm.xlu0 %3186, %v644
        %v3188 = vpop.permute.xlu0 %3187
        %3191 = vset.pattern.permute.xlu0 0
        %3192 = vperm.xlu0 %3191, %v645
        %v3193 = vpop.permute.xlu0 %3192
        %3196 = vset.pattern.permute.xlu0 0
        %3197 = vperm.xlu0 %3196, %v646
        %v3198 = vpop.permute.xlu0 %3197
        %3201 = vset.pattern.permute.xlu0 0
        %3202 = vperm.xlu0 %3201, %v647
        %v3203 = vpop.permute.xlu0 %3202
        %3206 = vset.pattern.permute.xlu0 0
        %3207 = vperm.xlu0 %3206, %v648
        %v3208 = vpop.permute.xlu0 %3207
        %3211 = vset.pattern.permute.xlu0 0
        %3212 = vperm.xlu0 %3211, %v649
        %v3213 = vpop.permute.xlu0 %3212
        %v3215 = vsub.f32 %v658, %v654
        %v3216 = vsub.f32 %v663, %v654
        %v3217 = vsub.f32 %v668, %v654
        %v3218 = vsub.f32 %v673, %v654
        %v3219 = vsub.f32 %v678, %v654
        %v3220 = vsub.f32 %v683, %v654
        %v3221 = vsub.f32 %v688, %v654
        %v3222 = vsub.f32 %v693, %v654
        %v3223 = vsub.f32 %v698, %v654
        %v3224 = vsub.f32 %v703, %v654
        %v3225 = vsub.f32 %v708, %v654
        %v3226 = vsub.f32 %v713, %v654
        %v3227 = vsub.f32 %v718, %v654
        %v3228 = vsub.f32 %v723, %v654
        %v3229 = vsub.f32 %v728, %v654
        %v3230 = vsub.f32 %v733, %v654
        %v3231 = vsub.f32 %v738, %v654
        %v3232 = vsub.f32 %v743, %v654
        %v3233 = vsub.f32 %v748, %v654
        %v3234 = vsub.f32 %v753, %v654
        %v3235 = vsub.f32 %v758, %v654
        %v3236 = vsub.f32 %v763, %v654
        %v3237 = vsub.f32 %v768, %v654
        %v3238 = vsub.f32 %v773, %v654
        %v3239 = vsub.f32 %v778, %v654
        %v3240 = vsub.f32 %v783, %v654
        %v3241 = vsub.f32 %v788, %v654
        %v3242 = vsub.f32 %v793, %v654
        %v3243 = vsub.f32 %v798, %v654
        %v3244 = vsub.f32 %v803, %v654
        %v3245 = vsub.f32 %v808, %v654
        %v3246 = vsub.f32 %v813, %v654
        %v3247 = vsub.f32 %v818, %v654
        %v3248 = vsub.f32 %v823, %v654
        %v3249 = vsub.f32 %v828, %v654
        %v3250 = vsub.f32 %v833, %v654
        %v3251 = vsub.f32 %v838, %v654
        %v3252 = vsub.f32 %v843, %v654
        %v3253 = vsub.f32 %v848, %v654
        %v3254 = vsub.f32 %v853, %v654
        %v3255 = vsub.f32 %v858, %v654
        %v3256 = vsub.f32 %v863, %v654
        %v3257 = vsub.f32 %v868, %v654
        %v3258 = vsub.f32 %v873, %v654
        %v3259 = vsub.f32 %v878, %v654
        %v3260 = vsub.f32 %v883, %v654
        %v3261 = vsub.f32 %v888, %v654
        %v3262 = vsub.f32 %v893, %v654
        %v3263 = vsub.f32 %v898, %v654
        %v3264 = vsub.f32 %v903, %v654
        %v3265 = vsub.f32 %v908, %v654
        %v3266 = vsub.f32 %v913, %v654
        %v3267 = vsub.f32 %v918, %v654
        %v3268 = vsub.f32 %v923, %v654
        %v3269 = vsub.f32 %v928, %v654
        %v3270 = vsub.f32 %v933, %v654
        %v3271 = vsub.f32 %v938, %v654
        %v3272 = vsub.f32 %v943, %v654
        %v3273 = vsub.f32 %v948, %v654
        %v3274 = vsub.f32 %v953, %v654
        %v3275 = vsub.f32 %v958, %v654
        %v3276 = vsub.f32 %v963, %v654
        %v3277 = vsub.f32 %v968, %v654
        %v3278 = vsub.f32 %v973, %v654
        %v3279 = vsub.f32 %v978, %v654
        %v3280 = vsub.f32 %v983, %v654
        %v3281 = vsub.f32 %v988, %v654
        %v3282 = vsub.f32 %v993, %v654
        %v3283 = vsub.f32 %v998, %v654
        %v3284 = vsub.f32 %v1003, %v654
        %v3285 = vsub.f32 %v1008, %v654
        %v3286 = vsub.f32 %v1013, %v654
        %v3287 = vsub.f32 %v1018, %v654
        %v3288 = vsub.f32 %v1023, %v654
        %v3289 = vsub.f32 %v1028, %v654
        %v3290 = vsub.f32 %v1033, %v654
        %v3291 = vsub.f32 %v1038, %v654
        %v3292 = vsub.f32 %v1043, %v654
        %v3293 = vsub.f32 %v1048, %v654
        %v3294 = vsub.f32 %v1053, %v654
        %v3295 = vsub.f32 %v1058, %v654
        %v3296 = vsub.f32 %v1063, %v654
        %v3297 = vsub.f32 %v1068, %v654
        %v3298 = vsub.f32 %v1073, %v654
        %v3299 = vsub.f32 %v1078, %v654
        %v3300 = vsub.f32 %v1083, %v654
        %v3301 = vsub.f32 %v1088, %v654
        %v3302 = vsub.f32 %v1093, %v654
        %v3303 = vsub.f32 %v1098, %v654
        %v3304 = vsub.f32 %v1103, %v654
        %v3305 = vsub.f32 %v1108, %v654
        %v3306 = vsub.f32 %v1113, %v654
        %v3307 = vsub.f32 %v1118, %v654
        %v3308 = vsub.f32 %v1123, %v654
        %v3309 = vsub.f32 %v1128, %v654
        %v3310 = vsub.f32 %v1133, %v654
        %v3311 = vsub.f32 %v1138, %v654
        %v3312 = vsub.f32 %v1143, %v654
        %v3313 = vsub.f32 %v1148, %v654
        %v3314 = vsub.f32 %v1153, %v654
        %v3315 = vsub.f32 %v1158, %v654
        %v3316 = vsub.f32 %v1163, %v654
        %v3317 = vsub.f32 %v1168, %v654
        %v3318 = vsub.f32 %v1173, %v654
        %v3319 = vsub.f32 %v1178, %v654
        %v3320 = vsub.f32 %v1183, %v654
        %v3321 = vsub.f32 %v1188, %v654
        %v3322 = vsub.f32 %v1193, %v654
        %v3323 = vsub.f32 %v1198, %v654
        %v3324 = vsub.f32 %v1203, %v654
        %v3325 = vsub.f32 %v1208, %v654
        %v3326 = vsub.f32 %v1213, %v654
        %v3327 = vsub.f32 %v1218, %v654
        %v3328 = vsub.f32 %v1223, %v654
        %v3329 = vsub.f32 %v1228, %v654
        %v3330 = vsub.f32 %v1233, %v654
        %v3331 = vsub.f32 %v1238, %v654
        %v3332 = vsub.f32 %v1243, %v654
        %v3333 = vsub.f32 %v1248, %v654
        %v3334 = vsub.f32 %v1253, %v654
        %v3335 = vsub.f32 %v1258, %v654
        %v3336 = vsub.f32 %v1263, %v654
        %v3337 = vsub.f32 %v1268, %v654
        %v3338 = vsub.f32 %v1273, %v654
        %v3339 = vsub.f32 %v1278, %v654
        %v3340 = vsub.f32 %v1283, %v654
        %v3341 = vsub.f32 %v1288, %v654
        %v3342 = vsub.f32 %v1293, %v654
        %v3343 = vsub.f32 %v1298, %v654
        %v3344 = vsub.f32 %v1303, %v654
        %v3345 = vsub.f32 %v1308, %v654
        %v3346 = vsub.f32 %v1313, %v654
        %v3347 = vsub.f32 %v1318, %v654
        %v3348 = vsub.f32 %v1323, %v654
        %v3349 = vsub.f32 %v1328, %v654
        %v3350 = vsub.f32 %v1333, %v654
        %v3351 = vsub.f32 %v1338, %v654
        %v3352 = vsub.f32 %v1343, %v654
        %v3353 = vsub.f32 %v1348, %v654
        %v3354 = vsub.f32 %v1353, %v654
        %v3355 = vsub.f32 %v1358, %v654
        %v3356 = vsub.f32 %v1363, %v654
        %v3357 = vsub.f32 %v1368, %v654
        %v3358 = vsub.f32 %v1373, %v654
        %v3359 = vsub.f32 %v1378, %v654
        %v3360 = vsub.f32 %v1383, %v654
        %v3361 = vsub.f32 %v1388, %v654
        %v3362 = vsub.f32 %v1393, %v654
        %v3363 = vsub.f32 %v1398, %v654
        %v3364 = vsub.f32 %v1403, %v654
        %v3365 = vsub.f32 %v1408, %v654
        %v3366 = vsub.f32 %v1413, %v654
        %v3367 = vsub.f32 %v1418, %v654
        %v3368 = vsub.f32 %v1423, %v654
        %v3369 = vsub.f32 %v1428, %v654
        %v3370 = vsub.f32 %v1433, %v654
        %v3371 = vsub.f32 %v1438, %v654
        %v3372 = vsub.f32 %v1443, %v654
        %v3373 = vsub.f32 %v1448, %v654
        %v3374 = vsub.f32 %v1453, %v654
        %v3375 = vsub.f32 %v1458, %v654
        %v3376 = vsub.f32 %v1463, %v654
        %v3377 = vsub.f32 %v1468, %v654
        %v3378 = vsub.f32 %v1473, %v654
        %v3379 = vsub.f32 %v1478, %v654
        %v3380 = vsub.f32 %v1483, %v654
        %v3381 = vsub.f32 %v1488, %v654
        %v3382 = vsub.f32 %v1493, %v654
        %v3383 = vsub.f32 %v1498, %v654
        %v3384 = vsub.f32 %v1503, %v654
        %v3385 = vsub.f32 %v1508, %v654
        %v3386 = vsub.f32 %v1513, %v654
        %v3387 = vsub.f32 %v1518, %v654
        %v3388 = vsub.f32 %v1523, %v654
        %v3389 = vsub.f32 %v1528, %v654
        %v3390 = vsub.f32 %v1533, %v654
        %v3391 = vsub.f32 %v1538, %v654
        %v3392 = vsub.f32 %v1543, %v654
        %v3393 = vsub.f32 %v1548, %v654
        %v3394 = vsub.f32 %v1553, %v654
        %v3395 = vsub.f32 %v1558, %v654
        %v3396 = vsub.f32 %v1563, %v654
        %v3397 = vsub.f32 %v1568, %v654
        %v3398 = vsub.f32 %v1573, %v654
        %v3399 = vsub.f32 %v1578, %v654
        %v3400 = vsub.f32 %v1583, %v654
        %v3401 = vsub.f32 %v1588, %v654
        %v3402 = vsub.f32 %v1593, %v654
        %v3403 = vsub.f32 %v1598, %v654
        %v3404 = vsub.f32 %v1603, %v654
        %v3405 = vsub.f32 %v1608, %v654
        %v3406 = vsub.f32 %v1613, %v654
        %v3407 = vsub.f32 %v1618, %v654
        %v3408 = vsub.f32 %v1623, %v654
        %v3409 = vsub.f32 %v1628, %v654
        %v3410 = vsub.f32 %v1633, %v654
        %v3411 = vsub.f32 %v1638, %v654
        %v3412 = vsub.f32 %v1643, %v654
        %v3413 = vsub.f32 %v1648, %v654
        %v3414 = vsub.f32 %v1653, %v654
        %v3415 = vsub.f32 %v1658, %v654
        %v3416 = vsub.f32 %v1663, %v654
        %v3417 = vsub.f32 %v1668, %v654
        %v3418 = vsub.f32 %v1673, %v654
        %v3419 = vsub.f32 %v1678, %v654
        %v3420 = vsub.f32 %v1683, %v654
        %v3421 = vsub.f32 %v1688, %v654
        %v3422 = vsub.f32 %v1693, %v654
        %v3423 = vsub.f32 %v1698, %v654
        %v3424 = vsub.f32 %v1703, %v654
        %v3425 = vsub.f32 %v1708, %v654
        %v3426 = vsub.f32 %v1713, %v654
        %v3427 = vsub.f32 %v1718, %v654
        %v3428 = vsub.f32 %v1723, %v654
        %v3429 = vsub.f32 %v1728, %v654
        %v3430 = vsub.f32 %v1733, %v654
        %v3431 = vsub.f32 %v1738, %v654
        %v3432 = vsub.f32 %v1743, %v654
        %v3433 = vsub.f32 %v1748, %v654
        %v3434 = vsub.f32 %v1753, %v654
        %v3435 = vsub.f32 %v1758, %v654
        %v3436 = vsub.f32 %v1763, %v654
        %v3437 = vsub.f32 %v1768, %v654
        %v3438 = vsub.f32 %v1773, %v654
        %v3439 = vsub.f32 %v1778, %v654
        %v3440 = vsub.f32 %v1783, %v654
        %v3441 = vsub.f32 %v1788, %v654
        %v3442 = vsub.f32 %v1793, %v654
        %v3443 = vsub.f32 %v1798, %v654
        %v3444 = vsub.f32 %v1803, %v654
        %v3445 = vsub.f32 %v1808, %v654
        %v3446 = vsub.f32 %v1813, %v654
        %v3447 = vsub.f32 %v1818, %v654
        %v3448 = vsub.f32 %v1823, %v654
        %v3449 = vsub.f32 %v1828, %v654
        %v3450 = vsub.f32 %v1833, %v654
        %v3451 = vsub.f32 %v1838, %v654
        %v3452 = vsub.f32 %v1843, %v654
        %v3453 = vsub.f32 %v1848, %v654
        %v3454 = vsub.f32 %v1853, %v654
        %v3455 = vsub.f32 %v1858, %v654
        %v3456 = vsub.f32 %v1863, %v654
        %v3457 = vsub.f32 %v1868, %v654
        %v3458 = vsub.f32 %v1873, %v654
        %v3459 = vsub.f32 %v1878, %v654
        %v3460 = vsub.f32 %v1883, %v654
        %v3461 = vsub.f32 %v1888, %v654
        %v3462 = vsub.f32 %v1893, %v654
        %v3463 = vsub.f32 %v1898, %v654
        %v3464 = vsub.f32 %v1903, %v654
        %v3465 = vsub.f32 %v1908, %v654
        %v3466 = vsub.f32 %v1913, %v654
        %v3467 = vsub.f32 %v1918, %v654
        %v3468 = vsub.f32 %v1923, %v654
        %v3469 = vsub.f32 %v1928, %v654
        %v3470 = vsub.f32 %v1933, %v654
        %v3471 = vsub.f32 %v1938, %v654
        %v3472 = vsub.f32 %v1943, %v654
        %v3473 = vsub.f32 %v1948, %v654
        %v3474 = vsub.f32 %v1953, %v654
        %v3475 = vsub.f32 %v1958, %v654
        %v3476 = vsub.f32 %v1963, %v654
        %v3477 = vsub.f32 %v1968, %v654
        %v3478 = vsub.f32 %v1973, %v654
        %v3479 = vsub.f32 %v1978, %v654
        %v3480 = vsub.f32 %v1983, %v654
        %v3481 = vsub.f32 %v1988, %v654
        %v3482 = vsub.f32 %v1993, %v654
        %v3483 = vsub.f32 %v1998, %v654
        %v3484 = vsub.f32 %v2003, %v654
        %v3485 = vsub.f32 %v2008, %v654
        %v3486 = vsub.f32 %v2013, %v654
        %v3487 = vsub.f32 %v2018, %v654
        %v3488 = vsub.f32 %v2023, %v654
        %v3489 = vsub.f32 %v2028, %v654
        %v3490 = vsub.f32 %v2033, %v654
        %v3491 = vsub.f32 %v2038, %v654
        %v3492 = vsub.f32 %v2043, %v654
        %v3493 = vsub.f32 %v2048, %v654
        %v3494 = vsub.f32 %v2053, %v654
        %v3495 = vsub.f32 %v2058, %v654
        %v3496 = vsub.f32 %v2063, %v654
        %v3497 = vsub.f32 %v2068, %v654
        %v3498 = vsub.f32 %v2073, %v654
        %v3499 = vsub.f32 %v2078, %v654
        %v3500 = vsub.f32 %v2083, %v654
        %v3501 = vsub.f32 %v2088, %v654
        %v3502 = vsub.f32 %v2093, %v654
        %v3503 = vsub.f32 %v2098, %v654
        %v3504 = vsub.f32 %v2103, %v654
        %v3505 = vsub.f32 %v2108, %v654
        %v3506 = vsub.f32 %v2113, %v654
        %v3507 = vsub.f32 %v2118, %v654
        %v3508 = vsub.f32 %v2123, %v654
        %v3509 = vsub.f32 %v2128, %v654
        %v3510 = vsub.f32 %v2133, %v654
        %v3511 = vsub.f32 %v2138, %v654
        %v3512 = vsub.f32 %v2143, %v654
        %v3513 = vsub.f32 %v2148, %v654
        %v3514 = vsub.f32 %v2153, %v654
        %v3515 = vsub.f32 %v2158, %v654
        %v3516 = vsub.f32 %v2163, %v654
        %v3517 = vsub.f32 %v2168, %v654
        %v3518 = vsub.f32 %v2173, %v654
        %v3519 = vsub.f32 %v2178, %v654
        %v3520 = vsub.f32 %v2183, %v654
        %v3521 = vsub.f32 %v2188, %v654
        %v3522 = vsub.f32 %v2193, %v654
        %v3523 = vsub.f32 %v2198, %v654
        %v3524 = vsub.f32 %v2203, %v654
        %v3525 = vsub.f32 %v2208, %v654
        %v3526 = vsub.f32 %v2213, %v654
        %v3527 = vsub.f32 %v2218, %v654
        %v3528 = vsub.f32 %v2223, %v654
        %v3529 = vsub.f32 %v2228, %v654
        %v3530 = vsub.f32 %v2233, %v654
        %v3531 = vsub.f32 %v2238, %v654
        %v3532 = vsub.f32 %v2243, %v654
        %v3533 = vsub.f32 %v2248, %v654
        %v3534 = vsub.f32 %v2253, %v654
        %v3535 = vsub.f32 %v2258, %v654
        %v3536 = vsub.f32 %v2263, %v654
        %v3537 = vsub.f32 %v2268, %v654
        %v3538 = vsub.f32 %v2273, %v654
        %v3539 = vsub.f32 %v2278, %v654
        %v3540 = vsub.f32 %v2283, %v654
        %v3541 = vsub.f32 %v2288, %v654
        %v3542 = vsub.f32 %v2293, %v654
        %v3543 = vsub.f32 %v2298, %v654
        %v3544 = vsub.f32 %v2303, %v654
        %v3545 = vsub.f32 %v2308, %v654
        %v3546 = vsub.f32 %v2313, %v654
        %v3547 = vsub.f32 %v2318, %v654
        %v3548 = vsub.f32 %v2323, %v654
        %v3549 = vsub.f32 %v2328, %v654
        %v3550 = vsub.f32 %v2333, %v654
        %v3551 = vsub.f32 %v2338, %v654
        %v3552 = vsub.f32 %v2343, %v654
        %v3553 = vsub.f32 %v2348, %v654
        %v3554 = vsub.f32 %v2353, %v654
        %v3555 = vsub.f32 %v2358, %v654
        %v3556 = vsub.f32 %v2363, %v654
        %v3557 = vsub.f32 %v2368, %v654
        %v3558 = vsub.f32 %v2373, %v654
        %v3559 = vsub.f32 %v2378, %v654
        %v3560 = vsub.f32 %v2383, %v654
        %v3561 = vsub.f32 %v2388, %v654
        %v3562 = vsub.f32 %v2393, %v654
        %v3563 = vsub.f32 %v2398, %v654
        %v3564 = vsub.f32 %v2403, %v654
        %v3565 = vsub.f32 %v2408, %v654
        %v3566 = vsub.f32 %v2413, %v654
        %v3567 = vsub.f32 %v2418, %v654
        %v3568 = vsub.f32 %v2423, %v654
        %v3569 = vsub.f32 %v2428, %v654
        %v3570 = vsub.f32 %v2433, %v654
        %v3571 = vsub.f32 %v2438, %v654
        %v3572 = vsub.f32 %v2443, %v654
        %v3573 = vsub.f32 %v2448, %v654
        %v3574 = vsub.f32 %v2453, %v654
        %v3575 = vsub.f32 %v2458, %v654
        %v3576 = vsub.f32 %v2463, %v654
        %v3577 = vsub.f32 %v2468, %v654
        %v3578 = vsub.f32 %v2473, %v654
        %v3579 = vsub.f32 %v2478, %v654
        %v3580 = vsub.f32 %v2483, %v654
        %v3581 = vsub.f32 %v2488, %v654
        %v3582 = vsub.f32 %v2493, %v654
        %v3583 = vsub.f32 %v2498, %v654
        %v3584 = vsub.f32 %v2503, %v654
        %v3585 = vsub.f32 %v2508, %v654
        %v3586 = vsub.f32 %v2513, %v654
        %v3587 = vsub.f32 %v2518, %v654
        %v3588 = vsub.f32 %v2523, %v654
        %v3589 = vsub.f32 %v2528, %v654
        %v3590 = vsub.f32 %v2533, %v654
        %v3591 = vsub.f32 %v2538, %v654
        %v3592 = vsub.f32 %v2543, %v654
        %v3593 = vsub.f32 %v2548, %v654
        %v3594 = vsub.f32 %v2553, %v654
        %v3595 = vsub.f32 %v2558, %v654
        %v3596 = vsub.f32 %v2563, %v654
        %v3597 = vsub.f32 %v2568, %v654
        %v3598 = vsub.f32 %v2573, %v654
        %v3599 = vsub.f32 %v2578, %v654
        %v3600 = vsub.f32 %v2583, %v654
        %v3601 = vsub.f32 %v2588, %v654
        %v3602 = vsub.f32 %v2593, %v654
        %v3603 = vsub.f32 %v2598, %v654
        %v3604 = vsub.f32 %v2603, %v654
        %v3605 = vsub.f32 %v2608, %v654
        %v3606 = vsub.f32 %v2613, %v654
        %v3607 = vsub.f32 %v2618, %v654
        %v3608 = vsub.f32 %v2623, %v654
        %v3609 = vsub.f32 %v2628, %v654
        %v3610 = vsub.f32 %v2633, %v654
        %v3611 = vsub.f32 %v2638, %v654
        %v3612 = vsub.f32 %v2643, %v654
        %v3613 = vsub.f32 %v2648, %v654
        %v3614 = vsub.f32 %v2653, %v654
        %v3615 = vsub.f32 %v2658, %v654
        %v3616 = vsub.f32 %v2663, %v654
        %v3617 = vsub.f32 %v2668, %v654
        %v3618 = vsub.f32 %v2673, %v654
        %v3619 = vsub.f32 %v2678, %v654
        %v3620 = vsub.f32 %v2683, %v654
        %v3621 = vsub.f32 %v2688, %v654
        %v3622 = vsub.f32 %v2693, %v654
        %v3623 = vsub.f32 %v2698, %v654
        %v3624 = vsub.f32 %v2703, %v654
        %v3625 = vsub.f32 %v2708, %v654
        %v3626 = vsub.f32 %v2713, %v654
        %v3627 = vsub.f32 %v2718, %v654
        %v3628 = vsub.f32 %v2723, %v654
        %v3629 = vsub.f32 %v2728, %v654
        %v3630 = vsub.f32 %v2733, %v654
        %v3631 = vsub.f32 %v2738, %v654
        %v3632 = vsub.f32 %v2743, %v654
        %v3633 = vsub.f32 %v2748, %v654
        %v3634 = vsub.f32 %v2753, %v654
        %v3635 = vsub.f32 %v2758, %v654
        %v3636 = vsub.f32 %v2763, %v654
        %v3637 = vsub.f32 %v2768, %v654
        %v3638 = vsub.f32 %v2773, %v654
        %v3639 = vsub.f32 %v2778, %v654
        %v3640 = vsub.f32 %v2783, %v654
        %v3641 = vsub.f32 %v2788, %v654
        %v3642 = vsub.f32 %v2793, %v654
        %v3643 = vsub.f32 %v2798, %v654
        %v3644 = vsub.f32 %v2803, %v654
        %v3645 = vsub.f32 %v2808, %v654
        %v3646 = vsub.f32 %v2813, %v654
        %v3647 = vsub.f32 %v2818, %v654
        %v3648 = vsub.f32 %v2823, %v654
        %v3649 = vsub.f32 %v2828, %v654
        %v3650 = vsub.f32 %v2833, %v654
        %v3651 = vsub.f32 %v2838, %v654
        %v3652 = vsub.f32 %v2843, %v654
        %v3653 = vsub.f32 %v2848, %v654
        %v3654 = vsub.f32 %v2853, %v654
        %v3655 = vsub.f32 %v2858, %v654
        %v3656 = vsub.f32 %v2863, %v654
        %v3657 = vsub.f32 %v2868, %v654
        %v3658 = vsub.f32 %v2873, %v654
        %v3659 = vsub.f32 %v2878, %v654
        %v3660 = vsub.f32 %v2883, %v654
        %v3661 = vsub.f32 %v2888, %v654
        %v3662 = vsub.f32 %v2893, %v654
        %v3663 = vsub.f32 %v2898, %v654
        %v3664 = vsub.f32 %v2903, %v654
        %v3665 = vsub.f32 %v2908, %v654
        %v3666 = vsub.f32 %v2913, %v654
        %v3667 = vsub.f32 %v2918, %v654
        %v3668 = vsub.f32 %v2923, %v654
        %v3669 = vsub.f32 %v2928, %v654
        %v3670 = vsub.f32 %v2933, %v654
        %v3671 = vsub.f32 %v2938, %v654
        %v3672 = vsub.f32 %v2943, %v654
        %v3673 = vsub.f32 %v2948, %v654
        %v3674 = vsub.f32 %v2953, %v654
        %v3675 = vsub.f32 %v2958, %v654
        %v3676 = vsub.f32 %v2963, %v654
        %v3677 = vsub.f32 %v2968, %v654
        %v3678 = vsub.f32 %v2973, %v654
        %v3679 = vsub.f32 %v2978, %v654
        %v3680 = vsub.f32 %v2983, %v654
        %v3681 = vsub.f32 %v2988, %v654
        %v3682 = vsub.f32 %v2993, %v654
        %v3683 = vsub.f32 %v2998, %v654
        %v3684 = vsub.f32 %v3003, %v654
        %v3685 = vsub.f32 %v3008, %v654
        %v3686 = vsub.f32 %v3013, %v654
        %v3687 = vsub.f32 %v3018, %v654
        %v3688 = vsub.f32 %v3023, %v654
        %v3689 = vsub.f32 %v3028, %v654
        %v3690 = vsub.f32 %v3033, %v654
        %v3691 = vsub.f32 %v3038, %v654
        %v3692 = vsub.f32 %v3043, %v654
        %v3693 = vsub.f32 %v3048, %v654
        %v3694 = vsub.f32 %v3053, %v654
        %v3695 = vsub.f32 %v3058, %v654
        %v3696 = vsub.f32 %v3063, %v654
        %v3697 = vsub.f32 %v3068, %v654
        %v3698 = vsub.f32 %v3073, %v654
        %v3699 = vsub.f32 %v3078, %v654
        %v3700 = vsub.f32 %v3083, %v654
        %v3701 = vsub.f32 %v3088, %v654
        %v3702 = vsub.f32 %v3093, %v654
        %v3703 = vsub.f32 %v3098, %v654
        %v3704 = vsub.f32 %v3103, %v654
        %v3705 = vsub.f32 %v3108, %v654
        %v3706 = vsub.f32 %v3113, %v654
        %v3707 = vsub.f32 %v3118, %v654
        %v3708 = vsub.f32 %v3123, %v654
        %v3709 = vsub.f32 %v3128, %v654
        %v3710 = vsub.f32 %v3133, %v654
        %v3711 = vsub.f32 %v3138, %v654
        %v3712 = vsub.f32 %v3143, %v654
        %v3713 = vsub.f32 %v3148, %v654
        %v3714 = vsub.f32 %v3153, %v654
        %v3715 = vsub.f32 %v3158, %v654
        %v3716 = vsub.f32 %v3163, %v654
        %v3717 = vsub.f32 %v3168, %v654
        %v3718 = vsub.f32 %v3173, %v654
        %v3719 = vsub.f32 %v3178, %v654
        %v3720 = vsub.f32 %v3183, %v654
        %v3721 = vsub.f32 %v3188, %v654
        %v3722 = vsub.f32 %v3193, %v654
        %v3723 = vsub.f32 %v3198, %v654
        %v3724 = vsub.f32 %v3203, %v654
        %v3725 = vsub.f32 %v3208, %v654
        %v3726 = vsub.f32 %v3213, %v654
        %v3727 = vmul.f32 %v3215, %v3215
        %v3728 = vmul.f32 %v3216, %v3216
        %v3729 = vmul.f32 %v3217, %v3217
        %v3730 = vmul.f32 %v3218, %v3218
        %v3731 = vmul.f32 %v3219, %v3219
        %v3732 = vmul.f32 %v3220, %v3220
        %v3733 = vmul.f32 %v3221, %v3221
        %v3734 = vmul.f32 %v3222, %v3222
        %v3735 = vmul.f32 %v3223, %v3223
        %v3736 = vmul.f32 %v3224, %v3224
        %v3737 = vmul.f32 %v3225, %v3225
        %v3738 = vmul.f32 %v3226, %v3226
        %v3739 = vmul.f32 %v3227, %v3227
        %v3740 = vmul.f32 %v3228, %v3228
        %v3741 = vmul.f32 %v3229, %v3229
        %v3742 = vmul.f32 %v3230, %v3230
        %v3743 = vmul.f32 %v3231, %v3231
        %v3744 = vmul.f32 %v3232, %v3232
        %v3745 = vmul.f32 %v3233, %v3233
        %v3746 = vmul.f32 %v3234, %v3234
        %v3747 = vmul.f32 %v3235, %v3235
        %v3748 = vmul.f32 %v3236, %v3236
        %v3749 = vmul.f32 %v3237, %v3237
        %v3750 = vmul.f32 %v3238, %v3238
        %v3751 = vmul.f32 %v3239, %v3239
        %v3752 = vmul.f32 %v3240, %v3240
        %v3753 = vmul.f32 %v3241, %v3241
        %v3754 = vmul.f32 %v3242, %v3242
        %v3755 = vmul.f32 %v3243, %v3243
        %v3756 = vmul.f32 %v3244, %v3244
        %v3757 = vmul.f32 %v3245, %v3245
        %v3758 = vmul.f32 %v3246, %v3246
        %v3759 = vmul.f32 %v3247, %v3247
        %v3760 = vmul.f32 %v3248, %v3248
        %v3761 = vmul.f32 %v3249, %v3249
        %v3762 = vmul.f32 %v3250, %v3250
        %v3763 = vmul.f32 %v3251, %v3251
        %v3764 = vmul.f32 %v3252, %v3252
        %v3765 = vmul.f32 %v3253, %v3253
        %v3766 = vmul.f32 %v3254, %v3254
        %v3767 = vmul.f32 %v3255, %v3255
        %v3768 = vmul.f32 %v3256, %v3256
        %v3769 = vmul.f32 %v3257, %v3257
        %v3770 = vmul.f32 %v3258, %v3258
        %v3771 = vmul.f32 %v3259, %v3259
        %v3772 = vmul.f32 %v3260, %v3260
        %v3773 = vmul.f32 %v3261, %v3261
        %v3774 = vmul.f32 %v3262, %v3262
        %v3775 = vmul.f32 %v3263, %v3263
        %v3776 = vmul.f32 %v3264, %v3264
        %v3777 = vmul.f32 %v3265, %v3265
        %v3778 = vmul.f32 %v3266, %v3266
        %v3779 = vmul.f32 %v3267, %v3267
        %v3780 = vmul.f32 %v3268, %v3268
        %v3781 = vmul.f32 %v3269, %v3269
        %v3782 = vmul.f32 %v3270, %v3270
        %v3783 = vmul.f32 %v3271, %v3271
        %v3784 = vmul.f32 %v3272, %v3272
        %v3785 = vmul.f32 %v3273, %v3273
        %v3786 = vmul.f32 %v3274, %v3274
        %v3787 = vmul.f32 %v3275, %v3275
        %v3788 = vmul.f32 %v3276, %v3276
        %v3789 = vmul.f32 %v3277, %v3277
        %v3790 = vmul.f32 %v3278, %v3278
        %v3791 = vmul.f32 %v3279, %v3279
        %v3792 = vmul.f32 %v3280, %v3280
        %v3793 = vmul.f32 %v3281, %v3281
        %v3794 = vmul.f32 %v3282, %v3282
        %v3795 = vmul.f32 %v3283, %v3283
        %v3796 = vmul.f32 %v3284, %v3284
        %v3797 = vmul.f32 %v3285, %v3285
        %v3798 = vmul.f32 %v3286, %v3286
        %v3799 = vmul.f32 %v3287, %v3287
        %v3800 = vmul.f32 %v3288, %v3288
        %v3801 = vmul.f32 %v3289, %v3289
        %v3802 = vmul.f32 %v3290, %v3290
        %v3803 = vmul.f32 %v3291, %v3291
        %v3804 = vmul.f32 %v3292, %v3292
        %v3805 = vmul.f32 %v3293, %v3293
        %v3806 = vmul.f32 %v3294, %v3294
        %v3807 = vmul.f32 %v3295, %v3295
        %v3808 = vmul.f32 %v3296, %v3296
        %v3809 = vmul.f32 %v3297, %v3297
        %v3810 = vmul.f32 %v3298, %v3298
        %v3811 = vmul.f32 %v3299, %v3299
        %v3812 = vmul.f32 %v3300, %v3300
        %v3813 = vmul.f32 %v3301, %v3301
        %v3814 = vmul.f32 %v3302, %v3302
        %v3815 = vmul.f32 %v3303, %v3303
        %v3816 = vmul.f32 %v3304, %v3304
        %v3817 = vmul.f32 %v3305, %v3305
        %v3818 = vmul.f32 %v3306, %v3306
        %v3819 = vmul.f32 %v3307, %v3307
        %v3820 = vmul.f32 %v3308, %v3308
        %v3821 = vmul.f32 %v3309, %v3309
        %v3822 = vmul.f32 %v3310, %v3310
        %v3823 = vmul.f32 %v3311, %v3311
        %v3824 = vmul.f32 %v3312, %v3312
        %v3825 = vmul.f32 %v3313, %v3313
        %v3826 = vmul.f32 %v3314, %v3314
        %v3827 = vmul.f32 %v3315, %v3315
        %v3828 = vmul.f32 %v3316, %v3316
        %v3829 = vmul.f32 %v3317, %v3317
        %v3830 = vmul.f32 %v3318, %v3318
        %v3831 = vmul.f32 %v3319, %v3319
        %v3832 = vmul.f32 %v3320, %v3320
        %v3833 = vmul.f32 %v3321, %v3321
        %v3834 = vmul.f32 %v3322, %v3322
        %v3835 = vmul.f32 %v3323, %v3323
        %v3836 = vmul.f32 %v3324, %v3324
        %v3837 = vmul.f32 %v3325, %v3325
        %v3838 = vmul.f32 %v3326, %v3326
        %v3839 = vmul.f32 %v3327, %v3327
        %v3840 = vmul.f32 %v3328, %v3328
        %v3841 = vmul.f32 %v3329, %v3329
        %v3842 = vmul.f32 %v3330, %v3330
        %v3843 = vmul.f32 %v3331, %v3331
        %v3844 = vmul.f32 %v3332, %v3332
        %v3845 = vmul.f32 %v3333, %v3333
        %v3846 = vmul.f32 %v3334, %v3334
        %v3847 = vmul.f32 %v3335, %v3335
        %v3848 = vmul.f32 %v3336, %v3336
        %v3849 = vmul.f32 %v3337, %v3337
        %v3850 = vmul.f32 %v3338, %v3338
        %v3851 = vmul.f32 %v3339, %v3339
        %v3852 = vmul.f32 %v3340, %v3340
        %v3853 = vmul.f32 %v3341, %v3341
        %v3854 = vmul.f32 %v3342, %v3342
        %v3855 = vmul.f32 %v3343, %v3343
        %v3856 = vmul.f32 %v3344, %v3344
        %v3857 = vmul.f32 %v3345, %v3345
        %v3858 = vmul.f32 %v3346, %v3346
        %v3859 = vmul.f32 %v3347, %v3347
        %v3860 = vmul.f32 %v3348, %v3348
        %v3861 = vmul.f32 %v3349, %v3349
        %v3862 = vmul.f32 %v3350, %v3350
        %v3863 = vmul.f32 %v3351, %v3351
        %v3864 = vmul.f32 %v3352, %v3352
        %v3865 = vmul.f32 %v3353, %v3353
        %v3866 = vmul.f32 %v3354, %v3354
        %v3867 = vmul.f32 %v3355, %v3355
        %v3868 = vmul.f32 %v3356, %v3356
        %v3869 = vmul.f32 %v3357, %v3357
        %v3870 = vmul.f32 %v3358, %v3358
        %v3871 = vmul.f32 %v3359, %v3359
        %v3872 = vmul.f32 %v3360, %v3360
        %v3873 = vmul.f32 %v3361, %v3361
        %v3874 = vmul.f32 %v3362, %v3362
        %v3875 = vmul.f32 %v3363, %v3363
        %v3876 = vmul.f32 %v3364, %v3364
        %v3877 = vmul.f32 %v3365, %v3365
        %v3878 = vmul.f32 %v3366, %v3366
        %v3879 = vmul.f32 %v3367, %v3367
        %v3880 = vmul.f32 %v3368, %v3368
        %v3881 = vmul.f32 %v3369, %v3369
        %v3882 = vmul.f32 %v3370, %v3370
        %v3883 = vmul.f32 %v3371, %v3371
        %v3884 = vmul.f32 %v3372, %v3372
        %v3885 = vmul.f32 %v3373, %v3373
        %v3886 = vmul.f32 %v3374, %v3374
        %v3887 = vmul.f32 %v3375, %v3375
        %v3888 = vmul.f32 %v3376, %v3376
        %v3889 = vmul.f32 %v3377, %v3377
        %v3890 = vmul.f32 %v3378, %v3378
        %v3891 = vmul.f32 %v3379, %v3379
        %v3892 = vmul.f32 %v3380, %v3380
        %v3893 = vmul.f32 %v3381, %v3381
        %v3894 = vmul.f32 %v3382, %v3382
        %v3895 = vmul.f32 %v3383, %v3383
        %v3896 = vmul.f32 %v3384, %v3384
        %v3897 = vmul.f32 %v3385, %v3385
        %v3898 = vmul.f32 %v3386, %v3386
        %v3899 = vmul.f32 %v3387, %v3387
        %v3900 = vmul.f32 %v3388, %v3388
        %v3901 = vmul.f32 %v3389, %v3389
        %v3902 = vmul.f32 %v3390, %v3390
        %v3903 = vmul.f32 %v3391, %v3391
        %v3904 = vmul.f32 %v3392, %v3392
        %v3905 = vmul.f32 %v3393, %v3393
        %v3906 = vmul.f32 %v3394, %v3394
        %v3907 = vmul.f32 %v3395, %v3395
        %v3908 = vmul.f32 %v3396, %v3396
        %v3909 = vmul.f32 %v3397, %v3397
        %v3910 = vmul.f32 %v3398, %v3398
        %v3911 = vmul.f32 %v3399, %v3399
        %v3912 = vmul.f32 %v3400, %v3400
        %v3913 = vmul.f32 %v3401, %v3401
        %v3914 = vmul.f32 %v3402, %v3402
        %v3915 = vmul.f32 %v3403, %v3403
        %v3916 = vmul.f32 %v3404, %v3404
        %v3917 = vmul.f32 %v3405, %v3405
        %v3918 = vmul.f32 %v3406, %v3406
        %v3919 = vmul.f32 %v3407, %v3407
        %v3920 = vmul.f32 %v3408, %v3408
        %v3921 = vmul.f32 %v3409, %v3409
        %v3922 = vmul.f32 %v3410, %v3410
        %v3923 = vmul.f32 %v3411, %v3411
        %v3924 = vmul.f32 %v3412, %v3412
        %v3925 = vmul.f32 %v3413, %v3413
        %v3926 = vmul.f32 %v3414, %v3414
        %v3927 = vmul.f32 %v3415, %v3415
        %v3928 = vmul.f32 %v3416, %v3416
        %v3929 = vmul.f32 %v3417, %v3417
        %v3930 = vmul.f32 %v3418, %v3418
        %v3931 = vmul.f32 %v3419, %v3419
        %v3932 = vmul.f32 %v3420, %v3420
        %v3933 = vmul.f32 %v3421, %v3421
        %v3934 = vmul.f32 %v3422, %v3422
        %v3935 = vmul.f32 %v3423, %v3423
        %v3936 = vmul.f32 %v3424, %v3424
        %v3937 = vmul.f32 %v3425, %v3425
        %v3938 = vmul.f32 %v3426, %v3426
        %v3939 = vmul.f32 %v3427, %v3427
        %v3940 = vmul.f32 %v3428, %v3428
        %v3941 = vmul.f32 %v3429, %v3429
        %v3942 = vmul.f32 %v3430, %v3430
        %v3943 = vmul.f32 %v3431, %v3431
        %v3944 = vmul.f32 %v3432, %v3432
        %v3945 = vmul.f32 %v3433, %v3433
        %v3946 = vmul.f32 %v3434, %v3434
        %v3947 = vmul.f32 %v3435, %v3435
        %v3948 = vmul.f32 %v3436, %v3436
        %v3949 = vmul.f32 %v3437, %v3437
        %v3950 = vmul.f32 %v3438, %v3438
        %v3951 = vmul.f32 %v3439, %v3439
        %v3952 = vmul.f32 %v3440, %v3440
        %v3953 = vmul.f32 %v3441, %v3441
        %v3954 = vmul.f32 %v3442, %v3442
        %v3955 = vmul.f32 %v3443, %v3443
        %v3956 = vmul.f32 %v3444, %v3444
        %v3957 = vmul.f32 %v3445, %v3445
        %v3958 = vmul.f32 %v3446, %v3446
        %v3959 = vmul.f32 %v3447, %v3447
        %v3960 = vmul.f32 %v3448, %v3448
        %v3961 = vmul.f32 %v3449, %v3449
        %v3962 = vmul.f32 %v3450, %v3450
        %v3963 = vmul.f32 %v3451, %v3451
        %v3964 = vmul.f32 %v3452, %v3452
        %v3965 = vmul.f32 %v3453, %v3453
        %v3966 = vmul.f32 %v3454, %v3454
        %v3967 = vmul.f32 %v3455, %v3455
        %v3968 = vmul.f32 %v3456, %v3456
        %v3969 = vmul.f32 %v3457, %v3457
        %v3970 = vmul.f32 %v3458, %v3458
        %v3971 = vmul.f32 %v3459, %v3459
        %v3972 = vmul.f32 %v3460, %v3460
        %v3973 = vmul.f32 %v3461, %v3461
        %v3974 = vmul.f32 %v3462, %v3462
        %v3975 = vmul.f32 %v3463, %v3463
        %v3976 = vmul.f32 %v3464, %v3464
        %v3977 = vmul.f32 %v3465, %v3465
        %v3978 = vmul.f32 %v3466, %v3466
        %v3979 = vmul.f32 %v3467, %v3467
        %v3980 = vmul.f32 %v3468, %v3468
        %v3981 = vmul.f32 %v3469, %v3469
        %v3982 = vmul.f32 %v3470, %v3470
        %v3983 = vmul.f32 %v3471, %v3471
        %v3984 = vmul.f32 %v3472, %v3472
        %v3985 = vmul.f32 %v3473, %v3473
        %v3986 = vmul.f32 %v3474, %v3474
        %v3987 = vmul.f32 %v3475, %v3475
        %v3988 = vmul.f32 %v3476, %v3476
        %v3989 = vmul.f32 %v3477, %v3477
        %v3990 = vmul.f32 %v3478, %v3478
        %v3991 = vmul.f32 %v3479, %v3479
        %v3992 = vmul.f32 %v3480, %v3480
        %v3993 = vmul.f32 %v3481, %v3481
        %v3994 = vmul.f32 %v3482, %v3482
        %v3995 = vmul.f32 %v3483, %v3483
        %v3996 = vmul.f32 %v3484, %v3484
        %v3997 = vmul.f32 %v3485, %v3485
        %v3998 = vmul.f32 %v3486, %v3486
        %v3999 = vmul.f32 %v3487, %v3487
        %v4000 = vmul.f32 %v3488, %v3488
        %v4001 = vmul.f32 %v3489, %v3489
        %v4002 = vmul.f32 %v3490, %v3490
        %v4003 = vmul.f32 %v3491, %v3491
        %v4004 = vmul.f32 %v3492, %v3492
        %v4005 = vmul.f32 %v3493, %v3493
        %v4006 = vmul.f32 %v3494, %v3494
        %v4007 = vmul.f32 %v3495, %v3495
        %v4008 = vmul.f32 %v3496, %v3496
        %v4009 = vmul.f32 %v3497, %v3497
        %v4010 = vmul.f32 %v3498, %v3498
        %v4011 = vmul.f32 %v3499, %v3499
        %v4012 = vmul.f32 %v3500, %v3500
        %v4013 = vmul.f32 %v3501, %v3501
        %v4014 = vmul.f32 %v3502, %v3502
        %v4015 = vmul.f32 %v3503, %v3503
        %v4016 = vmul.f32 %v3504, %v3504
        %v4017 = vmul.f32 %v3505, %v3505
        %v4018 = vmul.f32 %v3506, %v3506
        %v4019 = vmul.f32 %v3507, %v3507
        %v4020 = vmul.f32 %v3508, %v3508
        %v4021 = vmul.f32 %v3509, %v3509
        %v4022 = vmul.f32 %v3510, %v3510
        %v4023 = vmul.f32 %v3511, %v3511
        %v4024 = vmul.f32 %v3512, %v3512
        %v4025 = vmul.f32 %v3513, %v3513
        %v4026 = vmul.f32 %v3514, %v3514
        %v4027 = vmul.f32 %v3515, %v3515
        %v4028 = vmul.f32 %v3516, %v3516
        %v4029 = vmul.f32 %v3517, %v3517
        %v4030 = vmul.f32 %v3518, %v3518
        %v4031 = vmul.f32 %v3519, %v3519
        %v4032 = vmul.f32 %v3520, %v3520
        %v4033 = vmul.f32 %v3521, %v3521
        %v4034 = vmul.f32 %v3522, %v3522
        %v4035 = vmul.f32 %v3523, %v3523
        %v4036 = vmul.f32 %v3524, %v3524
        %v4037 = vmul.f32 %v3525, %v3525
        %v4038 = vmul.f32 %v3526, %v3526
        %v4039 = vmul.f32 %v3527, %v3527
        %v4040 = vmul.f32 %v3528, %v3528
        %v4041 = vmul.f32 %v3529, %v3529
        %v4042 = vmul.f32 %v3530, %v3530
        %v4043 = vmul.f32 %v3531, %v3531
        %v4044 = vmul.f32 %v3532, %v3532
        %v4045 = vmul.f32 %v3533, %v3533
        %v4046 = vmul.f32 %v3534, %v3534
        %v4047 = vmul.f32 %v3535, %v3535
        %v4048 = vmul.f32 %v3536, %v3536
        %v4049 = vmul.f32 %v3537, %v3537
        %v4050 = vmul.f32 %v3538, %v3538
        %v4051 = vmul.f32 %v3539, %v3539
        %v4052 = vmul.f32 %v3540, %v3540
        %v4053 = vmul.f32 %v3541, %v3541
        %v4054 = vmul.f32 %v3542, %v3542
        %v4055 = vmul.f32 %v3543, %v3543
        %v4056 = vmul.f32 %v3544, %v3544
        %v4057 = vmul.f32 %v3545, %v3545
        %v4058 = vmul.f32 %v3546, %v3546
        %v4059 = vmul.f32 %v3547, %v3547
        %v4060 = vmul.f32 %v3548, %v3548
        %v4061 = vmul.f32 %v3549, %v3549
        %v4062 = vmul.f32 %v3550, %v3550
        %v4063 = vmul.f32 %v3551, %v3551
        %v4064 = vmul.f32 %v3552, %v3552
        %v4065 = vmul.f32 %v3553, %v3553
        %v4066 = vmul.f32 %v3554, %v3554
        %v4067 = vmul.f32 %v3555, %v3555
        %v4068 = vmul.f32 %v3556, %v3556
        %v4069 = vmul.f32 %v3557, %v3557
        %v4070 = vmul.f32 %v3558, %v3558
        %v4071 = vmul.f32 %v3559, %v3559
        %v4072 = vmul.f32 %v3560, %v3560
        %v4073 = vmul.f32 %v3561, %v3561
        %v4074 = vmul.f32 %v3562, %v3562
        %v4075 = vmul.f32 %v3563, %v3563
        %v4076 = vmul.f32 %v3564, %v3564
        %v4077 = vmul.f32 %v3565, %v3565
        %v4078 = vmul.f32 %v3566, %v3566
        %v4079 = vmul.f32 %v3567, %v3567
        %v4080 = vmul.f32 %v3568, %v3568
        %v4081 = vmul.f32 %v3569, %v3569
        %v4082 = vmul.f32 %v3570, %v3570
        %v4083 = vmul.f32 %v3571, %v3571
        %v4084 = vmul.f32 %v3572, %v3572
        %v4085 = vmul.f32 %v3573, %v3573
        %v4086 = vmul.f32 %v3574, %v3574
        %v4087 = vmul.f32 %v3575, %v3575
        %v4088 = vmul.f32 %v3576, %v3576
        %v4089 = vmul.f32 %v3577, %v3577
        %v4090 = vmul.f32 %v3578, %v3578
        %v4091 = vmul.f32 %v3579, %v3579
        %v4092 = vmul.f32 %v3580, %v3580
        %v4093 = vmul.f32 %v3581, %v3581
        %v4094 = vmul.f32 %v3582, %v3582
        %v4095 = vmul.f32 %v3583, %v3583
        %v4096 = vmul.f32 %v3584, %v3584
        %v4097 = vmul.f32 %v3585, %v3585
        %v4098 = vmul.f32 %v3586, %v3586
        %v4099 = vmul.f32 %v3587, %v3587
        %v4100 = vmul.f32 %v3588, %v3588
        %v4101 = vmul.f32 %v3589, %v3589
        %v4102 = vmul.f32 %v3590, %v3590
        %v4103 = vmul.f32 %v3591, %v3591
        %v4104 = vmul.f32 %v3592, %v3592
        %v4105 = vmul.f32 %v3593, %v3593
        %v4106 = vmul.f32 %v3594, %v3594
        %v4107 = vmul.f32 %v3595, %v3595
        %v4108 = vmul.f32 %v3596, %v3596
        %v4109 = vmul.f32 %v3597, %v3597
        %v4110 = vmul.f32 %v3598, %v3598
        %v4111 = vmul.f32 %v3599, %v3599
        %v4112 = vmul.f32 %v3600, %v3600
        %v4113 = vmul.f32 %v3601, %v3601
        %v4114 = vmul.f32 %v3602, %v3602
        %v4115 = vmul.f32 %v3603, %v3603
        %v4116 = vmul.f32 %v3604, %v3604
        %v4117 = vmul.f32 %v3605, %v3605
        %v4118 = vmul.f32 %v3606, %v3606
        %v4119 = vmul.f32 %v3607, %v3607
        %v4120 = vmul.f32 %v3608, %v3608
        %v4121 = vmul.f32 %v3609, %v3609
        %v4122 = vmul.f32 %v3610, %v3610
        %v4123 = vmul.f32 %v3611, %v3611
        %v4124 = vmul.f32 %v3612, %v3612
        %v4125 = vmul.f32 %v3613, %v3613
        %v4126 = vmul.f32 %v3614, %v3614
        %v4127 = vmul.f32 %v3615, %v3615
        %v4128 = vmul.f32 %v3616, %v3616
        %v4129 = vmul.f32 %v3617, %v3617
        %v4130 = vmul.f32 %v3618, %v3618
        %v4131 = vmul.f32 %v3619, %v3619
        %v4132 = vmul.f32 %v3620, %v3620
        %v4133 = vmul.f32 %v3621, %v3621
        %v4134 = vmul.f32 %v3622, %v3622
        %v4135 = vmul.f32 %v3623, %v3623
        %v4136 = vmul.f32 %v3624, %v3624
        %v4137 = vmul.f32 %v3625, %v3625
        %v4138 = vmul.f32 %v3626, %v3626
        %v4139 = vmul.f32 %v3627, %v3627
        %v4140 = vmul.f32 %v3628, %v3628
        %v4141 = vmul.f32 %v3629, %v3629
        %v4142 = vmul.f32 %v3630, %v3630
        %v4143 = vmul.f32 %v3631, %v3631
        %v4144 = vmul.f32 %v3632, %v3632
        %v4145 = vmul.f32 %v3633, %v3633
        %v4146 = vmul.f32 %v3634, %v3634
        %v4147 = vmul.f32 %v3635, %v3635
        %v4148 = vmul.f32 %v3636, %v3636
        %v4149 = vmul.f32 %v3637, %v3637
        %v4150 = vmul.f32 %v3638, %v3638
        %v4151 = vmul.f32 %v3639, %v3639
        %v4152 = vmul.f32 %v3640, %v3640
        %v4153 = vmul.f32 %v3641, %v3641
        %v4154 = vmul.f32 %v3642, %v3642
        %v4155 = vmul.f32 %v3643, %v3643
        %v4156 = vmul.f32 %v3644, %v3644
        %v4157 = vmul.f32 %v3645, %v3645
        %v4158 = vmul.f32 %v3646, %v3646
        %v4159 = vmul.f32 %v3647, %v3647
        %v4160 = vmul.f32 %v3648, %v3648
        %v4161 = vmul.f32 %v3649, %v3649
        %v4162 = vmul.f32 %v3650, %v3650
        %v4163 = vmul.f32 %v3651, %v3651
        %v4164 = vmul.f32 %v3652, %v3652
        %v4165 = vmul.f32 %v3653, %v3653
        %v4166 = vmul.f32 %v3654, %v3654
        %v4167 = vmul.f32 %v3655, %v3655
        %v4168 = vmul.f32 %v3656, %v3656
        %v4169 = vmul.f32 %v3657, %v3657
        %v4170 = vmul.f32 %v3658, %v3658
        %v4171 = vmul.f32 %v3659, %v3659
        %v4172 = vmul.f32 %v3660, %v3660
        %v4173 = vmul.f32 %v3661, %v3661
        %v4174 = vmul.f32 %v3662, %v3662
        %v4175 = vmul.f32 %v3663, %v3663
        %v4176 = vmul.f32 %v3664, %v3664
        %v4177 = vmul.f32 %v3665, %v3665
        %v4178 = vmul.f32 %v3666, %v3666
        %v4179 = vmul.f32 %v3667, %v3667
        %v4180 = vmul.f32 %v3668, %v3668
        %v4181 = vmul.f32 %v3669, %v3669
        %v4182 = vmul.f32 %v3670, %v3670
        %v4183 = vmul.f32 %v3671, %v3671
        %v4184 = vmul.f32 %v3672, %v3672
        %v4185 = vmul.f32 %v3673, %v3673
        %v4186 = vmul.f32 %v3674, %v3674
        %v4187 = vmul.f32 %v3675, %v3675
        %v4188 = vmul.f32 %v3676, %v3676
        %v4189 = vmul.f32 %v3677, %v3677
        %v4190 = vmul.f32 %v3678, %v3678
        %v4191 = vmul.f32 %v3679, %v3679
        %v4192 = vmul.f32 %v3680, %v3680
        %v4193 = vmul.f32 %v3681, %v3681
        %v4194 = vmul.f32 %v3682, %v3682
        %v4195 = vmul.f32 %v3683, %v3683
        %v4196 = vmul.f32 %v3684, %v3684
        %v4197 = vmul.f32 %v3685, %v3685
        %v4198 = vmul.f32 %v3686, %v3686
        %v4199 = vmul.f32 %v3687, %v3687
        %v4200 = vmul.f32 %v3688, %v3688
        %v4201 = vmul.f32 %v3689, %v3689
        %v4202 = vmul.f32 %v3690, %v3690
        %v4203 = vmul.f32 %v3691, %v3691
        %v4204 = vmul.f32 %v3692, %v3692
        %v4205 = vmul.f32 %v3693, %v3693
        %v4206 = vmul.f32 %v3694, %v3694
        %v4207 = vmul.f32 %v3695, %v3695
        %v4208 = vmul.f32 %v3696, %v3696
        %v4209 = vmul.f32 %v3697, %v3697
        %v4210 = vmul.f32 %v3698, %v3698
        %v4211 = vmul.f32 %v3699, %v3699
        %v4212 = vmul.f32 %v3700, %v3700
        %v4213 = vmul.f32 %v3701, %v3701
        %v4214 = vmul.f32 %v3702, %v3702
        %v4215 = vmul.f32 %v3703, %v3703
        %v4216 = vmul.f32 %v3704, %v3704
        %v4217 = vmul.f32 %v3705, %v3705
        %v4218 = vmul.f32 %v3706, %v3706
        %v4219 = vmul.f32 %v3707, %v3707
        %v4220 = vmul.f32 %v3708, %v3708
        %v4221 = vmul.f32 %v3709, %v3709
        %v4222 = vmul.f32 %v3710, %v3710
        %v4223 = vmul.f32 %v3711, %v3711
        %v4224 = vmul.f32 %v3712, %v3712
        %v4225 = vmul.f32 %v3713, %v3713
        %v4226 = vmul.f32 %v3714, %v3714
        %v4227 = vmul.f32 %v3715, %v3715
        %v4228 = vmul.f32 %v3716, %v3716
        %v4229 = vmul.f32 %v3717, %v3717
        %v4230 = vmul.f32 %v3718, %v3718
        %v4231 = vmul.f32 %v3719, %v3719
        %v4232 = vmul.f32 %v3720, %v3720
        %v4233 = vmul.f32 %v3721, %v3721
        %v4234 = vmul.f32 %v3722, %v3722
        %v4235 = vmul.f32 %v3723, %v3723
        %v4236 = vmul.f32 %v3724, %v3724
        %v4237 = vmul.f32 %v3725, %v3725
        %v4238 = vmul.f32 %v3726, %v3726
        %v4239 = vmul.f32 %v3727, -48.02
        %v4240 = vmul.f32 %v3728, -48.02
        %v4241 = vmul.f32 %v3729, -48.02
        %v4242 = vmul.f32 %v3730, -48.02
        %v4243 = vmul.f32 %v3731, -48.02
        %v4244 = vmul.f32 %v3732, -48.02
        %v4245 = vmul.f32 %v3733, -48.02
        %v4246 = vmul.f32 %v3734, -48.02
        %v4247 = vmul.f32 %v3735, -48.02
        %v4248 = vmul.f32 %v3736, -48.02
        %v4249 = vmul.f32 %v3737, -48.02
        %v4250 = vmul.f32 %v3738, -48.02
        %v4251 = vmul.f32 %v3739, -48.02
        %v4252 = vmul.f32 %v3740, -48.02
        %v4253 = vmul.f32 %v3741, -48.02
        %v4254 = vmul.f32 %v3742, -48.02
        %v4255 = vmul.f32 %v3743, -48.02
        %v4256 = vmul.f32 %v3744, -48.02
        %v4257 = vmul.f32 %v3745, -48.02
        %v4258 = vmul.f32 %v3746, -48.02
        %v4259 = vmul.f32 %v3747, -48.02
        %v4260 = vmul.f32 %v3748, -48.02
        %v4261 = vmul.f32 %v3749, -48.02
        %v4262 = vmul.f32 %v3750, -48.02
        %v4263 = vmul.f32 %v3751, -48.02
        %v4264 = vmul.f32 %v3752, -48.02
        %v4265 = vmul.f32 %v3753, -48.02
        %v4266 = vmul.f32 %v3754, -48.02
        %v4267 = vmul.f32 %v3755, -48.02
        %v4268 = vmul.f32 %v3756, -48.02
        %v4269 = vmul.f32 %v3757, -48.02
        %v4270 = vmul.f32 %v3758, -48.02
        %v4271 = vmul.f32 %v3759, -48.02
        %v4272 = vmul.f32 %v3760, -48.02
        %v4273 = vmul.f32 %v3761, -48.02
        %v4274 = vmul.f32 %v3762, -48.02
        %v4275 = vmul.f32 %v3763, -48.02
        %v4276 = vmul.f32 %v3764, -48.02
        %v4277 = vmul.f32 %v3765, -48.02
        %v4278 = vmul.f32 %v3766, -48.02
        %v4279 = vmul.f32 %v3767, -48.02
        %v4280 = vmul.f32 %v3768, -48.02
        %v4281 = vmul.f32 %v3769, -48.02
        %v4282 = vmul.f32 %v3770, -48.02
        %v4283 = vmul.f32 %v3771, -48.02
        %v4284 = vmul.f32 %v3772, -48.02
        %v4285 = vmul.f32 %v3773, -48.02
        %v4286 = vmul.f32 %v3774, -48.02
        %v4287 = vmul.f32 %v3775, -48.02
        %v4288 = vmul.f32 %v3776, -48.02
        %v4289 = vmul.f32 %v3777, -48.02
        %v4290 = vmul.f32 %v3778, -48.02
        %v4291 = vmul.f32 %v3779, -48.02
        %v4292 = vmul.f32 %v3780, -48.02
        %v4293 = vmul.f32 %v3781, -48.02
        %v4294 = vmul.f32 %v3782, -48.02
        %v4295 = vmul.f32 %v3783, -48.02
        %v4296 = vmul.f32 %v3784, -48.02
        %v4297 = vmul.f32 %v3785, -48.02
        %v4298 = vmul.f32 %v3786, -48.02
        %v4299 = vmul.f32 %v3787, -48.02
        %v4300 = vmul.f32 %v3788, -48.02
        %v4301 = vmul.f32 %v3789, -48.02
        %v4302 = vmul.f32 %v3790, -48.02
        %v4303 = vmul.f32 %v3791, -48.02
        %v4304 = vmul.f32 %v3792, -48.02
        %v4305 = vmul.f32 %v3793, -48.02
        %v4306 = vmul.f32 %v3794, -48.02
        %v4307 = vmul.f32 %v3795, -48.02
        %v4308 = vmul.f32 %v3796, -48.02
        %v4309 = vmul.f32 %v3797, -48.02
        %v4310 = vmul.f32 %v3798, -48.02
        %v4311 = vmul.f32 %v3799, -48.02
        %v4312 = vmul.f32 %v3800, -48.02
        %v4313 = vmul.f32 %v3801, -48.02
        %v4314 = vmul.f32 %v3802, -48.02
        %v4315 = vmul.f32 %v3803, -48.02
        %v4316 = vmul.f32 %v3804, -48.02
        %v4317 = vmul.f32 %v3805, -48.02
        %v4318 = vmul.f32 %v3806, -48.02
        %v4319 = vmul.f32 %v3807, -48.02
        %v4320 = vmul.f32 %v3808, -48.02
        %v4321 = vmul.f32 %v3809, -48.02
        %v4322 = vmul.f32 %v3810, -48.02
        %v4323 = vmul.f32 %v3811, -48.02
        %v4324 = vmul.f32 %v3812, -48.02
        %v4325 = vmul.f32 %v3813, -48.02
        %v4326 = vmul.f32 %v3814, -48.02
        %v4327 = vmul.f32 %v3815, -48.02
        %v4328 = vmul.f32 %v3816, -48.02
        %v4329 = vmul.f32 %v3817, -48.02
        %v4330 = vmul.f32 %v3818, -48.02
        %v4331 = vmul.f32 %v3819, -48.02
        %v4332 = vmul.f32 %v3820, -48.02
        %v4333 = vmul.f32 %v3821, -48.02
        %v4334 = vmul.f32 %v3822, -48.02
        %v4335 = vmul.f32 %v3823, -48.02
        %v4336 = vmul.f32 %v3824, -48.02
        %v4337 = vmul.f32 %v3825, -48.02
        %v4338 = vmul.f32 %v3826, -48.02
        %v4339 = vmul.f32 %v3827, -48.02
        %v4340 = vmul.f32 %v3828, -48.02
        %v4341 = vmul.f32 %v3829, -48.02
        %v4342 = vmul.f32 %v3830, -48.02
        %v4343 = vmul.f32 %v3831, -48.02
        %v4344 = vmul.f32 %v3832, -48.02
        %v4345 = vmul.f32 %v3833, -48.02
        %v4346 = vmul.f32 %v3834, -48.02
        %v4347 = vmul.f32 %v3835, -48.02
        %v4348 = vmul.f32 %v3836, -48.02
        %v4349 = vmul.f32 %v3837, -48.02
        %v4350 = vmul.f32 %v3838, -48.02
        %v4351 = vmul.f32 %v3839, -48.02
        %v4352 = vmul.f32 %v3840, -48.02
        %v4353 = vmul.f32 %v3841, -48.02
        %v4354 = vmul.f32 %v3842, -48.02
        %v4355 = vmul.f32 %v3843, -48.02
        %v4356 = vmul.f32 %v3844, -48.02
        %v4357 = vmul.f32 %v3845, -48.02
        %v4358 = vmul.f32 %v3846, -48.02
        %v4359 = vmul.f32 %v3847, -48.02
        %v4360 = vmul.f32 %v3848, -48.02
        %v4361 = vmul.f32 %v3849, -48.02
        %v4362 = vmul.f32 %v3850, -48.02
        %v4363 = vmul.f32 %v3851, -48.02
        %v4364 = vmul.f32 %v3852, -48.02
        %v4365 = vmul.f32 %v3853, -48.02
        %v4366 = vmul.f32 %v3854, -48.02
        %v4367 = vmul.f32 %v3855, -48.02
        %v4368 = vmul.f32 %v3856, -48.02
        %v4369 = vmul.f32 %v3857, -48.02
        %v4370 = vmul.f32 %v3858, -48.02
        %v4371 = vmul.f32 %v3859, -48.02
        %v4372 = vmul.f32 %v3860, -48.02
        %v4373 = vmul.f32 %v3861, -48.02
        %v4374 = vmul.f32 %v3862, -48.02
        %v4375 = vmul.f32 %v3863, -48.02
        %v4376 = vmul.f32 %v3864, -48.02
        %v4377 = vmul.f32 %v3865, -48.02
        %v4378 = vmul.f32 %v3866, -48.02
        %v4379 = vmul.f32 %v3867, -48.02
        %v4380 = vmul.f32 %v3868, -48.02
        %v4381 = vmul.f32 %v3869, -48.02
        %v4382 = vmul.f32 %v3870, -48.02
        %v4383 = vmul.f32 %v3871, -48.02
        %v4384 = vmul.f32 %v3872, -48.02
        %v4385 = vmul.f32 %v3873, -48.02
        %v4386 = vmul.f32 %v3874, -48.02
        %v4387 = vmul.f32 %v3875, -48.02
        %v4388 = vmul.f32 %v3876, -48.02
        %v4389 = vmul.f32 %v3877, -48.02
        %v4390 = vmul.f32 %v3878, -48.02
        %v4391 = vmul.f32 %v3879, -48.02
        %v4392 = vmul.f32 %v3880, -48.02
        %v4393 = vmul.f32 %v3881, -48.02
        %v4394 = vmul.f32 %v3882, -48.02
        %v4395 = vmul.f32 %v3883, -48.02
        %v4396 = vmul.f32 %v3884, -48.02
        %v4397 = vmul.f32 %v3885, -48.02
        %v4398 = vmul.f32 %v3886, -48.02
        %v4399 = vmul.f32 %v3887, -48.02
        %v4400 = vmul.f32 %v3888, -48.02
        %v4401 = vmul.f32 %v3889, -48.02
        %v4402 = vmul.f32 %v3890, -48.02
        %v4403 = vmul.f32 %v3891, -48.02
        %v4404 = vmul.f32 %v3892, -48.02
        %v4405 = vmul.f32 %v3893, -48.02
        %v4406 = vmul.f32 %v3894, -48.02
        %v4407 = vmul.f32 %v3895, -48.02
        %v4408 = vmul.f32 %v3896, -48.02
        %v4409 = vmul.f32 %v3897, -48.02
        %v4410 = vmul.f32 %v3898, -48.02
        %v4411 = vmul.f32 %v3899, -48.02
        %v4412 = vmul.f32 %v3900, -48.02
        %v4413 = vmul.f32 %v3901, -48.02
        %v4414 = vmul.f32 %v3902, -48.02
        %v4415 = vmul.f32 %v3903, -48.02
        %v4416 = vmul.f32 %v3904, -48.02
        %v4417 = vmul.f32 %v3905, -48.02
        %v4418 = vmul.f32 %v3906, -48.02
        %v4419 = vmul.f32 %v3907, -48.02
        %v4420 = vmul.f32 %v3908, -48.02
        %v4421 = vmul.f32 %v3909, -48.02
        %v4422 = vmul.f32 %v3910, -48.02
        %v4423 = vmul.f32 %v3911, -48.02
        %v4424 = vmul.f32 %v3912, -48.02
        %v4425 = vmul.f32 %v3913, -48.02
        %v4426 = vmul.f32 %v3914, -48.02
        %v4427 = vmul.f32 %v3915, -48.02
        %v4428 = vmul.f32 %v3916, -48.02
        %v4429 = vmul.f32 %v3917, -48.02
        %v4430 = vmul.f32 %v3918, -48.02
        %v4431 = vmul.f32 %v3919, -48.02
        %v4432 = vmul.f32 %v3920, -48.02
        %v4433 = vmul.f32 %v3921, -48.02
        %v4434 = vmul.f32 %v3922, -48.02
        %v4435 = vmul.f32 %v3923, -48.02
        %v4436 = vmul.f32 %v3924, -48.02
        %v4437 = vmul.f32 %v3925, -48.02
        %v4438 = vmul.f32 %v3926, -48.02
        %v4439 = vmul.f32 %v3927, -48.02
        %v4440 = vmul.f32 %v3928, -48.02
        %v4441 = vmul.f32 %v3929, -48.02
        %v4442 = vmul.f32 %v3930, -48.02
        %v4443 = vmul.f32 %v3931, -48.02
        %v4444 = vmul.f32 %v3932, -48.02
        %v4445 = vmul.f32 %v3933, -48.02
        %v4446 = vmul.f32 %v3934, -48.02
        %v4447 = vmul.f32 %v3935, -48.02
        %v4448 = vmul.f32 %v3936, -48.02
        %v4449 = vmul.f32 %v3937, -48.02
        %v4450 = vmul.f32 %v3938, -48.02
        %v4451 = vmul.f32 %v3939, -48.02
        %v4452 = vmul.f32 %v3940, -48.02
        %v4453 = vmul.f32 %v3941, -48.02
        %v4454 = vmul.f32 %v3942, -48.02
        %v4455 = vmul.f32 %v3943, -48.02
        %v4456 = vmul.f32 %v3944, -48.02
        %v4457 = vmul.f32 %v3945, -48.02
        %v4458 = vmul.f32 %v3946, -48.02
        %v4459 = vmul.f32 %v3947, -48.02
        %v4460 = vmul.f32 %v3948, -48.02
        %v4461 = vmul.f32 %v3949, -48.02
        %v4462 = vmul.f32 %v3950, -48.02
        %v4463 = vmul.f32 %v3951, -48.02
        %v4464 = vmul.f32 %v3952, -48.02
        %v4465 = vmul.f32 %v3953, -48.02
        %v4466 = vmul.f32 %v3954, -48.02
        %v4467 = vmul.f32 %v3955, -48.02
        %v4468 = vmul.f32 %v3956, -48.02
        %v4469 = vmul.f32 %v3957, -48.02
        %v4470 = vmul.f32 %v3958, -48.02
        %v4471 = vmul.f32 %v3959, -48.02
        %v4472 = vmul.f32 %v3960, -48.02
        %v4473 = vmul.f32 %v3961, -48.02
        %v4474 = vmul.f32 %v3962, -48.02
        %v4475 = vmul.f32 %v3963, -48.02
        %v4476 = vmul.f32 %v3964, -48.02
        %v4477 = vmul.f32 %v3965, -48.02
        %v4478 = vmul.f32 %v3966, -48.02
        %v4479 = vmul.f32 %v3967, -48.02
        %v4480 = vmul.f32 %v3968, -48.02
        %v4481 = vmul.f32 %v3969, -48.02
        %v4482 = vmul.f32 %v3970, -48.02
        %v4483 = vmul.f32 %v3971, -48.02
        %v4484 = vmul.f32 %v3972, -48.02
        %v4485 = vmul.f32 %v3973, -48.02
        %v4486 = vmul.f32 %v3974, -48.02
        %v4487 = vmul.f32 %v3975, -48.02
        %v4488 = vmul.f32 %v3976, -48.02
        %v4489 = vmul.f32 %v3977, -48.02
        %v4490 = vmul.f32 %v3978, -48.02
        %v4491 = vmul.f32 %v3979, -48.02
        %v4492 = vmul.f32 %v3980, -48.02
        %v4493 = vmul.f32 %v3981, -48.02
        %v4494 = vmul.f32 %v3982, -48.02
        %v4495 = vmul.f32 %v3983, -48.02
        %v4496 = vmul.f32 %v3984, -48.02
        %v4497 = vmul.f32 %v3985, -48.02
        %v4498 = vmul.f32 %v3986, -48.02
        %v4499 = vmul.f32 %v3987, -48.02
        %v4500 = vmul.f32 %v3988, -48.02
        %v4501 = vmul.f32 %v3989, -48.02
        %v4502 = vmul.f32 %v3990, -48.02
        %v4503 = vmul.f32 %v3991, -48.02
        %v4504 = vmul.f32 %v3992, -48.02
        %v4505 = vmul.f32 %v3993, -48.02
        %v4506 = vmul.f32 %v3994, -48.02
        %v4507 = vmul.f32 %v3995, -48.02
        %v4508 = vmul.f32 %v3996, -48.02
        %v4509 = vmul.f32 %v3997, -48.02
        %v4510 = vmul.f32 %v3998, -48.02
        %v4511 = vmul.f32 %v3999, -48.02
        %v4512 = vmul.f32 %v4000, -48.02
        %v4513 = vmul.f32 %v4001, -48.02
        %v4514 = vmul.f32 %v4002, -48.02
        %v4515 = vmul.f32 %v4003, -48.02
        %v4516 = vmul.f32 %v4004, -48.02
        %v4517 = vmul.f32 %v4005, -48.02
        %v4518 = vmul.f32 %v4006, -48.02
        %v4519 = vmul.f32 %v4007, -48.02
        %v4520 = vmul.f32 %v4008, -48.02
        %v4521 = vmul.f32 %v4009, -48.02
        %v4522 = vmul.f32 %v4010, -48.02
        %v4523 = vmul.f32 %v4011, -48.02
        %v4524 = vmul.f32 %v4012, -48.02
        %v4525 = vmul.f32 %v4013, -48.02
        %v4526 = vmul.f32 %v4014, -48.02
        %v4527 = vmul.f32 %v4015, -48.02
        %v4528 = vmul.f32 %v4016, -48.02
        %v4529 = vmul.f32 %v4017, -48.02
        %v4530 = vmul.f32 %v4018, -48.02
        %v4531 = vmul.f32 %v4019, -48.02
        %v4532 = vmul.f32 %v4020, -48.02
        %v4533 = vmul.f32 %v4021, -48.02
        %v4534 = vmul.f32 %v4022, -48.02
        %v4535 = vmul.f32 %v4023, -48.02
        %v4536 = vmul.f32 %v4024, -48.02
        %v4537 = vmul.f32 %v4025, -48.02
        %v4538 = vmul.f32 %v4026, -48.02
        %v4539 = vmul.f32 %v4027, -48.02
        %v4540 = vmul.f32 %v4028, -48.02
        %v4541 = vmul.f32 %v4029, -48.02
        %v4542 = vmul.f32 %v4030, -48.02
        %v4543 = vmul.f32 %v4031, -48.02
        %v4544 = vmul.f32 %v4032, -48.02
        %v4545 = vmul.f32 %v4033, -48.02
        %v4546 = vmul.f32 %v4034, -48.02
        %v4547 = vmul.f32 %v4035, -48.02
        %v4548 = vmul.f32 %v4036, -48.02
        %v4549 = vmul.f32 %v4037, -48.02
        %v4550 = vmul.f32 %v4038, -48.02
        %v4551 = vmul.f32 %v4039, -48.02
        %v4552 = vmul.f32 %v4040, -48.02
        %v4553 = vmul.f32 %v4041, -48.02
        %v4554 = vmul.f32 %v4042, -48.02
        %v4555 = vmul.f32 %v4043, -48.02
        %v4556 = vmul.f32 %v4044, -48.02
        %v4557 = vmul.f32 %v4045, -48.02
        %v4558 = vmul.f32 %v4046, -48.02
        %v4559 = vmul.f32 %v4047, -48.02
        %v4560 = vmul.f32 %v4048, -48.02
        %v4561 = vmul.f32 %v4049, -48.02
        %v4562 = vmul.f32 %v4050, -48.02
        %v4563 = vmul.f32 %v4051, -48.02
        %v4564 = vmul.f32 %v4052, -48.02
        %v4565 = vmul.f32 %v4053, -48.02
        %v4566 = vmul.f32 %v4054, -48.02
        %v4567 = vmul.f32 %v4055, -48.02
        %v4568 = vmul.f32 %v4056, -48.02
        %v4569 = vmul.f32 %v4057, -48.02
        %v4570 = vmul.f32 %v4058, -48.02
        %v4571 = vmul.f32 %v4059, -48.02
        %v4572 = vmul.f32 %v4060, -48.02
        %v4573 = vmul.f32 %v4061, -48.02
        %v4574 = vmul.f32 %v4062, -48.02
        %v4575 = vmul.f32 %v4063, -48.02
        %v4576 = vmul.f32 %v4064, -48.02
        %v4577 = vmul.f32 %v4065, -48.02
        %v4578 = vmul.f32 %v4066, -48.02
        %v4579 = vmul.f32 %v4067, -48.02
        %v4580 = vmul.f32 %v4068, -48.02
        %v4581 = vmul.f32 %v4069, -48.02
        %v4582 = vmul.f32 %v4070, -48.02
        %v4583 = vmul.f32 %v4071, -48.02
        %v4584 = vmul.f32 %v4072, -48.02
        %v4585 = vmul.f32 %v4073, -48.02
        %v4586 = vmul.f32 %v4074, -48.02
        %v4587 = vmul.f32 %v4075, -48.02
        %v4588 = vmul.f32 %v4076, -48.02
        %v4589 = vmul.f32 %v4077, -48.02
        %v4590 = vmul.f32 %v4078, -48.02
        %v4591 = vmul.f32 %v4079, -48.02
        %v4592 = vmul.f32 %v4080, -48.02
        %v4593 = vmul.f32 %v4081, -48.02
        %v4594 = vmul.f32 %v4082, -48.02
        %v4595 = vmul.f32 %v4083, -48.02
        %v4596 = vmul.f32 %v4084, -48.02
        %v4597 = vmul.f32 %v4085, -48.02
        %v4598 = vmul.f32 %v4086, -48.02
        %v4599 = vmul.f32 %v4087, -48.02
        %v4600 = vmul.f32 %v4088, -48.02
        %v4601 = vmul.f32 %v4089, -48.02
        %v4602 = vmul.f32 %v4090, -48.02
        %v4603 = vmul.f32 %v4091, -48.02
        %v4604 = vmul.f32 %v4092, -48.02
        %v4605 = vmul.f32 %v4093, -48.02
        %v4606 = vmul.f32 %v4094, -48.02
        %v4607 = vmul.f32 %v4095, -48.02
        %v4608 = vmul.f32 %v4096, -48.02
        %v4609 = vmul.f32 %v4097, -48.02
        %v4610 = vmul.f32 %v4098, -48.02
        %v4611 = vmul.f32 %v4099, -48.02
        %v4612 = vmul.f32 %v4100, -48.02
        %v4613 = vmul.f32 %v4101, -48.02
        %v4614 = vmul.f32 %v4102, -48.02
        %v4615 = vmul.f32 %v4103, -48.02
        %v4616 = vmul.f32 %v4104, -48.02
        %v4617 = vmul.f32 %v4105, -48.02
        %v4618 = vmul.f32 %v4106, -48.02
        %v4619 = vmul.f32 %v4107, -48.02
        %v4620 = vmul.f32 %v4108, -48.02
        %v4621 = vmul.f32 %v4109, -48.02
        %v4622 = vmul.f32 %v4110, -48.02
        %v4623 = vmul.f32 %v4111, -48.02
        %v4624 = vmul.f32 %v4112, -48.02
        %v4625 = vmul.f32 %v4113, -48.02
        %v4626 = vmul.f32 %v4114, -48.02
        %v4627 = vmul.f32 %v4115, -48.02
        %v4628 = vmul.f32 %v4116, -48.02
        %v4629 = vmul.f32 %v4117, -48.02
        %v4630 = vmul.f32 %v4118, -48.02
        %v4631 = vmul.f32 %v4119, -48.02
        %v4632 = vmul.f32 %v4120, -48.02
        %v4633 = vmul.f32 %v4121, -48.02
        %v4634 = vmul.f32 %v4122, -48.02
        %v4635 = vmul.f32 %v4123, -48.02
        %v4636 = vmul.f32 %v4124, -48.02
        %v4637 = vmul.f32 %v4125, -48.02
        %v4638 = vmul.f32 %v4126, -48.02
        %v4639 = vmul.f32 %v4127, -48.02
        %v4640 = vmul.f32 %v4128, -48.02
        %v4641 = vmul.f32 %v4129, -48.02
        %v4642 = vmul.f32 %v4130, -48.02
        %v4643 = vmul.f32 %v4131, -48.02
        %v4644 = vmul.f32 %v4132, -48.02
        %v4645 = vmul.f32 %v4133, -48.02
        %v4646 = vmul.f32 %v4134, -48.02
        %v4647 = vmul.f32 %v4135, -48.02
        %v4648 = vmul.f32 %v4136, -48.02
        %v4649 = vmul.f32 %v4137, -48.02
        %v4650 = vmul.f32 %v4138, -48.02
        %v4651 = vmul.f32 %v4139, -48.02
        %v4652 = vmul.f32 %v4140, -48.02
        %v4653 = vmul.f32 %v4141, -48.02
        %v4654 = vmul.f32 %v4142, -48.02
        %v4655 = vmul.f32 %v4143, -48.02
        %v4656 = vmul.f32 %v4144, -48.02
        %v4657 = vmul.f32 %v4145, -48.02
        %v4658 = vmul.f32 %v4146, -48.02
        %v4659 = vmul.f32 %v4147, -48.02
        %v4660 = vmul.f32 %v4148, -48.02
        %v4661 = vmul.f32 %v4149, -48.02
        %v4662 = vmul.f32 %v4150, -48.02
        %v4663 = vmul.f32 %v4151, -48.02
        %v4664 = vmul.f32 %v4152, -48.02
        %v4665 = vmul.f32 %v4153, -48.02
        %v4666 = vmul.f32 %v4154, -48.02
        %v4667 = vmul.f32 %v4155, -48.02
        %v4668 = vmul.f32 %v4156, -48.02
        %v4669 = vmul.f32 %v4157, -48.02
        %v4670 = vmul.f32 %v4158, -48.02
        %v4671 = vmul.f32 %v4159, -48.02
        %v4672 = vmul.f32 %v4160, -48.02
        %v4673 = vmul.f32 %v4161, -48.02
        %v4674 = vmul.f32 %v4162, -48.02
        %v4675 = vmul.f32 %v4163, -48.02
        %v4676 = vmul.f32 %v4164, -48.02
        %v4677 = vmul.f32 %v4165, -48.02
        %v4678 = vmul.f32 %v4166, -48.02
        %v4679 = vmul.f32 %v4167, -48.02
        %v4680 = vmul.f32 %v4168, -48.02
        %v4681 = vmul.f32 %v4169, -48.02
        %v4682 = vmul.f32 %v4170, -48.02
        %v4683 = vmul.f32 %v4171, -48.02
        %v4684 = vmul.f32 %v4172, -48.02
        %v4685 = vmul.f32 %v4173, -48.02
        %v4686 = vmul.f32 %v4174, -48.02
        %v4687 = vmul.f32 %v4175, -48.02
        %v4688 = vmul.f32 %v4176, -48.02
        %v4689 = vmul.f32 %v4177, -48.02
        %v4690 = vmul.f32 %v4178, -48.02
        %v4691 = vmul.f32 %v4179, -48.02
        %v4692 = vmul.f32 %v4180, -48.02
        %v4693 = vmul.f32 %v4181, -48.02
        %v4694 = vmul.f32 %v4182, -48.02
        %v4695 = vmul.f32 %v4183, -48.02
        %v4696 = vmul.f32 %v4184, -48.02
        %v4697 = vmul.f32 %v4185, -48.02
        %v4698 = vmul.f32 %v4186, -48.02
        %v4699 = vmul.f32 %v4187, -48.02
        %v4700 = vmul.f32 %v4188, -48.02
        %v4701 = vmul.f32 %v4189, -48.02
        %v4702 = vmul.f32 %v4190, -48.02
        %v4703 = vmul.f32 %v4191, -48.02
        %v4704 = vmul.f32 %v4192, -48.02
        %v4705 = vmul.f32 %v4193, -48.02
        %v4706 = vmul.f32 %v4194, -48.02
        %v4707 = vmul.f32 %v4195, -48.02
        %v4708 = vmul.f32 %v4196, -48.02
        %v4709 = vmul.f32 %v4197, -48.02
        %v4710 = vmul.f32 %v4198, -48.02
        %v4711 = vmul.f32 %v4199, -48.02
        %v4712 = vmul.f32 %v4200, -48.02
        %v4713 = vmul.f32 %v4201, -48.02
        %v4714 = vmul.f32 %v4202, -48.02
        %v4715 = vmul.f32 %v4203, -48.02
        %v4716 = vmul.f32 %v4204, -48.02
        %v4717 = vmul.f32 %v4205, -48.02
        %v4718 = vmul.f32 %v4206, -48.02
        %v4719 = vmul.f32 %v4207, -48.02
        %v4720 = vmul.f32 %v4208, -48.02
        %v4721 = vmul.f32 %v4209, -48.02
        %v4722 = vmul.f32 %v4210, -48.02
        %v4723 = vmul.f32 %v4211, -48.02
        %v4724 = vmul.f32 %v4212, -48.02
        %v4725 = vmul.f32 %v4213, -48.02
        %v4726 = vmul.f32 %v4214, -48.02
        %v4727 = vmul.f32 %v4215, -48.02
        %v4728 = vmul.f32 %v4216, -48.02
        %v4729 = vmul.f32 %v4217, -48.02
        %v4730 = vmul.f32 %v4218, -48.02
        %v4731 = vmul.f32 %v4219, -48.02
        %v4732 = vmul.f32 %v4220, -48.02
        %v4733 = vmul.f32 %v4221, -48.02
        %v4734 = vmul.f32 %v4222, -48.02
        %v4735 = vmul.f32 %v4223, -48.02
        %v4736 = vmul.f32 %v4224, -48.02
        %v4737 = vmul.f32 %v4225, -48.02
        %v4738 = vmul.f32 %v4226, -48.02
        %v4739 = vmul.f32 %v4227, -48.02
        %v4740 = vmul.f32 %v4228, -48.02
        %v4741 = vmul.f32 %v4229, -48.02
        %v4742 = vmul.f32 %v4230, -48.02
        %v4743 = vmul.f32 %v4231, -48.02
        %v4744 = vmul.f32 %v4232, -48.02
        %v4745 = vmul.f32 %v4233, -48.02
        %v4746 = vmul.f32 %v4234, -48.02
        %v4747 = vmul.f32 %v4235, -48.02
        %v4748 = vmul.f32 %v4236, -48.02
        %v4749 = vmul.f32 %v4237, -48.02
        %v4750 = vmul.f32 %v4238, -48.02
        %v4751 = vmul.f32 %v4239, 1.442695
        %v4752 = vpow.pop %v4751
        %v4753 = vmul.f32 %v4240, 1.442695
        %v4754 = vpow.pop %v4753
        %v4755 = vmul.f32 %v4241, 1.442695
        %v4756 = vpow.pop %v4755
        %v4757 = vmul.f32 %v4242, 1.442695
        %v4758 = vpow.pop %v4757
        %v4759 = vmul.f32 %v4243, 1.442695
        %v4760 = vpow.pop %v4759
        %v4761 = vmul.f32 %v4244, 1.442695
        %v4762 = vpow.pop %v4761
        %v4763 = vmul.f32 %v4245, 1.442695
        %v4764 = vpow.pop %v4763
        %v4765 = vmul.f32 %v4246, 1.442695
        %v4766 = vpow.pop %v4765
        %v4767 = vmul.f32 %v4247, 1.442695
        %v4768 = vpow.pop %v4767
        %v4769 = vmul.f32 %v4248, 1.442695
        %v4770 = vpow.pop %v4769
        %v4771 = vmul.f32 %v4249, 1.442695
        %v4772 = vpow.pop %v4771
        %v4773 = vmul.f32 %v4250, 1.442695
        %v4774 = vpow.pop %v4773
        %v4775 = vmul.f32 %v4251, 1.442695
        %v4776 = vpow.pop %v4775
        %v4777 = vmul.f32 %v4252, 1.442695
        %v4778 = vpow.pop %v4777
        %v4779 = vmul.f32 %v4253, 1.442695
        %v4780 = vpow.pop %v4779
        %v4781 = vmul.f32 %v4254, 1.442695
        %v4782 = vpow.pop %v4781
        %v4783 = vmul.f32 %v4255, 1.442695
        %v4784 = vpow.pop %v4783
        %v4785 = vmul.f32 %v4256, 1.442695
        %v4786 = vpow.pop %v4785
        %v4787 = vmul.f32 %v4257, 1.442695
        %v4788 = vpow.pop %v4787
        %v4789 = vmul.f32 %v4258, 1.442695
        %v4790 = vpow.pop %v4789
        %v4791 = vmul.f32 %v4259, 1.442695
        %v4792 = vpow.pop %v4791
        %v4793 = vmul.f32 %v4260, 1.442695
        %v4794 = vpow.pop %v4793
        %v4795 = vmul.f32 %v4261, 1.442695
        %v4796 = vpow.pop %v4795
        %v4797 = vmul.f32 %v4262, 1.442695
        %v4798 = vpow.pop %v4797
        %v4799 = vmul.f32 %v4263, 1.442695
        %v4800 = vpow.pop %v4799
        %v4801 = vmul.f32 %v4264, 1.442695
        %v4802 = vpow.pop %v4801
        %v4803 = vmul.f32 %v4265, 1.442695
        %v4804 = vpow.pop %v4803
        %v4805 = vmul.f32 %v4266, 1.442695
        %v4806 = vpow.pop %v4805
        %v4807 = vmul.f32 %v4267, 1.442695
        %v4808 = vpow.pop %v4807
        %v4809 = vmul.f32 %v4268, 1.442695
        %v4810 = vpow.pop %v4809
        %v4811 = vmul.f32 %v4269, 1.442695
        %v4812 = vpow.pop %v4811
        %v4813 = vmul.f32 %v4270, 1.442695
        %v4814 = vpow.pop %v4813
        %v4815 = vmul.f32 %v4271, 1.442695
        %v4816 = vpow.pop %v4815
        %v4817 = vmul.f32 %v4272, 1.442695
        %v4818 = vpow.pop %v4817
        %v4819 = vmul.f32 %v4273, 1.442695
        %v4820 = vpow.pop %v4819
        %v4821 = vmul.f32 %v4274, 1.442695
        %v4822 = vpow.pop %v4821
        %v4823 = vmul.f32 %v4275, 1.442695
        %v4824 = vpow.pop %v4823
        %v4825 = vmul.f32 %v4276, 1.442695
        %v4826 = vpow.pop %v4825
        %v4827 = vmul.f32 %v4277, 1.442695
        %v4828 = vpow.pop %v4827
        %v4829 = vmul.f32 %v4278, 1.442695
        %v4830 = vpow.pop %v4829
        %v4831 = vmul.f32 %v4279, 1.442695
        %v4832 = vpow.pop %v4831
        %v4833 = vmul.f32 %v4280, 1.442695
        %v4834 = vpow.pop %v4833
        %v4835 = vmul.f32 %v4281, 1.442695
        %v4836 = vpow.pop %v4835
        %v4837 = vmul.f32 %v4282, 1.442695
        %v4838 = vpow.pop %v4837
        %v4839 = vmul.f32 %v4283, 1.442695
        %v4840 = vpow.pop %v4839
        %v4841 = vmul.f32 %v4284, 1.442695
        %v4842 = vpow.pop %v4841
        %v4843 = vmul.f32 %v4285, 1.442695
        %v4844 = vpow.pop %v4843
        %v4845 = vmul.f32 %v4286, 1.442695
        %v4846 = vpow.pop %v4845
        %v4847 = vmul.f32 %v4287, 1.442695
        %v4848 = vpow.pop %v4847
        %v4849 = vmul.f32 %v4288, 1.442695
        %v4850 = vpow.pop %v4849
        %v4851 = vmul.f32 %v4289, 1.442695
        %v4852 = vpow.pop %v4851
        %v4853 = vmul.f32 %v4290, 1.442695
        %v4854 = vpow.pop %v4853
        %v4855 = vmul.f32 %v4291, 1.442695
        %v4856 = vpow.pop %v4855
        %v4857 = vmul.f32 %v4292, 1.442695
        %v4858 = vpow.pop %v4857
        %v4859 = vmul.f32 %v4293, 1.442695
        %v4860 = vpow.pop %v4859
        %v4861 = vmul.f32 %v4294, 1.442695
        %v4862 = vpow.pop %v4861
        %v4863 = vmul.f32 %v4295, 1.442695
        %v4864 = vpow.pop %v4863
        %v4865 = vmul.f32 %v4296, 1.442695
        %v4866 = vpow.pop %v4865
        %v4867 = vmul.f32 %v4297, 1.442695
        %v4868 = vpow.pop %v4867
        %v4869 = vmul.f32 %v4298, 1.442695
        %v4870 = vpow.pop %v4869
        %v4871 = vmul.f32 %v4299, 1.442695
        %v4872 = vpow.pop %v4871
        %v4873 = vmul.f32 %v4300, 1.442695
        %v4874 = vpow.pop %v4873
        %v4875 = vmul.f32 %v4301, 1.442695
        %v4876 = vpow.pop %v4875
        %v4877 = vmul.f32 %v4302, 1.442695
        %v4878 = vpow.pop %v4877
        %v4879 = vmul.f32 %v4303, 1.442695
        %v4880 = vpow.pop %v4879
        %v4881 = vmul.f32 %v4304, 1.442695
        %v4882 = vpow.pop %v4881
        %v4883 = vmul.f32 %v4305, 1.442695
        %v4884 = vpow.pop %v4883
        %v4885 = vmul.f32 %v4306, 1.442695
        %v4886 = vpow.pop %v4885
        %v4887 = vmul.f32 %v4307, 1.442695
        %v4888 = vpow.pop %v4887
        %v4889 = vmul.f32 %v4308, 1.442695
        %v4890 = vpow.pop %v4889
        %v4891 = vmul.f32 %v4309, 1.442695
        %v4892 = vpow.pop %v4891
        %v4893 = vmul.f32 %v4310, 1.442695
        %v4894 = vpow.pop %v4893
        %v4895 = vmul.f32 %v4311, 1.442695
        %v4896 = vpow.pop %v4895
        %v4897 = vmul.f32 %v4312, 1.442695
        %v4898 = vpow.pop %v4897
        %v4899 = vmul.f32 %v4313, 1.442695
        %v4900 = vpow.pop %v4899
        %v4901 = vmul.f32 %v4314, 1.442695
        %v4902 = vpow.pop %v4901
        %v4903 = vmul.f32 %v4315, 1.442695
        %v4904 = vpow.pop %v4903
        %v4905 = vmul.f32 %v4316, 1.442695
        %v4906 = vpow.pop %v4905
        %v4907 = vmul.f32 %v4317, 1.442695
        %v4908 = vpow.pop %v4907
        %v4909 = vmul.f32 %v4318, 1.442695
        %v4910 = vpow.pop %v4909
        %v4911 = vmul.f32 %v4319, 1.442695
        %v4912 = vpow.pop %v4911
        %v4913 = vmul.f32 %v4320, 1.442695
        %v4914 = vpow.pop %v4913
        %v4915 = vmul.f32 %v4321, 1.442695
        %v4916 = vpow.pop %v4915
        %v4917 = vmul.f32 %v4322, 1.442695
        %v4918 = vpow.pop %v4917
        %v4919 = vmul.f32 %v4323, 1.442695
        %v4920 = vpow.pop %v4919
        %v4921 = vmul.f32 %v4324, 1.442695
        %v4922 = vpow.pop %v4921
        %v4923 = vmul.f32 %v4325, 1.442695
        %v4924 = vpow.pop %v4923
        %v4925 = vmul.f32 %v4326, 1.442695
        %v4926 = vpow.pop %v4925
        %v4927 = vmul.f32 %v4327, 1.442695
        %v4928 = vpow.pop %v4927
        %v4929 = vmul.f32 %v4328, 1.442695
        %v4930 = vpow.pop %v4929
        %v4931 = vmul.f32 %v4329, 1.442695
        %v4932 = vpow.pop %v4931
        %v4933 = vmul.f32 %v4330, 1.442695
        %v4934 = vpow.pop %v4933
        %v4935 = vmul.f32 %v4331, 1.442695
        %v4936 = vpow.pop %v4935
        %v4937 = vmul.f32 %v4332, 1.442695
        %v4938 = vpow.pop %v4937
        %v4939 = vmul.f32 %v4333, 1.442695
        %v4940 = vpow.pop %v4939
        %v4941 = vmul.f32 %v4334, 1.442695
        %v4942 = vpow.pop %v4941
        %v4943 = vmul.f32 %v4335, 1.442695
        %v4944 = vpow.pop %v4943
        %v4945 = vmul.f32 %v4336, 1.442695
        %v4946 = vpow.pop %v4945
        %v4947 = vmul.f32 %v4337, 1.442695
        %v4948 = vpow.pop %v4947
        %v4949 = vmul.f32 %v4338, 1.442695
        %v4950 = vpow.pop %v4949
        %v4951 = vmul.f32 %v4339, 1.442695
        %v4952 = vpow.pop %v4951
        %v4953 = vmul.f32 %v4340, 1.442695
        %v4954 = vpow.pop %v4953
        %v4955 = vmul.f32 %v4341, 1.442695
        %v4956 = vpow.pop %v4955
        %v4957 = vmul.f32 %v4342, 1.442695
        %v4958 = vpow.pop %v4957
        %v4959 = vmul.f32 %v4343, 1.442695
        %v4960 = vpow.pop %v4959
        %v4961 = vmul.f32 %v4344, 1.442695
        %v4962 = vpow.pop %v4961
        %v4963 = vmul.f32 %v4345, 1.442695
        %v4964 = vpow.pop %v4963
        %v4965 = vmul.f32 %v4346, 1.442695
        %v4966 = vpow.pop %v4965
        %v4967 = vmul.f32 %v4347, 1.442695
        %v4968 = vpow.pop %v4967
        %v4969 = vmul.f32 %v4348, 1.442695
        %v4970 = vpow.pop %v4969
        %v4971 = vmul.f32 %v4349, 1.442695
        %v4972 = vpow.pop %v4971
        %v4973 = vmul.f32 %v4350, 1.442695
        %v4974 = vpow.pop %v4973
        %v4975 = vmul.f32 %v4351, 1.442695
        %v4976 = vpow.pop %v4975
        %v4977 = vmul.f32 %v4352, 1.442695
        %v4978 = vpow.pop %v4977
        %v4979 = vmul.f32 %v4353, 1.442695
        %v4980 = vpow.pop %v4979
        %v4981 = vmul.f32 %v4354, 1.442695
        %v4982 = vpow.pop %v4981
        %v4983 = vmul.f32 %v4355, 1.442695
        %v4984 = vpow.pop %v4983
        %v4985 = vmul.f32 %v4356, 1.442695
        %v4986 = vpow.pop %v4985
        %v4987 = vmul.f32 %v4357, 1.442695
        %v4988 = vpow.pop %v4987
        %v4989 = vmul.f32 %v4358, 1.442695
        %v4990 = vpow.pop %v4989
        %v4991 = vmul.f32 %v4359, 1.442695
        %v4992 = vpow.pop %v4991
        %v4993 = vmul.f32 %v4360, 1.442695
        %v4994 = vpow.pop %v4993
        %v4995 = vmul.f32 %v4361, 1.442695
        %v4996 = vpow.pop %v4995
        %v4997 = vmul.f32 %v4362, 1.442695
        %v4998 = vpow.pop %v4997
        %v4999 = vmul.f32 %v4363, 1.442695
        %v5000 = vpow.pop %v4999
        %v5001 = vmul.f32 %v4364, 1.442695
        %v5002 = vpow.pop %v5001
        %v5003 = vmul.f32 %v4365, 1.442695
        %v5004 = vpow.pop %v5003
        %v5005 = vmul.f32 %v4366, 1.442695
        %v5006 = vpow.pop %v5005
        %v5007 = vmul.f32 %v4367, 1.442695
        %v5008 = vpow.pop %v5007
        %v5009 = vmul.f32 %v4368, 1.442695
        %v5010 = vpow.pop %v5009
        %v5011 = vmul.f32 %v4369, 1.442695
        %v5012 = vpow.pop %v5011
        %v5013 = vmul.f32 %v4370, 1.442695
        %v5014 = vpow.pop %v5013
        %v5015 = vmul.f32 %v4371, 1.442695
        %v5016 = vpow.pop %v5015
        %v5017 = vmul.f32 %v4372, 1.442695
        %v5018 = vpow.pop %v5017
        %v5019 = vmul.f32 %v4373, 1.442695
        %v5020 = vpow.pop %v5019
        %v5021 = vmul.f32 %v4374, 1.442695
        %v5022 = vpow.pop %v5021
        %v5023 = vmul.f32 %v4375, 1.442695
        %v5024 = vpow.pop %v5023
        %v5025 = vmul.f32 %v4376, 1.442695
        %v5026 = vpow.pop %v5025
        %v5027 = vmul.f32 %v4377, 1.442695
        %v5028 = vpow.pop %v5027
        %v5029 = vmul.f32 %v4378, 1.442695
        %v5030 = vpow.pop %v5029
        %v5031 = vmul.f32 %v4379, 1.442695
        %v5032 = vpow.pop %v5031
        %v5033 = vmul.f32 %v4380, 1.442695
        %v5034 = vpow.pop %v5033
        %v5035 = vmul.f32 %v4381, 1.442695
        %v5036 = vpow.pop %v5035
        %v5037 = vmul.f32 %v4382, 1.442695
        %v5038 = vpow.pop %v5037
        %v5039 = vmul.f32 %v4383, 1.442695
        %v5040 = vpow.pop %v5039
        %v5041 = vmul.f32 %v4384, 1.442695
        %v5042 = vpow.pop %v5041
        %v5043 = vmul.f32 %v4385, 1.442695
        %v5044 = vpow.pop %v5043
        %v5045 = vmul.f32 %v4386, 1.442695
        %v5046 = vpow.pop %v5045
        %v5047 = vmul.f32 %v4387, 1.442695
        %v5048 = vpow.pop %v5047
        %v5049 = vmul.f32 %v4388, 1.442695
        %v5050 = vpow.pop %v5049
        %v5051 = vmul.f32 %v4389, 1.442695
        %v5052 = vpow.pop %v5051
        %v5053 = vmul.f32 %v4390, 1.442695
        %v5054 = vpow.pop %v5053
        %v5055 = vmul.f32 %v4391, 1.442695
        %v5056 = vpow.pop %v5055
        %v5057 = vmul.f32 %v4392, 1.442695
        %v5058 = vpow.pop %v5057
        %v5059 = vmul.f32 %v4393, 1.442695
        %v5060 = vpow.pop %v5059
        %v5061 = vmul.f32 %v4394, 1.442695
        %v5062 = vpow.pop %v5061
        %v5063 = vmul.f32 %v4395, 1.442695
        %v5064 = vpow.pop %v5063
        %v5065 = vmul.f32 %v4396, 1.442695
        %v5066 = vpow.pop %v5065
        %v5067 = vmul.f32 %v4397, 1.442695
        %v5068 = vpow.pop %v5067
        %v5069 = vmul.f32 %v4398, 1.442695
        %v5070 = vpow.pop %v5069
        %v5071 = vmul.f32 %v4399, 1.442695
        %v5072 = vpow.pop %v5071
        %v5073 = vmul.f32 %v4400, 1.442695
        %v5074 = vpow.pop %v5073
        %v5075 = vmul.f32 %v4401, 1.442695
        %v5076 = vpow.pop %v5075
        %v5077 = vmul.f32 %v4402, 1.442695
        %v5078 = vpow.pop %v5077
        %v5079 = vmul.f32 %v4403, 1.442695
        %v5080 = vpow.pop %v5079
        %v5081 = vmul.f32 %v4404, 1.442695
        %v5082 = vpow.pop %v5081
        %v5083 = vmul.f32 %v4405, 1.442695
        %v5084 = vpow.pop %v5083
        %v5085 = vmul.f32 %v4406, 1.442695
        %v5086 = vpow.pop %v5085
        %v5087 = vmul.f32 %v4407, 1.442695
        %v5088 = vpow.pop %v5087
        %v5089 = vmul.f32 %v4408, 1.442695
        %v5090 = vpow.pop %v5089
        %v5091 = vmul.f32 %v4409, 1.442695
        %v5092 = vpow.pop %v5091
        %v5093 = vmul.f32 %v4410, 1.442695
        %v5094 = vpow.pop %v5093
        %v5095 = vmul.f32 %v4411, 1.442695
        %v5096 = vpow.pop %v5095
        %v5097 = vmul.f32 %v4412, 1.442695
        %v5098 = vpow.pop %v5097
        %v5099 = vmul.f32 %v4413, 1.442695
        %v5100 = vpow.pop %v5099
        %v5101 = vmul.f32 %v4414, 1.442695
        %v5102 = vpow.pop %v5101
        %v5103 = vmul.f32 %v4415, 1.442695
        %v5104 = vpow.pop %v5103
        %v5105 = vmul.f32 %v4416, 1.442695
        %v5106 = vpow.pop %v5105
        %v5107 = vmul.f32 %v4417, 1.442695
        %v5108 = vpow.pop %v5107
        %v5109 = vmul.f32 %v4418, 1.442695
        %v5110 = vpow.pop %v5109
        %v5111 = vmul.f32 %v4419, 1.442695
        %v5112 = vpow.pop %v5111
        %v5113 = vmul.f32 %v4420, 1.442695
        %v5114 = vpow.pop %v5113
        %v5115 = vmul.f32 %v4421, 1.442695
        %v5116 = vpow.pop %v5115
        %v5117 = vmul.f32 %v4422, 1.442695
        %v5118 = vpow.pop %v5117
        %v5119 = vmul.f32 %v4423, 1.442695
        %v5120 = vpow.pop %v5119
        %v5121 = vmul.f32 %v4424, 1.442695
        %v5122 = vpow.pop %v5121
        %v5123 = vmul.f32 %v4425, 1.442695
        %v5124 = vpow.pop %v5123
        %v5125 = vmul.f32 %v4426, 1.442695
        %v5126 = vpow.pop %v5125
        %v5127 = vmul.f32 %v4427, 1.442695
        %v5128 = vpow.pop %v5127
        %v5129 = vmul.f32 %v4428, 1.442695
        %v5130 = vpow.pop %v5129
        %v5131 = vmul.f32 %v4429, 1.442695
        %v5132 = vpow.pop %v5131
        %v5133 = vmul.f32 %v4430, 1.442695
        %v5134 = vpow.pop %v5133
        %v5135 = vmul.f32 %v4431, 1.442695
        %v5136 = vpow.pop %v5135
        %v5137 = vmul.f32 %v4432, 1.442695
        %v5138 = vpow.pop %v5137
        %v5139 = vmul.f32 %v4433, 1.442695
        %v5140 = vpow.pop %v5139
        %v5141 = vmul.f32 %v4434, 1.442695
        %v5142 = vpow.pop %v5141
        %v5143 = vmul.f32 %v4435, 1.442695
        %v5144 = vpow.pop %v5143
        %v5145 = vmul.f32 %v4436, 1.442695
        %v5146 = vpow.pop %v5145
        %v5147 = vmul.f32 %v4437, 1.442695
        %v5148 = vpow.pop %v5147
        %v5149 = vmul.f32 %v4438, 1.442695
        %v5150 = vpow.pop %v5149
        %v5151 = vmul.f32 %v4439, 1.442695
        %v5152 = vpow.pop %v5151
        %v5153 = vmul.f32 %v4440, 1.442695
        %v5154 = vpow.pop %v5153
        %v5155 = vmul.f32 %v4441, 1.442695
        %v5156 = vpow.pop %v5155
        %v5157 = vmul.f32 %v4442, 1.442695
        %v5158 = vpow.pop %v5157
        %v5159 = vmul.f32 %v4443, 1.442695
        %v5160 = vpow.pop %v5159
        %v5161 = vmul.f32 %v4444, 1.442695
        %v5162 = vpow.pop %v5161
        %v5163 = vmul.f32 %v4445, 1.442695
        %v5164 = vpow.pop %v5163
        %v5165 = vmul.f32 %v4446, 1.442695
        %v5166 = vpow.pop %v5165
        %v5167 = vmul.f32 %v4447, 1.442695
        %v5168 = vpow.pop %v5167
        %v5169 = vmul.f32 %v4448, 1.442695
        %v5170 = vpow.pop %v5169
        %v5171 = vmul.f32 %v4449, 1.442695
        %v5172 = vpow.pop %v5171
        %v5173 = vmul.f32 %v4450, 1.442695
        %v5174 = vpow.pop %v5173
        %v5175 = vmul.f32 %v4451, 1.442695
        %v5176 = vpow.pop %v5175
        %v5177 = vmul.f32 %v4452, 1.442695
        %v5178 = vpow.pop %v5177
        %v5179 = vmul.f32 %v4453, 1.442695
        %v5180 = vpow.pop %v5179
        %v5181 = vmul.f32 %v4454, 1.442695
        %v5182 = vpow.pop %v5181
        %v5183 = vmul.f32 %v4455, 1.442695
        %v5184 = vpow.pop %v5183
        %v5185 = vmul.f32 %v4456, 1.442695
        %v5186 = vpow.pop %v5185
        %v5187 = vmul.f32 %v4457, 1.442695
        %v5188 = vpow.pop %v5187
        %v5189 = vmul.f32 %v4458, 1.442695
        %v5190 = vpow.pop %v5189
        %v5191 = vmul.f32 %v4459, 1.442695
        %v5192 = vpow.pop %v5191
        %v5193 = vmul.f32 %v4460, 1.442695
        %v5194 = vpow.pop %v5193
        %v5195 = vmul.f32 %v4461, 1.442695
        %v5196 = vpow.pop %v5195
        %v5197 = vmul.f32 %v4462, 1.442695
        %v5198 = vpow.pop %v5197
        %v5199 = vmul.f32 %v4463, 1.442695
        %v5200 = vpow.pop %v5199
        %v5201 = vmul.f32 %v4464, 1.442695
        %v5202 = vpow.pop %v5201
        %v5203 = vmul.f32 %v4465, 1.442695
        %v5204 = vpow.pop %v5203
        %v5205 = vmul.f32 %v4466, 1.442695
        %v5206 = vpow.pop %v5205
        %v5207 = vmul.f32 %v4467, 1.442695
        %v5208 = vpow.pop %v5207
        %v5209 = vmul.f32 %v4468, 1.442695
        %v5210 = vpow.pop %v5209
        %v5211 = vmul.f32 %v4469, 1.442695
        %v5212 = vpow.pop %v5211
        %v5213 = vmul.f32 %v4470, 1.442695
        %v5214 = vpow.pop %v5213
        %v5215 = vmul.f32 %v4471, 1.442695
        %v5216 = vpow.pop %v5215
        %v5217 = vmul.f32 %v4472, 1.442695
        %v5218 = vpow.pop %v5217
        %v5219 = vmul.f32 %v4473, 1.442695
        %v5220 = vpow.pop %v5219
        %v5221 = vmul.f32 %v4474, 1.442695
        %v5222 = vpow.pop %v5221
        %v5223 = vmul.f32 %v4475, 1.442695
        %v5224 = vpow.pop %v5223
        %v5225 = vmul.f32 %v4476, 1.442695
        %v5226 = vpow.pop %v5225
        %v5227 = vmul.f32 %v4477, 1.442695
        %v5228 = vpow.pop %v5227
        %v5229 = vmul.f32 %v4478, 1.442695
        %v5230 = vpow.pop %v5229
        %v5231 = vmul.f32 %v4479, 1.442695
        %v5232 = vpow.pop %v5231
        %v5233 = vmul.f32 %v4480, 1.442695
        %v5234 = vpow.pop %v5233
        %v5235 = vmul.f32 %v4481, 1.442695
        %v5236 = vpow.pop %v5235
        %v5237 = vmul.f32 %v4482, 1.442695
        %v5238 = vpow.pop %v5237
        %v5239 = vmul.f32 %v4483, 1.442695
        %v5240 = vpow.pop %v5239
        %v5241 = vmul.f32 %v4484, 1.442695
        %v5242 = vpow.pop %v5241
        %v5243 = vmul.f32 %v4485, 1.442695
        %v5244 = vpow.pop %v5243
        %v5245 = vmul.f32 %v4486, 1.442695
        %v5246 = vpow.pop %v5245
        %v5247 = vmul.f32 %v4487, 1.442695
        %v5248 = vpow.pop %v5247
        %v5249 = vmul.f32 %v4488, 1.442695
        %v5250 = vpow.pop %v5249
        %v5251 = vmul.f32 %v4489, 1.442695
        %v5252 = vpow.pop %v5251
        %v5253 = vmul.f32 %v4490, 1.442695
        %v5254 = vpow.pop %v5253
        %v5255 = vmul.f32 %v4491, 1.442695
        %v5256 = vpow.pop %v5255
        %v5257 = vmul.f32 %v4492, 1.442695
        %v5258 = vpow.pop %v5257
        %v5259 = vmul.f32 %v4493, 1.442695
        %v5260 = vpow.pop %v5259
        %v5261 = vmul.f32 %v4494, 1.442695
        %v5262 = vpow.pop %v5261
        %v5263 = vmul.f32 %v4495, 1.442695
        %v5264 = vpow.pop %v5263
        %v5265 = vmul.f32 %v4496, 1.442695
        %v5266 = vpow.pop %v5265
        %v5267 = vmul.f32 %v4497, 1.442695
        %v5268 = vpow.pop %v5267
        %v5269 = vmul.f32 %v4498, 1.442695
        %v5270 = vpow.pop %v5269
        %v5271 = vmul.f32 %v4499, 1.442695
        %v5272 = vpow.pop %v5271
        %v5273 = vmul.f32 %v4500, 1.442695
        %v5274 = vpow.pop %v5273
        %v5275 = vmul.f32 %v4501, 1.442695
        %v5276 = vpow.pop %v5275
        %v5277 = vmul.f32 %v4502, 1.442695
        %v5278 = vpow.pop %v5277
        %v5279 = vmul.f32 %v4503, 1.442695
        %v5280 = vpow.pop %v5279
        %v5281 = vmul.f32 %v4504, 1.442695
        %v5282 = vpow.pop %v5281
        %v5283 = vmul.f32 %v4505, 1.442695
        %v5284 = vpow.pop %v5283
        %v5285 = vmul.f32 %v4506, 1.442695
        %v5286 = vpow.pop %v5285
        %v5287 = vmul.f32 %v4507, 1.442695
        %v5288 = vpow.pop %v5287
        %v5289 = vmul.f32 %v4508, 1.442695
        %v5290 = vpow.pop %v5289
        %v5291 = vmul.f32 %v4509, 1.442695
        %v5292 = vpow.pop %v5291
        %v5293 = vmul.f32 %v4510, 1.442695
        %v5294 = vpow.pop %v5293
        %v5295 = vmul.f32 %v4511, 1.442695
        %v5296 = vpow.pop %v5295
        %v5297 = vmul.f32 %v4512, 1.442695
        %v5298 = vpow.pop %v5297
        %v5299 = vmul.f32 %v4513, 1.442695
        %v5300 = vpow.pop %v5299
        %v5301 = vmul.f32 %v4514, 1.442695
        %v5302 = vpow.pop %v5301
        %v5303 = vmul.f32 %v4515, 1.442695
        %v5304 = vpow.pop %v5303
        %v5305 = vmul.f32 %v4516, 1.442695
        %v5306 = vpow.pop %v5305
        %v5307 = vmul.f32 %v4517, 1.442695
        %v5308 = vpow.pop %v5307
        %v5309 = vmul.f32 %v4518, 1.442695
        %v5310 = vpow.pop %v5309
        %v5311 = vmul.f32 %v4519, 1.442695
        %v5312 = vpow.pop %v5311
        %v5313 = vmul.f32 %v4520, 1.442695
        %v5314 = vpow.pop %v5313
        %v5315 = vmul.f32 %v4521, 1.442695
        %v5316 = vpow.pop %v5315
        %v5317 = vmul.f32 %v4522, 1.442695
        %v5318 = vpow.pop %v5317
        %v5319 = vmul.f32 %v4523, 1.442695
        %v5320 = vpow.pop %v5319
        %v5321 = vmul.f32 %v4524, 1.442695
        %v5322 = vpow.pop %v5321
        %v5323 = vmul.f32 %v4525, 1.442695
        %v5324 = vpow.pop %v5323
        %v5325 = vmul.f32 %v4526, 1.442695
        %v5326 = vpow.pop %v5325
        %v5327 = vmul.f32 %v4527, 1.442695
        %v5328 = vpow.pop %v5327
        %v5329 = vmul.f32 %v4528, 1.442695
        %v5330 = vpow.pop %v5329
        %v5331 = vmul.f32 %v4529, 1.442695
        %v5332 = vpow.pop %v5331
        %v5333 = vmul.f32 %v4530, 1.442695
        %v5334 = vpow.pop %v5333
        %v5335 = vmul.f32 %v4531, 1.442695
        %v5336 = vpow.pop %v5335
        %v5337 = vmul.f32 %v4532, 1.442695
        %v5338 = vpow.pop %v5337
        %v5339 = vmul.f32 %v4533, 1.442695
        %v5340 = vpow.pop %v5339
        %v5341 = vmul.f32 %v4534, 1.442695
        %v5342 = vpow.pop %v5341
        %v5343 = vmul.f32 %v4535, 1.442695
        %v5344 = vpow.pop %v5343
        %v5345 = vmul.f32 %v4536, 1.442695
        %v5346 = vpow.pop %v5345
        %v5347 = vmul.f32 %v4537, 1.442695
        %v5348 = vpow.pop %v5347
        %v5349 = vmul.f32 %v4538, 1.442695
        %v5350 = vpow.pop %v5349
        %v5351 = vmul.f32 %v4539, 1.442695
        %v5352 = vpow.pop %v5351
        %v5353 = vmul.f32 %v4540, 1.442695
        %v5354 = vpow.pop %v5353
        %v5355 = vmul.f32 %v4541, 1.442695
        %v5356 = vpow.pop %v5355
        %v5357 = vmul.f32 %v4542, 1.442695
        %v5358 = vpow.pop %v5357
        %v5359 = vmul.f32 %v4543, 1.442695
        %v5360 = vpow.pop %v5359
        %v5361 = vmul.f32 %v4544, 1.442695
        %v5362 = vpow.pop %v5361
        %v5363 = vmul.f32 %v4545, 1.442695
        %v5364 = vpow.pop %v5363
        %v5365 = vmul.f32 %v4546, 1.442695
        %v5366 = vpow.pop %v5365
        %v5367 = vmul.f32 %v4547, 1.442695
        %v5368 = vpow.pop %v5367
        %v5369 = vmul.f32 %v4548, 1.442695
        %v5370 = vpow.pop %v5369
        %v5371 = vmul.f32 %v4549, 1.442695
        %v5372 = vpow.pop %v5371
        %v5373 = vmul.f32 %v4550, 1.442695
        %v5374 = vpow.pop %v5373
        %v5375 = vmul.f32 %v4551, 1.442695
        %v5376 = vpow.pop %v5375
        %v5377 = vmul.f32 %v4552, 1.442695
        %v5378 = vpow.pop %v5377
        %v5379 = vmul.f32 %v4553, 1.442695
        %v5380 = vpow.pop %v5379
        %v5381 = vmul.f32 %v4554, 1.442695
        %v5382 = vpow.pop %v5381
        %v5383 = vmul.f32 %v4555, 1.442695
        %v5384 = vpow.pop %v5383
        %v5385 = vmul.f32 %v4556, 1.442695
        %v5386 = vpow.pop %v5385
        %v5387 = vmul.f32 %v4557, 1.442695
        %v5388 = vpow.pop %v5387
        %v5389 = vmul.f32 %v4558, 1.442695
        %v5390 = vpow.pop %v5389
        %v5391 = vmul.f32 %v4559, 1.442695
        %v5392 = vpow.pop %v5391
        %v5393 = vmul.f32 %v4560, 1.442695
        %v5394 = vpow.pop %v5393
        %v5395 = vmul.f32 %v4561, 1.442695
        %v5396 = vpow.pop %v5395
        %v5397 = vmul.f32 %v4562, 1.442695
        %v5398 = vpow.pop %v5397
        %v5399 = vmul.f32 %v4563, 1.442695
        %v5400 = vpow.pop %v5399
        %v5401 = vmul.f32 %v4564, 1.442695
        %v5402 = vpow.pop %v5401
        %v5403 = vmul.f32 %v4565, 1.442695
        %v5404 = vpow.pop %v5403
        %v5405 = vmul.f32 %v4566, 1.442695
        %v5406 = vpow.pop %v5405
        %v5407 = vmul.f32 %v4567, 1.442695
        %v5408 = vpow.pop %v5407
        %v5409 = vmul.f32 %v4568, 1.442695
        %v5410 = vpow.pop %v5409
        %v5411 = vmul.f32 %v4569, 1.442695
        %v5412 = vpow.pop %v5411
        %v5413 = vmul.f32 %v4570, 1.442695
        %v5414 = vpow.pop %v5413
        %v5415 = vmul.f32 %v4571, 1.442695
        %v5416 = vpow.pop %v5415
        %v5417 = vmul.f32 %v4572, 1.442695
        %v5418 = vpow.pop %v5417
        %v5419 = vmul.f32 %v4573, 1.442695
        %v5420 = vpow.pop %v5419
        %v5421 = vmul.f32 %v4574, 1.442695
        %v5422 = vpow.pop %v5421
        %v5423 = vmul.f32 %v4575, 1.442695
        %v5424 = vpow.pop %v5423
        %v5425 = vmul.f32 %v4576, 1.442695
        %v5426 = vpow.pop %v5425
        %v5427 = vmul.f32 %v4577, 1.442695
        %v5428 = vpow.pop %v5427
        %v5429 = vmul.f32 %v4578, 1.442695
        %v5430 = vpow.pop %v5429
        %v5431 = vmul.f32 %v4579, 1.442695
        %v5432 = vpow.pop %v5431
        %v5433 = vmul.f32 %v4580, 1.442695
        %v5434 = vpow.pop %v5433
        %v5435 = vmul.f32 %v4581, 1.442695
        %v5436 = vpow.pop %v5435
        %v5437 = vmul.f32 %v4582, 1.442695
        %v5438 = vpow.pop %v5437
        %v5439 = vmul.f32 %v4583, 1.442695
        %v5440 = vpow.pop %v5439
        %v5441 = vmul.f32 %v4584, 1.442695
        %v5442 = vpow.pop %v5441
        %v5443 = vmul.f32 %v4585, 1.442695
        %v5444 = vpow.pop %v5443
        %v5445 = vmul.f32 %v4586, 1.442695
        %v5446 = vpow.pop %v5445
        %v5447 = vmul.f32 %v4587, 1.442695
        %v5448 = vpow.pop %v5447
        %v5449 = vmul.f32 %v4588, 1.442695
        %v5450 = vpow.pop %v5449
        %v5451 = vmul.f32 %v4589, 1.442695
        %v5452 = vpow.pop %v5451
        %v5453 = vmul.f32 %v4590, 1.442695
        %v5454 = vpow.pop %v5453
        %v5455 = vmul.f32 %v4591, 1.442695
        %v5456 = vpow.pop %v5455
        %v5457 = vmul.f32 %v4592, 1.442695
        %v5458 = vpow.pop %v5457
        %v5459 = vmul.f32 %v4593, 1.442695
        %v5460 = vpow.pop %v5459
        %v5461 = vmul.f32 %v4594, 1.442695
        %v5462 = vpow.pop %v5461
        %v5463 = vmul.f32 %v4595, 1.442695
        %v5464 = vpow.pop %v5463
        %v5465 = vmul.f32 %v4596, 1.442695
        %v5466 = vpow.pop %v5465
        %v5467 = vmul.f32 %v4597, 1.442695
        %v5468 = vpow.pop %v5467
        %v5469 = vmul.f32 %v4598, 1.442695
        %v5470 = vpow.pop %v5469
        %v5471 = vmul.f32 %v4599, 1.442695
        %v5472 = vpow.pop %v5471
        %v5473 = vmul.f32 %v4600, 1.442695
        %v5474 = vpow.pop %v5473
        %v5475 = vmul.f32 %v4601, 1.442695
        %v5476 = vpow.pop %v5475
        %v5477 = vmul.f32 %v4602, 1.442695
        %v5478 = vpow.pop %v5477
        %v5479 = vmul.f32 %v4603, 1.442695
        %v5480 = vpow.pop %v5479
        %v5481 = vmul.f32 %v4604, 1.442695
        %v5482 = vpow.pop %v5481
        %v5483 = vmul.f32 %v4605, 1.442695
        %v5484 = vpow.pop %v5483
        %v5485 = vmul.f32 %v4606, 1.442695
        %v5486 = vpow.pop %v5485
        %v5487 = vmul.f32 %v4607, 1.442695
        %v5488 = vpow.pop %v5487
        %v5489 = vmul.f32 %v4608, 1.442695
        %v5490 = vpow.pop %v5489
        %v5491 = vmul.f32 %v4609, 1.442695
        %v5492 = vpow.pop %v5491
        %v5493 = vmul.f32 %v4610, 1.442695
        %v5494 = vpow.pop %v5493
        %v5495 = vmul.f32 %v4611, 1.442695
        %v5496 = vpow.pop %v5495
        %v5497 = vmul.f32 %v4612, 1.442695
        %v5498 = vpow.pop %v5497
        %v5499 = vmul.f32 %v4613, 1.442695
        %v5500 = vpow.pop %v5499
        %v5501 = vmul.f32 %v4614, 1.442695
        %v5502 = vpow.pop %v5501
        %v5503 = vmul.f32 %v4615, 1.442695
        %v5504 = vpow.pop %v5503
        %v5505 = vmul.f32 %v4616, 1.442695
        %v5506 = vpow.pop %v5505
        %v5507 = vmul.f32 %v4617, 1.442695
        %v5508 = vpow.pop %v5507
        %v5509 = vmul.f32 %v4618, 1.442695
        %v5510 = vpow.pop %v5509
        %v5511 = vmul.f32 %v4619, 1.442695
        %v5512 = vpow.pop %v5511
        %v5513 = vmul.f32 %v4620, 1.442695
        %v5514 = vpow.pop %v5513
        %v5515 = vmul.f32 %v4621, 1.442695
        %v5516 = vpow.pop %v5515
        %v5517 = vmul.f32 %v4622, 1.442695
        %v5518 = vpow.pop %v5517
        %v5519 = vmul.f32 %v4623, 1.442695
        %v5520 = vpow.pop %v5519
        %v5521 = vmul.f32 %v4624, 1.442695
        %v5522 = vpow.pop %v5521
        %v5523 = vmul.f32 %v4625, 1.442695
        %v5524 = vpow.pop %v5523
        %v5525 = vmul.f32 %v4626, 1.442695
        %v5526 = vpow.pop %v5525
        %v5527 = vmul.f32 %v4627, 1.442695
        %v5528 = vpow.pop %v5527
        %v5529 = vmul.f32 %v4628, 1.442695
        %v5530 = vpow.pop %v5529
        %v5531 = vmul.f32 %v4629, 1.442695
        %v5532 = vpow.pop %v5531
        %v5533 = vmul.f32 %v4630, 1.442695
        %v5534 = vpow.pop %v5533
        %v5535 = vmul.f32 %v4631, 1.442695
        %v5536 = vpow.pop %v5535
        %v5537 = vmul.f32 %v4632, 1.442695
        %v5538 = vpow.pop %v5537
        %v5539 = vmul.f32 %v4633, 1.442695
        %v5540 = vpow.pop %v5539
        %v5541 = vmul.f32 %v4634, 1.442695
        %v5542 = vpow.pop %v5541
        %v5543 = vmul.f32 %v4635, 1.442695
        %v5544 = vpow.pop %v5543
        %v5545 = vmul.f32 %v4636, 1.442695
        %v5546 = vpow.pop %v5545
        %v5547 = vmul.f32 %v4637, 1.442695
        %v5548 = vpow.pop %v5547
        %v5549 = vmul.f32 %v4638, 1.442695
        %v5550 = vpow.pop %v5549
        %v5551 = vmul.f32 %v4639, 1.442695
        %v5552 = vpow.pop %v5551
        %v5553 = vmul.f32 %v4640, 1.442695
        %v5554 = vpow.pop %v5553
        %v5555 = vmul.f32 %v4641, 1.442695
        %v5556 = vpow.pop %v5555
        %v5557 = vmul.f32 %v4642, 1.442695
        %v5558 = vpow.pop %v5557
        %v5559 = vmul.f32 %v4643, 1.442695
        %v5560 = vpow.pop %v5559
        %v5561 = vmul.f32 %v4644, 1.442695
        %v5562 = vpow.pop %v5561
        %v5563 = vmul.f32 %v4645, 1.442695
        %v5564 = vpow.pop %v5563
        %v5565 = vmul.f32 %v4646, 1.442695
        %v5566 = vpow.pop %v5565
        %v5567 = vmul.f32 %v4647, 1.442695
        %v5568 = vpow.pop %v5567
        %v5569 = vmul.f32 %v4648, 1.442695
        %v5570 = vpow.pop %v5569
        %v5571 = vmul.f32 %v4649, 1.442695
        %v5572 = vpow.pop %v5571
        %v5573 = vmul.f32 %v4650, 1.442695
        %v5574 = vpow.pop %v5573
        %v5575 = vmul.f32 %v4651, 1.442695
        %v5576 = vpow.pop %v5575
        %v5577 = vmul.f32 %v4652, 1.442695
        %v5578 = vpow.pop %v5577
        %v5579 = vmul.f32 %v4653, 1.442695
        %v5580 = vpow.pop %v5579
        %v5581 = vmul.f32 %v4654, 1.442695
        %v5582 = vpow.pop %v5581
        %v5583 = vmul.f32 %v4655, 1.442695
        %v5584 = vpow.pop %v5583
        %v5585 = vmul.f32 %v4656, 1.442695
        %v5586 = vpow.pop %v5585
        %v5587 = vmul.f32 %v4657, 1.442695
        %v5588 = vpow.pop %v5587
        %v5589 = vmul.f32 %v4658, 1.442695
        %v5590 = vpow.pop %v5589
        %v5591 = vmul.f32 %v4659, 1.442695
        %v5592 = vpow.pop %v5591
        %v5593 = vmul.f32 %v4660, 1.442695
        %v5594 = vpow.pop %v5593
        %v5595 = vmul.f32 %v4661, 1.442695
        %v5596 = vpow.pop %v5595
        %v5597 = vmul.f32 %v4662, 1.442695
        %v5598 = vpow.pop %v5597
        %v5599 = vmul.f32 %v4663, 1.442695
        %v5600 = vpow.pop %v5599
        %v5601 = vmul.f32 %v4664, 1.442695
        %v5602 = vpow.pop %v5601
        %v5603 = vmul.f32 %v4665, 1.442695
        %v5604 = vpow.pop %v5603
        %v5605 = vmul.f32 %v4666, 1.442695
        %v5606 = vpow.pop %v5605
        %v5607 = vmul.f32 %v4667, 1.442695
        %v5608 = vpow.pop %v5607
        %v5609 = vmul.f32 %v4668, 1.442695
        %v5610 = vpow.pop %v5609
        %v5611 = vmul.f32 %v4669, 1.442695
        %v5612 = vpow.pop %v5611
        %v5613 = vmul.f32 %v4670, 1.442695
        %v5614 = vpow.pop %v5613
        %v5615 = vmul.f32 %v4671, 1.442695
        %v5616 = vpow.pop %v5615
        %v5617 = vmul.f32 %v4672, 1.442695
        %v5618 = vpow.pop %v5617
        %v5619 = vmul.f32 %v4673, 1.442695
        %v5620 = vpow.pop %v5619
        %v5621 = vmul.f32 %v4674, 1.442695
        %v5622 = vpow.pop %v5621
        %v5623 = vmul.f32 %v4675, 1.442695
        %v5624 = vpow.pop %v5623
        %v5625 = vmul.f32 %v4676, 1.442695
        %v5626 = vpow.pop %v5625
        %v5627 = vmul.f32 %v4677, 1.442695
        %v5628 = vpow.pop %v5627
        %v5629 = vmul.f32 %v4678, 1.442695
        %v5630 = vpow.pop %v5629
        %v5631 = vmul.f32 %v4679, 1.442695
        %v5632 = vpow.pop %v5631
        %v5633 = vmul.f32 %v4680, 1.442695
        %v5634 = vpow.pop %v5633
        %v5635 = vmul.f32 %v4681, 1.442695
        %v5636 = vpow.pop %v5635
        %v5637 = vmul.f32 %v4682, 1.442695
        %v5638 = vpow.pop %v5637
        %v5639 = vmul.f32 %v4683, 1.442695
        %v5640 = vpow.pop %v5639
        %v5641 = vmul.f32 %v4684, 1.442695
        %v5642 = vpow.pop %v5641
        %v5643 = vmul.f32 %v4685, 1.442695
        %v5644 = vpow.pop %v5643
        %v5645 = vmul.f32 %v4686, 1.442695
        %v5646 = vpow.pop %v5645
        %v5647 = vmul.f32 %v4687, 1.442695
        %v5648 = vpow.pop %v5647
        %v5649 = vmul.f32 %v4688, 1.442695
        %v5650 = vpow.pop %v5649
        %v5651 = vmul.f32 %v4689, 1.442695
        %v5652 = vpow.pop %v5651
        %v5653 = vmul.f32 %v4690, 1.442695
        %v5654 = vpow.pop %v5653
        %v5655 = vmul.f32 %v4691, 1.442695
        %v5656 = vpow.pop %v5655
        %v5657 = vmul.f32 %v4692, 1.442695
        %v5658 = vpow.pop %v5657
        %v5659 = vmul.f32 %v4693, 1.442695
        %v5660 = vpow.pop %v5659
        %v5661 = vmul.f32 %v4694, 1.442695
        %v5662 = vpow.pop %v5661
        %v5663 = vmul.f32 %v4695, 1.442695
        %v5664 = vpow.pop %v5663
        %v5665 = vmul.f32 %v4696, 1.442695
        %v5666 = vpow.pop %v5665
        %v5667 = vmul.f32 %v4697, 1.442695
        %v5668 = vpow.pop %v5667
        %v5669 = vmul.f32 %v4698, 1.442695
        %v5670 = vpow.pop %v5669
        %v5671 = vmul.f32 %v4699, 1.442695
        %v5672 = vpow.pop %v5671
        %v5673 = vmul.f32 %v4700, 1.442695
        %v5674 = vpow.pop %v5673
        %v5675 = vmul.f32 %v4701, 1.442695
        %v5676 = vpow.pop %v5675
        %v5677 = vmul.f32 %v4702, 1.442695
        %v5678 = vpow.pop %v5677
        %v5679 = vmul.f32 %v4703, 1.442695
        %v5680 = vpow.pop %v5679
        %v5681 = vmul.f32 %v4704, 1.442695
        %v5682 = vpow.pop %v5681
        %v5683 = vmul.f32 %v4705, 1.442695
        %v5684 = vpow.pop %v5683
        %v5685 = vmul.f32 %v4706, 1.442695
        %v5686 = vpow.pop %v5685
        %v5687 = vmul.f32 %v4707, 1.442695
        %v5688 = vpow.pop %v5687
        %v5689 = vmul.f32 %v4708, 1.442695
        %v5690 = vpow.pop %v5689
        %v5691 = vmul.f32 %v4709, 1.442695
        %v5692 = vpow.pop %v5691
        %v5693 = vmul.f32 %v4710, 1.442695
        %v5694 = vpow.pop %v5693
        %v5695 = vmul.f32 %v4711, 1.442695
        %v5696 = vpow.pop %v5695
        %v5697 = vmul.f32 %v4712, 1.442695
        %v5698 = vpow.pop %v5697
        %v5699 = vmul.f32 %v4713, 1.442695
        %v5700 = vpow.pop %v5699
        %v5701 = vmul.f32 %v4714, 1.442695
        %v5702 = vpow.pop %v5701
        %v5703 = vmul.f32 %v4715, 1.442695
        %v5704 = vpow.pop %v5703
        %v5705 = vmul.f32 %v4716, 1.442695
        %v5706 = vpow.pop %v5705
        %v5707 = vmul.f32 %v4717, 1.442695
        %v5708 = vpow.pop %v5707
        %v5709 = vmul.f32 %v4718, 1.442695
        %v5710 = vpow.pop %v5709
        %v5711 = vmul.f32 %v4719, 1.442695
        %v5712 = vpow.pop %v5711
        %v5713 = vmul.f32 %v4720, 1.442695
        %v5714 = vpow.pop %v5713
        %v5715 = vmul.f32 %v4721, 1.442695
        %v5716 = vpow.pop %v5715
        %v5717 = vmul.f32 %v4722, 1.442695
        %v5718 = vpow.pop %v5717
        %v5719 = vmul.f32 %v4723, 1.442695
        %v5720 = vpow.pop %v5719
        %v5721 = vmul.f32 %v4724, 1.442695
        %v5722 = vpow.pop %v5721
        %v5723 = vmul.f32 %v4725, 1.442695
        %v5724 = vpow.pop %v5723
        %v5725 = vmul.f32 %v4726, 1.442695
        %v5726 = vpow.pop %v5725
        %v5727 = vmul.f32 %v4727, 1.442695
        %v5728 = vpow.pop %v5727
        %v5729 = vmul.f32 %v4728, 1.442695
        %v5730 = vpow.pop %v5729
        %v5731 = vmul.f32 %v4729, 1.442695
        %v5732 = vpow.pop %v5731
        %v5733 = vmul.f32 %v4730, 1.442695
        %v5734 = vpow.pop %v5733
        %v5735 = vmul.f32 %v4731, 1.442695
        %v5736 = vpow.pop %v5735
        %v5737 = vmul.f32 %v4732, 1.442695
        %v5738 = vpow.pop %v5737
        %v5739 = vmul.f32 %v4733, 1.442695
        %v5740 = vpow.pop %v5739
        %v5741 = vmul.f32 %v4734, 1.442695
        %v5742 = vpow.pop %v5741
        %v5743 = vmul.f32 %v4735, 1.442695
        %v5744 = vpow.pop %v5743
        %v5745 = vmul.f32 %v4736, 1.442695
        %v5746 = vpow.pop %v5745
        %v5747 = vmul.f32 %v4737, 1.442695
        %v5748 = vpow.pop %v5747
        %v5749 = vmul.f32 %v4738, 1.442695
        %v5750 = vpow.pop %v5749
        %v5751 = vmul.f32 %v4739, 1.442695
        %v5752 = vpow.pop %v5751
        %v5753 = vmul.f32 %v4740, 1.442695
        %v5754 = vpow.pop %v5753
        %v5755 = vmul.f32 %v4741, 1.442695
        %v5756 = vpow.pop %v5755
        %v5757 = vmul.f32 %v4742, 1.442695
        %v5758 = vpow.pop %v5757
        %v5759 = vmul.f32 %v4743, 1.442695
        %v5760 = vpow.pop %v5759
        %v5761 = vmul.f32 %v4744, 1.442695
        %v5762 = vpow.pop %v5761
        %v5763 = vmul.f32 %v4745, 1.442695
        %v5764 = vpow.pop %v5763
        %v5765 = vmul.f32 %v4746, 1.442695
        %v5766 = vpow.pop %v5765
        %v5767 = vmul.f32 %v4747, 1.442695
        %v5768 = vpow.pop %v5767
        %v5769 = vmul.f32 %v4748, 1.442695
        %v5770 = vpow.pop %v5769
        %v5771 = vmul.f32 %v4749, 1.442695
        %v5772 = vpow.pop %v5771
        %v5773 = vmul.f32 %v4750, 1.442695
        %v5774 = vpow.pop %v5773
        %vm5775 = vcmask 408576
        %5776 = vst.msk [vmem:[%s118] sm:$0xff] %vm5775, %v4752
        %5777 = vst.msk [vmem:[%s118 + $0x8] sm:$0xff] %vm5775, %v4754
        %5778 = vst.msk [vmem:[%s118 + $0x10] sm:$0xff] %vm5775, %v4756
        %5779 = vst.msk [vmem:[%s118 + $0x18] sm:$0xff] %vm5775, %v4758
        %5780 = vst.msk [vmem:[%s118 + $0x20] sm:$0xff] %vm5775, %v4760
        %5781 = vst.msk [vmem:[%s118 + $0x28] sm:$0xff] %vm5775, %v4762
        %5782 = vst.msk [vmem:[%s118 + $0x30] sm:$0xff] %vm5775, %v4764
        %5783 = vst.msk [vmem:[%s118 + $0x38] sm:$0xff] %vm5775, %v4766
        %5784 = vst.msk [vmem:[%s118 + $0x40] sm:$0xff] %vm5775, %v4768
        %5785 = vst.msk [vmem:[%s118 + $0x48] sm:$0xff] %vm5775, %v4770
        %5786 = vst.msk [vmem:[%s118 + $0x50] sm:$0xff] %vm5775, %v4772
        %5787 = vst.msk [vmem:[%s118 + $0x58] sm:$0xff] %vm5775, %v4774
        %5788 = vst.msk [vmem:[%s118 + $0x60] sm:$0xff] %vm5775, %v4776
        %5789 = vst.msk [vmem:[%s118 + $0x68] sm:$0xff] %vm5775, %v4778
        %5790 = vst.msk [vmem:[%s118 + $0x70] sm:$0xff] %vm5775, %v4780
        %5791 = vst.msk [vmem:[%s118 + $0x78] sm:$0xff] %vm5775, %v4782
        %5792 = vst.msk [vmem:[%s118 + $0x80] sm:$0xff] %vm5775, %v4784
        %5793 = vst.msk [vmem:[%s118 + $0x88] sm:$0xff] %vm5775, %v4786
        %5794 = vst.msk [vmem:[%s118 + $0x90] sm:$0xff] %vm5775, %v4788
        %5795 = vst.msk [vmem:[%s118 + $0x98] sm:$0xff] %vm5775, %v4790
        %5796 = vst.msk [vmem:[%s118 + $0xa0] sm:$0xff] %vm5775, %v4792
        %5797 = vst.msk [vmem:[%s118 + $0xa8] sm:$0xff] %vm5775, %v4794
        %5798 = vst.msk [vmem:[%s118 + $0xb0] sm:$0xff] %vm5775, %v4796
        %5799 = vst.msk [vmem:[%s118 + $0xb8] sm:$0xff] %vm5775, %v4798
        %5800 = vst.msk [vmem:[%s118 + $0xc0] sm:$0xff] %vm5775, %v4800
        %5801 = vst.msk [vmem:[%s118 + $0xc8] sm:$0xff] %vm5775, %v4802
        %5802 = vst.msk [vmem:[%s118 + $0xd0] sm:$0xff] %vm5775, %v4804
        %5803 = vst.msk [vmem:[%s118 + $0xd8] sm:$0xff] %vm5775, %v4806
        %5804 = vst.msk [vmem:[%s118 + $0xe0] sm:$0xff] %vm5775, %v4808
        %5805 = vst.msk [vmem:[%s118 + $0xe8] sm:$0xff] %vm5775, %v4810
        %5806 = vst.msk [vmem:[%s118 + $0xf0] sm:$0xff] %vm5775, %v4812
        %5807 = vst.msk [vmem:[%s118 + $0xf8] sm:$0xff] %vm5775, %v4814
        %5808 = vst.msk [vmem:[%s118 + $0x100] sm:$0xff] %vm5775, %v4816
        %5809 = vst.msk [vmem:[%s118 + $0x108] sm:$0xff] %vm5775, %v4818
        %5810 = vst.msk [vmem:[%s118 + $0x110] sm:$0xff] %vm5775, %v4820
        %5811 = vst.msk [vmem:[%s118 + $0x118] sm:$0xff] %vm5775, %v4822
        %5812 = vst.msk [vmem:[%s118 + $0x120] sm:$0xff] %vm5775, %v4824
        %5813 = vst.msk [vmem:[%s118 + $0x128] sm:$0xff] %vm5775, %v4826
        %5814 = vst.msk [vmem:[%s118 + $0x130] sm:$0xff] %vm5775, %v4828
        %5815 = vst.msk [vmem:[%s118 + $0x138] sm:$0xff] %vm5775, %v4830
        %5816 = vst.msk [vmem:[%s118 + $0x140] sm:$0xff] %vm5775, %v4832
        %5817 = vst.msk [vmem:[%s118 + $0x148] sm:$0xff] %vm5775, %v4834
        %5818 = vst.msk [vmem:[%s118 + $0x150] sm:$0xff] %vm5775, %v4836
        %5819 = vst.msk [vmem:[%s118 + $0x158] sm:$0xff] %vm5775, %v4838
        %5820 = vst.msk [vmem:[%s118 + $0x160] sm:$0xff] %vm5775, %v4840
        %5821 = vst.msk [vmem:[%s118 + $0x168] sm:$0xff] %vm5775, %v4842
        %5822 = vst.msk [vmem:[%s118 + $0x170] sm:$0xff] %vm5775, %v4844
        %5823 = vst.msk [vmem:[%s118 + $0x178] sm:$0xff] %vm5775, %v4846
        %5824 = vst.msk [vmem:[%s118 + $0x180] sm:$0xff] %vm5775, %v4848
        %5825 = vst.msk [vmem:[%s118 + $0x188] sm:$0xff] %vm5775, %v4850
        %5826 = vst.msk [vmem:[%s118 + $0x190] sm:$0xff] %vm5775, %v4852
        %5827 = vst.msk [vmem:[%s118 + $0x198] sm:$0xff] %vm5775, %v4854
        %5828 = vst.msk [vmem:[%s118 + $0x1a0] sm:$0xff] %vm5775, %v4856
        %5829 = vst.msk [vmem:[%s118 + $0x1a8] sm:$0xff] %vm5775, %v4858
        %5830 = vst.msk [vmem:[%s118 + $0x1b0] sm:$0xff] %vm5775, %v4860
        %5831 = vst.msk [vmem:[%s118 + $0x1b8] sm:$0xff] %vm5775, %v4862
        %5832 = vst.msk [vmem:[%s118 + $0x1c0] sm:$0xff] %vm5775, %v4864
        %5833 = vst.msk [vmem:[%s118 + $0x1c8] sm:$0xff] %vm5775, %v4866
        %5834 = vst.msk [vmem:[%s118 + $0x1d0] sm:$0xff] %vm5775, %v4868
        %5835 = vst.msk [vmem:[%s118 + $0x1d8] sm:$0xff] %vm5775, %v4870
        %5836 = vst.msk [vmem:[%s118 + $0x1e0] sm:$0xff] %vm5775, %v4872
        %5837 = vst.msk [vmem:[%s118 + $0x1e8] sm:$0xff] %vm5775, %v4874
        %5838 = vst.msk [vmem:[%s118 + $0x1f0] sm:$0xff] %vm5775, %v4876
        %5839 = vst.msk [vmem:[%s118 + $0x1f8] sm:$0xff] %vm5775, %v4878
        %5840 = vst.msk [vmem:[%s118 + $0x200] sm:$0xff] %vm5775, %v4880
        %5841 = vst.msk [vmem:[%s118 + $0x208] sm:$0xff] %vm5775, %v4882
        %5842 = vst.msk [vmem:[%s118 + $0x210] sm:$0xff] %vm5775, %v4884
        %5843 = vst.msk [vmem:[%s118 + $0x218] sm:$0xff] %vm5775, %v4886
        %5844 = vst.msk [vmem:[%s118 + $0x220] sm:$0xff] %vm5775, %v4888
        %5845 = vst.msk [vmem:[%s118 + $0x228] sm:$0xff] %vm5775, %v4890
        %5846 = vst.msk [vmem:[%s118 + $0x230] sm:$0xff] %vm5775, %v4892
        %5847 = vst.msk [vmem:[%s118 + $0x238] sm:$0xff] %vm5775, %v4894
        %5848 = vst.msk [vmem:[%s118 + $0x240] sm:$0xff] %vm5775, %v4896
        %5849 = vst.msk [vmem:[%s118 + $0x248] sm:$0xff] %vm5775, %v4898
        %5850 = vst.msk [vmem:[%s118 + $0x250] sm:$0xff] %vm5775, %v4900
        %5851 = vst.msk [vmem:[%s118 + $0x258] sm:$0xff] %vm5775, %v4902
        %5852 = vst.msk [vmem:[%s118 + $0x260] sm:$0xff] %vm5775, %v4904
        %5853 = vst.msk [vmem:[%s118 + $0x268] sm:$0xff] %vm5775, %v4906
        %5854 = vst.msk [vmem:[%s118 + $0x270] sm:$0xff] %vm5775, %v4908
        %5855 = vst.msk [vmem:[%s118 + $0x278] sm:$0xff] %vm5775, %v4910
        %5856 = vst.msk [vmem:[%s118 + $0x280] sm:$0xff] %vm5775, %v4912
        %5857 = vst.msk [vmem:[%s118 + $0x288] sm:$0xff] %vm5775, %v4914
        %5858 = vst.msk [vmem:[%s118 + $0x290] sm:$0xff] %vm5775, %v4916
        %5859 = vst.msk [vmem:[%s118 + $0x298] sm:$0xff] %vm5775, %v4918
        %5860 = vst.msk [vmem:[%s118 + $0x2a0] sm:$0xff] %vm5775, %v4920
        %5861 = vst.msk [vmem:[%s118 + $0x2a8] sm:$0xff] %vm5775, %v4922
        %5862 = vst.msk [vmem:[%s118 + $0x2b0] sm:$0xff] %vm5775, %v4924
        %5863 = vst.msk [vmem:[%s118 + $0x2b8] sm:$0xff] %vm5775, %v4926
        %5864 = vst.msk [vmem:[%s118 + $0x2c0] sm:$0xff] %vm5775, %v4928
        %5865 = vst.msk [vmem:[%s118 + $0x2c8] sm:$0xff] %vm5775, %v4930
        %5866 = vst.msk [vmem:[%s118 + $0x2d0] sm:$0xff] %vm5775, %v4932
        %5867 = vst.msk [vmem:[%s118 + $0x2d8] sm:$0xff] %vm5775, %v4934
        %5868 = vst.msk [vmem:[%s118 + $0x2e0] sm:$0xff] %vm5775, %v4936
        %5869 = vst.msk [vmem:[%s118 + $0x2e8] sm:$0xff] %vm5775, %v4938
        %5870 = vst.msk [vmem:[%s118 + $0x2f0] sm:$0xff] %vm5775, %v4940
        %5871 = vst.msk [vmem:[%s118 + $0x2f8] sm:$0xff] %vm5775, %v4942
        %5872 = vst.msk [vmem:[%s118 + $0x300] sm:$0xff] %vm5775, %v4944
        %5873 = vst.msk [vmem:[%s118 + $0x308] sm:$0xff] %vm5775, %v4946
        %5874 = vst.msk [vmem:[%s118 + $0x310] sm:$0xff] %vm5775, %v4948
        %5875 = vst.msk [vmem:[%s118 + $0x318] sm:$0xff] %vm5775, %v4950
        %5876 = vst.msk [vmem:[%s118 + $0x320] sm:$0xff] %vm5775, %v4952
        %5877 = vst.msk [vmem:[%s118 + $0x328] sm:$0xff] %vm5775, %v4954
        %5878 = vst.msk [vmem:[%s118 + $0x330] sm:$0xff] %vm5775, %v4956
        %5879 = vst.msk [vmem:[%s118 + $0x338] sm:$0xff] %vm5775, %v4958
        %5880 = vst.msk [vmem:[%s118 + $0x340] sm:$0xff] %vm5775, %v4960
        %5881 = vst.msk [vmem:[%s118 + $0x348] sm:$0xff] %vm5775, %v4962
        %5882 = vst.msk [vmem:[%s118 + $0x350] sm:$0xff] %vm5775, %v4964
        %5883 = vst.msk [vmem:[%s118 + $0x358] sm:$0xff] %vm5775, %v4966
        %5884 = vst.msk [vmem:[%s118 + $0x360] sm:$0xff] %vm5775, %v4968
        %5885 = vst.msk [vmem:[%s118 + $0x368] sm:$0xff] %vm5775, %v4970
        %5886 = vst.msk [vmem:[%s118 + $0x370] sm:$0xff] %vm5775, %v4972
        %5887 = vst.msk [vmem:[%s118 + $0x378] sm:$0xff] %vm5775, %v4974
        %5888 = vst.msk [vmem:[%s118 + $0x380] sm:$0xff] %vm5775, %v4976
        %5889 = vst.msk [vmem:[%s118 + $0x388] sm:$0xff] %vm5775, %v4978
        %5890 = vst.msk [vmem:[%s118 + $0x390] sm:$0xff] %vm5775, %v4980
        %5891 = vst.msk [vmem:[%s118 + $0x398] sm:$0xff] %vm5775, %v4982
        %5892 = vst.msk [vmem:[%s118 + $0x3a0] sm:$0xff] %vm5775, %v4984
        %5893 = vst.msk [vmem:[%s118 + $0x3a8] sm:$0xff] %vm5775, %v4986
        %5894 = vst.msk [vmem:[%s118 + $0x3b0] sm:$0xff] %vm5775, %v4988
        %5895 = vst.msk [vmem:[%s118 + $0x3b8] sm:$0xff] %vm5775, %v4990
        %5896 = vst.msk [vmem:[%s118 + $0x3c0] sm:$0xff] %vm5775, %v4992
        %5897 = vst.msk [vmem:[%s118 + $0x3c8] sm:$0xff] %vm5775, %v4994
        %5898 = vst.msk [vmem:[%s118 + $0x3d0] sm:$0xff] %vm5775, %v4996
        %5899 = vst.msk [vmem:[%s118 + $0x3d8] sm:$0xff] %vm5775, %v4998
        %5900 = vst.msk [vmem:[%s118 + $0x3e0] sm:$0xff] %vm5775, %v5000
        %5901 = vst.msk [vmem:[%s118 + $0x3e8] sm:$0xff] %vm5775, %v5002
        %5902 = vst.msk [vmem:[%s118 + $0x3f0] sm:$0xff] %vm5775, %v5004
        %5903 = vst.msk [vmem:[%s118 + $0x3f8] sm:$0xff] %vm5775, %v5006
        %5904 = vst.msk [vmem:[%s118 + $0x400] sm:$0xff] %vm5775, %v5008
        %5905 = vst.msk [vmem:[%s118 + $0x408] sm:$0xff] %vm5775, %v5010
        %5906 = vst.msk [vmem:[%s118 + $0x410] sm:$0xff] %vm5775, %v5012
        %5907 = vst.msk [vmem:[%s118 + $0x418] sm:$0xff] %vm5775, %v5014
        %5908 = vst.msk [vmem:[%s118 + $0x420] sm:$0xff] %vm5775, %v5016
        %5909 = vst.msk [vmem:[%s118 + $0x428] sm:$0xff] %vm5775, %v5018
        %5910 = vst.msk [vmem:[%s118 + $0x430] sm:$0xff] %vm5775, %v5020
        %5911 = vst.msk [vmem:[%s118 + $0x438] sm:$0xff] %vm5775, %v5022
        %5912 = vst.msk [vmem:[%s118 + $0x440] sm:$0xff] %vm5775, %v5024
        %5913 = vst.msk [vmem:[%s118 + $0x448] sm:$0xff] %vm5775, %v5026
        %5914 = vst.msk [vmem:[%s118 + $0x450] sm:$0xff] %vm5775, %v5028
        %5915 = vst.msk [vmem:[%s118 + $0x458] sm:$0xff] %vm5775, %v5030
        %5916 = vst.msk [vmem:[%s118 + $0x460] sm:$0xff] %vm5775, %v5032
        %5917 = vst.msk [vmem:[%s118 + $0x468] sm:$0xff] %vm5775, %v5034
        %5918 = vst.msk [vmem:[%s118 + $0x470] sm:$0xff] %vm5775, %v5036
        %5919 = vst.msk [vmem:[%s118 + $0x478] sm:$0xff] %vm5775, %v5038
        %5920 = vst.msk [vmem:[%s118 + $0x480] sm:$0xff] %vm5775, %v5040
        %5921 = vst.msk [vmem:[%s118 + $0x488] sm:$0xff] %vm5775, %v5042
        %5922 = vst.msk [vmem:[%s118 + $0x490] sm:$0xff] %vm5775, %v5044
        %5923 = vst.msk [vmem:[%s118 + $0x498] sm:$0xff] %vm5775, %v5046
        %5924 = vst.msk [vmem:[%s118 + $0x4a0] sm:$0xff] %vm5775, %v5048
        %5925 = vst.msk [vmem:[%s118 + $0x4a8] sm:$0xff] %vm5775, %v5050
        %5926 = vst.msk [vmem:[%s118 + $0x4b0] sm:$0xff] %vm5775, %v5052
        %5927 = vst.msk [vmem:[%s118 + $0x4b8] sm:$0xff] %vm5775, %v5054
        %5928 = vst.msk [vmem:[%s118 + $0x4c0] sm:$0xff] %vm5775, %v5056
        %5929 = vst.msk [vmem:[%s118 + $0x4c8] sm:$0xff] %vm5775, %v5058
        %5930 = vst.msk [vmem:[%s118 + $0x4d0] sm:$0xff] %vm5775, %v5060
        %5931 = vst.msk [vmem:[%s118 + $0x4d8] sm:$0xff] %vm5775, %v5062
        %5932 = vst.msk [vmem:[%s118 + $0x4e0] sm:$0xff] %vm5775, %v5064
        %5933 = vst.msk [vmem:[%s118 + $0x4e8] sm:$0xff] %vm5775, %v5066
        %5934 = vst.msk [vmem:[%s118 + $0x4f0] sm:$0xff] %vm5775, %v5068
        %5935 = vst.msk [vmem:[%s118 + $0x4f8] sm:$0xff] %vm5775, %v5070
        %5936 = vst.msk [vmem:[%s118 + $0x500] sm:$0xff] %vm5775, %v5072
        %5937 = vst.msk [vmem:[%s118 + $0x508] sm:$0xff] %vm5775, %v5074
        %5938 = vst.msk [vmem:[%s118 + $0x510] sm:$0xff] %vm5775, %v5076
        %5939 = vst.msk [vmem:[%s118 + $0x518] sm:$0xff] %vm5775, %v5078
        %5940 = vst.msk [vmem:[%s118 + $0x520] sm:$0xff] %vm5775, %v5080
        %5941 = vst.msk [vmem:[%s118 + $0x528] sm:$0xff] %vm5775, %v5082
        %5942 = vst.msk [vmem:[%s118 + $0x530] sm:$0xff] %vm5775, %v5084
        %5943 = vst.msk [vmem:[%s118 + $0x538] sm:$0xff] %vm5775, %v5086
        %5944 = vst.msk [vmem:[%s118 + $0x540] sm:$0xff] %vm5775, %v5088
        %5945 = vst.msk [vmem:[%s118 + $0x548] sm:$0xff] %vm5775, %v5090
        %5946 = vst.msk [vmem:[%s118 + $0x550] sm:$0xff] %vm5775, %v5092
        %5947 = vst.msk [vmem:[%s118 + $0x558] sm:$0xff] %vm5775, %v5094
        %5948 = vst.msk [vmem:[%s118 + $0x560] sm:$0xff] %vm5775, %v5096
        %5949 = vst.msk [vmem:[%s118 + $0x568] sm:$0xff] %vm5775, %v5098
        %5950 = vst.msk [vmem:[%s118 + $0x570] sm:$0xff] %vm5775, %v5100
        %5951 = vst.msk [vmem:[%s118 + $0x578] sm:$0xff] %vm5775, %v5102
        %5952 = vst.msk [vmem:[%s118 + $0x580] sm:$0xff] %vm5775, %v5104
        %5953 = vst.msk [vmem:[%s118 + $0x588] sm:$0xff] %vm5775, %v5106
        %5954 = vst.msk [vmem:[%s118 + $0x590] sm:$0xff] %vm5775, %v5108
        %5955 = vst.msk [vmem:[%s118 + $0x598] sm:$0xff] %vm5775, %v5110
        %5956 = vst.msk [vmem:[%s118 + $0x5a0] sm:$0xff] %vm5775, %v5112
        %5957 = vst.msk [vmem:[%s118 + $0x5a8] sm:$0xff] %vm5775, %v5114
        %5958 = vst.msk [vmem:[%s118 + $0x5b0] sm:$0xff] %vm5775, %v5116
        %5959 = vst.msk [vmem:[%s118 + $0x5b8] sm:$0xff] %vm5775, %v5118
        %5960 = vst.msk [vmem:[%s118 + $0x5c0] sm:$0xff] %vm5775, %v5120
        %5961 = vst.msk [vmem:[%s118 + $0x5c8] sm:$0xff] %vm5775, %v5122
        %5962 = vst.msk [vmem:[%s118 + $0x5d0] sm:$0xff] %vm5775, %v5124
        %5963 = vst.msk [vmem:[%s118 + $0x5d8] sm:$0xff] %vm5775, %v5126
        %5964 = vst.msk [vmem:[%s118 + $0x5e0] sm:$0xff] %vm5775, %v5128
        %5965 = vst.msk [vmem:[%s118 + $0x5e8] sm:$0xff] %vm5775, %v5130
        %5966 = vst.msk [vmem:[%s118 + $0x5f0] sm:$0xff] %vm5775, %v5132
        %5967 = vst.msk [vmem:[%s118 + $0x5f8] sm:$0xff] %vm5775, %v5134
        %5968 = vst.msk [vmem:[%s118 + $0x600] sm:$0xff] %vm5775, %v5136
        %5969 = vst.msk [vmem:[%s118 + $0x608] sm:$0xff] %vm5775, %v5138
        %5970 = vst.msk [vmem:[%s118 + $0x610] sm:$0xff] %vm5775, %v5140
        %5971 = vst.msk [vmem:[%s118 + $0x618] sm:$0xff] %vm5775, %v5142
        %5972 = vst.msk [vmem:[%s118 + $0x620] sm:$0xff] %vm5775, %v5144
        %5973 = vst.msk [vmem:[%s118 + $0x628] sm:$0xff] %vm5775, %v5146
        %5974 = vst.msk [vmem:[%s118 + $0x630] sm:$0xff] %vm5775, %v5148
        %5975 = vst.msk [vmem:[%s118 + $0x638] sm:$0xff] %vm5775, %v5150
        %5976 = vst.msk [vmem:[%s118 + $0x640] sm:$0xff] %vm5775, %v5152
        %5977 = vst.msk [vmem:[%s118 + $0x648] sm:$0xff] %vm5775, %v5154
        %5978 = vst.msk [vmem:[%s118 + $0x650] sm:$0xff] %vm5775, %v5156
        %5979 = vst.msk [vmem:[%s118 + $0x658] sm:$0xff] %vm5775, %v5158
        %5980 = vst.msk [vmem:[%s118 + $0x660] sm:$0xff] %vm5775, %v5160
        %5981 = vst.msk [vmem:[%s118 + $0x668] sm:$0xff] %vm5775, %v5162
        %5982 = vst.msk [vmem:[%s118 + $0x670] sm:$0xff] %vm5775, %v5164
        %5983 = vst.msk [vmem:[%s118 + $0x678] sm:$0xff] %vm5775, %v5166
        %5984 = vst.msk [vmem:[%s118 + $0x680] sm:$0xff] %vm5775, %v5168
        %5985 = vst.msk [vmem:[%s118 + $0x688] sm:$0xff] %vm5775, %v5170
        %5986 = vst.msk [vmem:[%s118 + $0x690] sm:$0xff] %vm5775, %v5172
        %5987 = vst.msk [vmem:[%s118 + $0x698] sm:$0xff] %vm5775, %v5174
        %5988 = vst.msk [vmem:[%s118 + $0x6a0] sm:$0xff] %vm5775, %v5176
        %5989 = vst.msk [vmem:[%s118 + $0x6a8] sm:$0xff] %vm5775, %v5178
        %5990 = vst.msk [vmem:[%s118 + $0x6b0] sm:$0xff] %vm5775, %v5180
        %5991 = vst.msk [vmem:[%s118 + $0x6b8] sm:$0xff] %vm5775, %v5182
        %5992 = vst.msk [vmem:[%s118 + $0x6c0] sm:$0xff] %vm5775, %v5184
        %5993 = vst.msk [vmem:[%s118 + $0x6c8] sm:$0xff] %vm5775, %v5186
        %5994 = vst.msk [vmem:[%s118 + $0x6d0] sm:$0xff] %vm5775, %v5188
        %5995 = vst.msk [vmem:[%s118 + $0x6d8] sm:$0xff] %vm5775, %v5190
        %5996 = vst.msk [vmem:[%s118 + $0x6e0] sm:$0xff] %vm5775, %v5192
        %5997 = vst.msk [vmem:[%s118 + $0x6e8] sm:$0xff] %vm5775, %v5194
        %5998 = vst.msk [vmem:[%s118 + $0x6f0] sm:$0xff] %vm5775, %v5196
        %5999 = vst.msk [vmem:[%s118 + $0x6f8] sm:$0xff] %vm5775, %v5198
        %6000 = vst.msk [vmem:[%s118 + $0x700] sm:$0xff] %vm5775, %v5200
        %6001 = vst.msk [vmem:[%s118 + $0x708] sm:$0xff] %vm5775, %v5202
        %6002 = vst.msk [vmem:[%s118 + $0x710] sm:$0xff] %vm5775, %v5204
        %6003 = vst.msk [vmem:[%s118 + $0x718] sm:$0xff] %vm5775, %v5206
        %6004 = vst.msk [vmem:[%s118 + $0x720] sm:$0xff] %vm5775, %v5208
        %6005 = vst.msk [vmem:[%s118 + $0x728] sm:$0xff] %vm5775, %v5210
        %6006 = vst.msk [vmem:[%s118 + $0x730] sm:$0xff] %vm5775, %v5212
        %6007 = vst.msk [vmem:[%s118 + $0x738] sm:$0xff] %vm5775, %v5214
        %6008 = vst.msk [vmem:[%s118 + $0x740] sm:$0xff] %vm5775, %v5216
        %6009 = vst.msk [vmem:[%s118 + $0x748] sm:$0xff] %vm5775, %v5218
        %6010 = vst.msk [vmem:[%s118 + $0x750] sm:$0xff] %vm5775, %v5220
        %6011 = vst.msk [vmem:[%s118 + $0x758] sm:$0xff] %vm5775, %v5222
        %6012 = vst.msk [vmem:[%s118 + $0x760] sm:$0xff] %vm5775, %v5224
        %6013 = vst.msk [vmem:[%s118 + $0x768] sm:$0xff] %vm5775, %v5226
        %6014 = vst.msk [vmem:[%s118 + $0x770] sm:$0xff] %vm5775, %v5228
        %6015 = vst.msk [vmem:[%s118 + $0x778] sm:$0xff] %vm5775, %v5230
        %6016 = vst.msk [vmem:[%s118 + $0x780] sm:$0xff] %vm5775, %v5232
        %6017 = vst.msk [vmem:[%s118 + $0x788] sm:$0xff] %vm5775, %v5234
        %6018 = vst.msk [vmem:[%s118 + $0x790] sm:$0xff] %vm5775, %v5236
        %6019 = vst.msk [vmem:[%s118 + $0x798] sm:$0xff] %vm5775, %v5238
        %6020 = vst.msk [vmem:[%s118 + $0x7a0] sm:$0xff] %vm5775, %v5240
        %6021 = vst.msk [vmem:[%s118 + $0x7a8] sm:$0xff] %vm5775, %v5242
        %6022 = vst.msk [vmem:[%s118 + $0x7b0] sm:$0xff] %vm5775, %v5244
        %6023 = vst.msk [vmem:[%s118 + $0x7b8] sm:$0xff] %vm5775, %v5246
        %6024 = vst.msk [vmem:[%s118 + $0x7c0] sm:$0xff] %vm5775, %v5248
        %6025 = vst.msk [vmem:[%s118 + $0x7c8] sm:$0xff] %vm5775, %v5250
        %6026 = vst.msk [vmem:[%s118 + $0x7d0] sm:$0xff] %vm5775, %v5252
        %6027 = vst.msk [vmem:[%s118 + $0x7d8] sm:$0xff] %vm5775, %v5254
        %6028 = vst.msk [vmem:[%s118 + $0x7e0] sm:$0xff] %vm5775, %v5256
        %6029 = vst.msk [vmem:[%s118 + $0x7e8] sm:$0xff] %vm5775, %v5258
        %6030 = vst.msk [vmem:[%s118 + $0x7f0] sm:$0xff] %vm5775, %v5260
        %6031 = vst.msk [vmem:[%s118 + $0x7f8] sm:$0xff] %vm5775, %v5262
        %6032 = vst.msk [vmem:[%s118 + $0x800] sm:$0xff] %vm5775, %v5264
        %6033 = vst.msk [vmem:[%s118 + $0x808] sm:$0xff] %vm5775, %v5266
        %6034 = vst.msk [vmem:[%s118 + $0x810] sm:$0xff] %vm5775, %v5268
        %6035 = vst.msk [vmem:[%s118 + $0x818] sm:$0xff] %vm5775, %v5270
        %6036 = vst.msk [vmem:[%s118 + $0x820] sm:$0xff] %vm5775, %v5272
        %6037 = vst.msk [vmem:[%s118 + $0x828] sm:$0xff] %vm5775, %v5274
        %6038 = vst.msk [vmem:[%s118 + $0x830] sm:$0xff] %vm5775, %v5276
        %6039 = vst.msk [vmem:[%s118 + $0x838] sm:$0xff] %vm5775, %v5278
        %6040 = vst.msk [vmem:[%s118 + $0x840] sm:$0xff] %vm5775, %v5280
        %6041 = vst.msk [vmem:[%s118 + $0x848] sm:$0xff] %vm5775, %v5282
        %6042 = vst.msk [vmem:[%s118 + $0x850] sm:$0xff] %vm5775, %v5284
        %6043 = vst.msk [vmem:[%s118 + $0x858] sm:$0xff] %vm5775, %v5286
        %6044 = vst.msk [vmem:[%s118 + $0x860] sm:$0xff] %vm5775, %v5288
        %6045 = vst.msk [vmem:[%s118 + $0x868] sm:$0xff] %vm5775, %v5290
        %6046 = vst.msk [vmem:[%s118 + $0x870] sm:$0xff] %vm5775, %v5292
        %6047 = vst.msk [vmem:[%s118 + $0x878] sm:$0xff] %vm5775, %v5294
        %6048 = vst.msk [vmem:[%s118 + $0x880] sm:$0xff] %vm5775, %v5296
        %6049 = vst.msk [vmem:[%s118 + $0x888] sm:$0xff] %vm5775, %v5298
        %6050 = vst.msk [vmem:[%s118 + $0x890] sm:$0xff] %vm5775, %v5300
        %6051 = vst.msk [vmem:[%s118 + $0x898] sm:$0xff] %vm5775, %v5302
        %6052 = vst.msk [vmem:[%s118 + $0x8a0] sm:$0xff] %vm5775, %v5304
        %6053 = vst.msk [vmem:[%s118 + $0x8a8] sm:$0xff] %vm5775, %v5306
        %6054 = vst.msk [vmem:[%s118 + $0x8b0] sm:$0xff] %vm5775, %v5308
        %6055 = vst.msk [vmem:[%s118 + $0x8b8] sm:$0xff] %vm5775, %v5310
        %6056 = vst.msk [vmem:[%s118 + $0x8c0] sm:$0xff] %vm5775, %v5312
        %6057 = vst.msk [vmem:[%s118 + $0x8c8] sm:$0xff] %vm5775, %v5314
        %6058 = vst.msk [vmem:[%s118 + $0x8d0] sm:$0xff] %vm5775, %v5316
        %6059 = vst.msk [vmem:[%s118 + $0x8d8] sm:$0xff] %vm5775, %v5318
        %6060 = vst.msk [vmem:[%s118 + $0x8e0] sm:$0xff] %vm5775, %v5320
        %6061 = vst.msk [vmem:[%s118 + $0x8e8] sm:$0xff] %vm5775, %v5322
        %6062 = vst.msk [vmem:[%s118 + $0x8f0] sm:$0xff] %vm5775, %v5324
        %6063 = vst.msk [vmem:[%s118 + $0x8f8] sm:$0xff] %vm5775, %v5326
        %6064 = vst.msk [vmem:[%s118 + $0x900] sm:$0xff] %vm5775, %v5328
        %6065 = vst.msk [vmem:[%s118 + $0x908] sm:$0xff] %vm5775, %v5330
        %6066 = vst.msk [vmem:[%s118 + $0x910] sm:$0xff] %vm5775, %v5332
        %6067 = vst.msk [vmem:[%s118 + $0x918] sm:$0xff] %vm5775, %v5334
        %6068 = vst.msk [vmem:[%s118 + $0x920] sm:$0xff] %vm5775, %v5336
        %6069 = vst.msk [vmem:[%s118 + $0x928] sm:$0xff] %vm5775, %v5338
        %6070 = vst.msk [vmem:[%s118 + $0x930] sm:$0xff] %vm5775, %v5340
        %6071 = vst.msk [vmem:[%s118 + $0x938] sm:$0xff] %vm5775, %v5342
        %6072 = vst.msk [vmem:[%s118 + $0x940] sm:$0xff] %vm5775, %v5344
        %6073 = vst.msk [vmem:[%s118 + $0x948] sm:$0xff] %vm5775, %v5346
        %6074 = vst.msk [vmem:[%s118 + $0x950] sm:$0xff] %vm5775, %v5348
        %6075 = vst.msk [vmem:[%s118 + $0x958] sm:$0xff] %vm5775, %v5350
        %6076 = vst.msk [vmem:[%s118 + $0x960] sm:$0xff] %vm5775, %v5352
        %6077 = vst.msk [vmem:[%s118 + $0x968] sm:$0xff] %vm5775, %v5354
        %6078 = vst.msk [vmem:[%s118 + $0x970] sm:$0xff] %vm5775, %v5356
        %6079 = vst.msk [vmem:[%s118 + $0x978] sm:$0xff] %vm5775, %v5358
        %6080 = vst.msk [vmem:[%s118 + $0x980] sm:$0xff] %vm5775, %v5360
        %6081 = vst.msk [vmem:[%s118 + $0x988] sm:$0xff] %vm5775, %v5362
        %6082 = vst.msk [vmem:[%s118 + $0x990] sm:$0xff] %vm5775, %v5364
        %6083 = vst.msk [vmem:[%s118 + $0x998] sm:$0xff] %vm5775, %v5366
        %6084 = vst.msk [vmem:[%s118 + $0x9a0] sm:$0xff] %vm5775, %v5368
        %6085 = vst.msk [vmem:[%s118 + $0x9a8] sm:$0xff] %vm5775, %v5370
        %6086 = vst.msk [vmem:[%s118 + $0x9b0] sm:$0xff] %vm5775, %v5372
        %6087 = vst.msk [vmem:[%s118 + $0x9b8] sm:$0xff] %vm5775, %v5374
        %6088 = vst.msk [vmem:[%s118 + $0x9c0] sm:$0xff] %vm5775, %v5376
        %6089 = vst.msk [vmem:[%s118 + $0x9c8] sm:$0xff] %vm5775, %v5378
        %6090 = vst.msk [vmem:[%s118 + $0x9d0] sm:$0xff] %vm5775, %v5380
        %6091 = vst.msk [vmem:[%s118 + $0x9d8] sm:$0xff] %vm5775, %v5382
        %6092 = vst.msk [vmem:[%s118 + $0x9e0] sm:$0xff] %vm5775, %v5384
        %6093 = vst.msk [vmem:[%s118 + $0x9e8] sm:$0xff] %vm5775, %v5386
        %6094 = vst.msk [vmem:[%s118 + $0x9f0] sm:$0xff] %vm5775, %v5388
        %6095 = vst.msk [vmem:[%s118 + $0x9f8] sm:$0xff] %vm5775, %v5390
        %6096 = vst.msk [vmem:[%s118 + $0xa00] sm:$0xff] %vm5775, %v5392
        %6097 = vst.msk [vmem:[%s118 + $0xa08] sm:$0xff] %vm5775, %v5394
        %6098 = vst.msk [vmem:[%s118 + $0xa10] sm:$0xff] %vm5775, %v5396
        %6099 = vst.msk [vmem:[%s118 + $0xa18] sm:$0xff] %vm5775, %v5398
        %6100 = vst.msk [vmem:[%s118 + $0xa20] sm:$0xff] %vm5775, %v5400
        %6101 = vst.msk [vmem:[%s118 + $0xa28] sm:$0xff] %vm5775, %v5402
        %6102 = vst.msk [vmem:[%s118 + $0xa30] sm:$0xff] %vm5775, %v5404
        %6103 = vst.msk [vmem:[%s118 + $0xa38] sm:$0xff] %vm5775, %v5406
        %6104 = vst.msk [vmem:[%s118 + $0xa40] sm:$0xff] %vm5775, %v5408
        %6105 = vst.msk [vmem:[%s118 + $0xa48] sm:$0xff] %vm5775, %v5410
        %6106 = vst.msk [vmem:[%s118 + $0xa50] sm:$0xff] %vm5775, %v5412
        %6107 = vst.msk [vmem:[%s118 + $0xa58] sm:$0xff] %vm5775, %v5414
        %6108 = vst.msk [vmem:[%s118 + $0xa60] sm:$0xff] %vm5775, %v5416
        %6109 = vst.msk [vmem:[%s118 + $0xa68] sm:$0xff] %vm5775, %v5418
        %6110 = vst.msk [vmem:[%s118 + $0xa70] sm:$0xff] %vm5775, %v5420
        %6111 = vst.msk [vmem:[%s118 + $0xa78] sm:$0xff] %vm5775, %v5422
        %6112 = vst.msk [vmem:[%s118 + $0xa80] sm:$0xff] %vm5775, %v5424
        %6113 = vst.msk [vmem:[%s118 + $0xa88] sm:$0xff] %vm5775, %v5426
        %6114 = vst.msk [vmem:[%s118 + $0xa90] sm:$0xff] %vm5775, %v5428
        %6115 = vst.msk [vmem:[%s118 + $0xa98] sm:$0xff] %vm5775, %v5430
        %6116 = vst.msk [vmem:[%s118 + $0xaa0] sm:$0xff] %vm5775, %v5432
        %6117 = vst.msk [vmem:[%s118 + $0xaa8] sm:$0xff] %vm5775, %v5434
        %6118 = vst.msk [vmem:[%s118 + $0xab0] sm:$0xff] %vm5775, %v5436
        %6119 = vst.msk [vmem:[%s118 + $0xab8] sm:$0xff] %vm5775, %v5438
        %6120 = vst.msk [vmem:[%s118 + $0xac0] sm:$0xff] %vm5775, %v5440
        %6121 = vst.msk [vmem:[%s118 + $0xac8] sm:$0xff] %vm5775, %v5442
        %6122 = vst.msk [vmem:[%s118 + $0xad0] sm:$0xff] %vm5775, %v5444
        %6123 = vst.msk [vmem:[%s118 + $0xad8] sm:$0xff] %vm5775, %v5446
        %6124 = vst.msk [vmem:[%s118 + $0xae0] sm:$0xff] %vm5775, %v5448
        %6125 = vst.msk [vmem:[%s118 + $0xae8] sm:$0xff] %vm5775, %v5450
        %6126 = vst.msk [vmem:[%s118 + $0xaf0] sm:$0xff] %vm5775, %v5452
        %6127 = vst.msk [vmem:[%s118 + $0xaf8] sm:$0xff] %vm5775, %v5454
        %6128 = vst.msk [vmem:[%s118 + $0xb00] sm:$0xff] %vm5775, %v5456
        %6129 = vst.msk [vmem:[%s118 + $0xb08] sm:$0xff] %vm5775, %v5458
        %6130 = vst.msk [vmem:[%s118 + $0xb10] sm:$0xff] %vm5775, %v5460
        %6131 = vst.msk [vmem:[%s118 + $0xb18] sm:$0xff] %vm5775, %v5462
        %6132 = vst.msk [vmem:[%s118 + $0xb20] sm:$0xff] %vm5775, %v5464
        %6133 = vst.msk [vmem:[%s118 + $0xb28] sm:$0xff] %vm5775, %v5466
        %6134 = vst.msk [vmem:[%s118 + $0xb30] sm:$0xff] %vm5775, %v5468
        %6135 = vst.msk [vmem:[%s118 + $0xb38] sm:$0xff] %vm5775, %v5470
        %6136 = vst.msk [vmem:[%s118 + $0xb40] sm:$0xff] %vm5775, %v5472
        %6137 = vst.msk [vmem:[%s118 + $0xb48] sm:$0xff] %vm5775, %v5474
        %6138 = vst.msk [vmem:[%s118 + $0xb50] sm:$0xff] %vm5775, %v5476
        %6139 = vst.msk [vmem:[%s118 + $0xb58] sm:$0xff] %vm5775, %v5478
        %6140 = vst.msk [vmem:[%s118 + $0xb60] sm:$0xff] %vm5775, %v5480
        %6141 = vst.msk [vmem:[%s118 + $0xb68] sm:$0xff] %vm5775, %v5482
        %6142 = vst.msk [vmem:[%s118 + $0xb70] sm:$0xff] %vm5775, %v5484
        %6143 = vst.msk [vmem:[%s118 + $0xb78] sm:$0xff] %vm5775, %v5486
        %6144 = vst.msk [vmem:[%s118 + $0xb80] sm:$0xff] %vm5775, %v5488
        %6145 = vst.msk [vmem:[%s118 + $0xb88] sm:$0xff] %vm5775, %v5490
        %6146 = vst.msk [vmem:[%s118 + $0xb90] sm:$0xff] %vm5775, %v5492
        %6147 = vst.msk [vmem:[%s118 + $0xb98] sm:$0xff] %vm5775, %v5494
        %6148 = vst.msk [vmem:[%s118 + $0xba0] sm:$0xff] %vm5775, %v5496
        %6149 = vst.msk [vmem:[%s118 + $0xba8] sm:$0xff] %vm5775, %v5498
        %6150 = vst.msk [vmem:[%s118 + $0xbb0] sm:$0xff] %vm5775, %v5500
        %6151 = vst.msk [vmem:[%s118 + $0xbb8] sm:$0xff] %vm5775, %v5502
        %6152 = vst.msk [vmem:[%s118 + $0xbc0] sm:$0xff] %vm5775, %v5504
        %6153 = vst.msk [vmem:[%s118 + $0xbc8] sm:$0xff] %vm5775, %v5506
        %6154 = vst.msk [vmem:[%s118 + $0xbd0] sm:$0xff] %vm5775, %v5508
        %6155 = vst.msk [vmem:[%s118 + $0xbd8] sm:$0xff] %vm5775, %v5510
        %6156 = vst.msk [vmem:[%s118 + $0xbe0] sm:$0xff] %vm5775, %v5512
        %6157 = vst.msk [vmem:[%s118 + $0xbe8] sm:$0xff] %vm5775, %v5514
        %6158 = vst.msk [vmem:[%s118 + $0xbf0] sm:$0xff] %vm5775, %v5516
        %6159 = vst.msk [vmem:[%s118 + $0xbf8] sm:$0xff] %vm5775, %v5518
        %6160 = vst.msk [vmem:[%s118 + $0xc00] sm:$0xff] %vm5775, %v5520
        %6161 = vst.msk [vmem:[%s118 + $0xc08] sm:$0xff] %vm5775, %v5522
        %6162 = vst.msk [vmem:[%s118 + $0xc10] sm:$0xff] %vm5775, %v5524
        %6163 = vst.msk [vmem:[%s118 + $0xc18] sm:$0xff] %vm5775, %v5526
        %6164 = vst.msk [vmem:[%s118 + $0xc20] sm:$0xff] %vm5775, %v5528
        %6165 = vst.msk [vmem:[%s118 + $0xc28] sm:$0xff] %vm5775, %v5530
        %6166 = vst.msk [vmem:[%s118 + $0xc30] sm:$0xff] %vm5775, %v5532
        %6167 = vst.msk [vmem:[%s118 + $0xc38] sm:$0xff] %vm5775, %v5534
        %6168 = vst.msk [vmem:[%s118 + $0xc40] sm:$0xff] %vm5775, %v5536
        %6169 = vst.msk [vmem:[%s118 + $0xc48] sm:$0xff] %vm5775, %v5538
        %6170 = vst.msk [vmem:[%s118 + $0xc50] sm:$0xff] %vm5775, %v5540
        %6171 = vst.msk [vmem:[%s118 + $0xc58] sm:$0xff] %vm5775, %v5542
        %6172 = vst.msk [vmem:[%s118 + $0xc60] sm:$0xff] %vm5775, %v5544
        %6173 = vst.msk [vmem:[%s118 + $0xc68] sm:$0xff] %vm5775, %v5546
        %6174 = vst.msk [vmem:[%s118 + $0xc70] sm:$0xff] %vm5775, %v5548
        %6175 = vst.msk [vmem:[%s118 + $0xc78] sm:$0xff] %vm5775, %v5550
        %6176 = vst.msk [vmem:[%s118 + $0xc80] sm:$0xff] %vm5775, %v5552
        %6177 = vst.msk [vmem:[%s118 + $0xc88] sm:$0xff] %vm5775, %v5554
        %6178 = vst.msk [vmem:[%s118 + $0xc90] sm:$0xff] %vm5775, %v5556
        %6179 = vst.msk [vmem:[%s118 + $0xc98] sm:$0xff] %vm5775, %v5558
        %6180 = vst.msk [vmem:[%s118 + $0xca0] sm:$0xff] %vm5775, %v5560
        %6181 = vst.msk [vmem:[%s118 + $0xca8] sm:$0xff] %vm5775, %v5562
        %6182 = vst.msk [vmem:[%s118 + $0xcb0] sm:$0xff] %vm5775, %v5564
        %6183 = vst.msk [vmem:[%s118 + $0xcb8] sm:$0xff] %vm5775, %v5566
        %6184 = vst.msk [vmem:[%s118 + $0xcc0] sm:$0xff] %vm5775, %v5568
        %6185 = vst.msk [vmem:[%s118 + $0xcc8] sm:$0xff] %vm5775, %v5570
        %6186 = vst.msk [vmem:[%s118 + $0xcd0] sm:$0xff] %vm5775, %v5572
        %6187 = vst.msk [vmem:[%s118 + $0xcd8] sm:$0xff] %vm5775, %v5574
        %6188 = vst.msk [vmem:[%s118 + $0xce0] sm:$0xff] %vm5775, %v5576
        %6189 = vst.msk [vmem:[%s118 + $0xce8] sm:$0xff] %vm5775, %v5578
        %6190 = vst.msk [vmem:[%s118 + $0xcf0] sm:$0xff] %vm5775, %v5580
        %6191 = vst.msk [vmem:[%s118 + $0xcf8] sm:$0xff] %vm5775, %v5582
        %6192 = vst.msk [vmem:[%s118 + $0xd00] sm:$0xff] %vm5775, %v5584
        %6193 = vst.msk [vmem:[%s118 + $0xd08] sm:$0xff] %vm5775, %v5586
        %6194 = vst.msk [vmem:[%s118 + $0xd10] sm:$0xff] %vm5775, %v5588
        %6195 = vst.msk [vmem:[%s118 + $0xd18] sm:$0xff] %vm5775, %v5590
        %6196 = vst.msk [vmem:[%s118 + $0xd20] sm:$0xff] %vm5775, %v5592
        %6197 = vst.msk [vmem:[%s118 + $0xd28] sm:$0xff] %vm5775, %v5594
        %6198 = vst.msk [vmem:[%s118 + $0xd30] sm:$0xff] %vm5775, %v5596
        %6199 = vst.msk [vmem:[%s118 + $0xd38] sm:$0xff] %vm5775, %v5598
        %6200 = vst.msk [vmem:[%s118 + $0xd40] sm:$0xff] %vm5775, %v5600
        %6201 = vst.msk [vmem:[%s118 + $0xd48] sm:$0xff] %vm5775, %v5602
        %6202 = vst.msk [vmem:[%s118 + $0xd50] sm:$0xff] %vm5775, %v5604
        %6203 = vst.msk [vmem:[%s118 + $0xd58] sm:$0xff] %vm5775, %v5606
        %6204 = vst.msk [vmem:[%s118 + $0xd60] sm:$0xff] %vm5775, %v5608
        %6205 = vst.msk [vmem:[%s118 + $0xd68] sm:$0xff] %vm5775, %v5610
        %6206 = vst.msk [vmem:[%s118 + $0xd70] sm:$0xff] %vm5775, %v5612
        %6207 = vst.msk [vmem:[%s118 + $0xd78] sm:$0xff] %vm5775, %v5614
        %6208 = vst.msk [vmem:[%s118 + $0xd80] sm:$0xff] %vm5775, %v5616
        %6209 = vst.msk [vmem:[%s118 + $0xd88] sm:$0xff] %vm5775, %v5618
        %6210 = vst.msk [vmem:[%s118 + $0xd90] sm:$0xff] %vm5775, %v5620
        %6211 = vst.msk [vmem:[%s118 + $0xd98] sm:$0xff] %vm5775, %v5622
        %6212 = vst.msk [vmem:[%s118 + $0xda0] sm:$0xff] %vm5775, %v5624
        %6213 = vst.msk [vmem:[%s118 + $0xda8] sm:$0xff] %vm5775, %v5626
        %6214 = vst.msk [vmem:[%s118 + $0xdb0] sm:$0xff] %vm5775, %v5628
        %6215 = vst.msk [vmem:[%s118 + $0xdb8] sm:$0xff] %vm5775, %v5630
        %6216 = vst.msk [vmem:[%s118 + $0xdc0] sm:$0xff] %vm5775, %v5632
        %6217 = vst.msk [vmem:[%s118 + $0xdc8] sm:$0xff] %vm5775, %v5634
        %6218 = vst.msk [vmem:[%s118 + $0xdd0] sm:$0xff] %vm5775, %v5636
        %6219 = vst.msk [vmem:[%s118 + $0xdd8] sm:$0xff] %vm5775, %v5638
        %6220 = vst.msk [vmem:[%s118 + $0xde0] sm:$0xff] %vm5775, %v5640
        %6221 = vst.msk [vmem:[%s118 + $0xde8] sm:$0xff] %vm5775, %v5642
        %6222 = vst.msk [vmem:[%s118 + $0xdf0] sm:$0xff] %vm5775, %v5644
        %6223 = vst.msk [vmem:[%s118 + $0xdf8] sm:$0xff] %vm5775, %v5646
        %6224 = vst.msk [vmem:[%s118 + $0xe00] sm:$0xff] %vm5775, %v5648
        %6225 = vst.msk [vmem:[%s118 + $0xe08] sm:$0xff] %vm5775, %v5650
        %6226 = vst.msk [vmem:[%s118 + $0xe10] sm:$0xff] %vm5775, %v5652
        %6227 = vst.msk [vmem:[%s118 + $0xe18] sm:$0xff] %vm5775, %v5654
        %6228 = vst.msk [vmem:[%s118 + $0xe20] sm:$0xff] %vm5775, %v5656
        %6229 = vst.msk [vmem:[%s118 + $0xe28] sm:$0xff] %vm5775, %v5658
        %6230 = vst.msk [vmem:[%s118 + $0xe30] sm:$0xff] %vm5775, %v5660
        %6231 = vst.msk [vmem:[%s118 + $0xe38] sm:$0xff] %vm5775, %v5662
        %6232 = vst.msk [vmem:[%s118 + $0xe40] sm:$0xff] %vm5775, %v5664
        %6233 = vst.msk [vmem:[%s118 + $0xe48] sm:$0xff] %vm5775, %v5666
        %6234 = vst.msk [vmem:[%s118 + $0xe50] sm:$0xff] %vm5775, %v5668
        %6235 = vst.msk [vmem:[%s118 + $0xe58] sm:$0xff] %vm5775, %v5670
        %6236 = vst.msk [vmem:[%s118 + $0xe60] sm:$0xff] %vm5775, %v5672
        %6237 = vst.msk [vmem:[%s118 + $0xe68] sm:$0xff] %vm5775, %v5674
        %6238 = vst.msk [vmem:[%s118 + $0xe70] sm:$0xff] %vm5775, %v5676
        %6239 = vst.msk [vmem:[%s118 + $0xe78] sm:$0xff] %vm5775, %v5678
        %6240 = vst.msk [vmem:[%s118 + $0xe80] sm:$0xff] %vm5775, %v5680
        %6241 = vst.msk [vmem:[%s118 + $0xe88] sm:$0xff] %vm5775, %v5682
        %6242 = vst.msk [vmem:[%s118 + $0xe90] sm:$0xff] %vm5775, %v5684
        %6243 = vst.msk [vmem:[%s118 + $0xe98] sm:$0xff] %vm5775, %v5686
        %6244 = vst.msk [vmem:[%s118 + $0xea0] sm:$0xff] %vm5775, %v5688
        %6245 = vst.msk [vmem:[%s118 + $0xea8] sm:$0xff] %vm5775, %v5690
        %6246 = vst.msk [vmem:[%s118 + $0xeb0] sm:$0xff] %vm5775, %v5692
        %6247 = vst.msk [vmem:[%s118 + $0xeb8] sm:$0xff] %vm5775, %v5694
        %6248 = vst.msk [vmem:[%s118 + $0xec0] sm:$0xff] %vm5775, %v5696
        %6249 = vst.msk [vmem:[%s118 + $0xec8] sm:$0xff] %vm5775, %v5698
        %6250 = vst.msk [vmem:[%s118 + $0xed0] sm:$0xff] %vm5775, %v5700
        %6251 = vst.msk [vmem:[%s118 + $0xed8] sm:$0xff] %vm5775, %v5702
        %6252 = vst.msk [vmem:[%s118 + $0xee0] sm:$0xff] %vm5775, %v5704
        %6253 = vst.msk [vmem:[%s118 + $0xee8] sm:$0xff] %vm5775, %v5706
        %6254 = vst.msk [vmem:[%s118 + $0xef0] sm:$0xff] %vm5775, %v5708
        %6255 = vst.msk [vmem:[%s118 + $0xef8] sm:$0xff] %vm5775, %v5710
        %6256 = vst.msk [vmem:[%s118 + $0xf00] sm:$0xff] %vm5775, %v5712
        %6257 = vst.msk [vmem:[%s118 + $0xf08] sm:$0xff] %vm5775, %v5714
        %6258 = vst.msk [vmem:[%s118 + $0xf10] sm:$0xff] %vm5775, %v5716
        %6259 = vst.msk [vmem:[%s118 + $0xf18] sm:$0xff] %vm5775, %v5718
        %6260 = vst.msk [vmem:[%s118 + $0xf20] sm:$0xff] %vm5775, %v5720
        %6261 = vst.msk [vmem:[%s118 + $0xf28] sm:$0xff] %vm5775, %v5722
        %6262 = vst.msk [vmem:[%s118 + $0xf30] sm:$0xff] %vm5775, %v5724
        %6263 = vst.msk [vmem:[%s118 + $0xf38] sm:$0xff] %vm5775, %v5726
        %6264 = vst.msk [vmem:[%s118 + $0xf40] sm:$0xff] %vm5775, %v5728
        %6265 = vst.msk [vmem:[%s118 + $0xf48] sm:$0xff] %vm5775, %v5730
        %6266 = vst.msk [vmem:[%s118 + $0xf50] sm:$0xff] %vm5775, %v5732
        %6267 = vst.msk [vmem:[%s118 + $0xf58] sm:$0xff] %vm5775, %v5734
        %6268 = vst.msk [vmem:[%s118 + $0xf60] sm:$0xff] %vm5775, %v5736
        %6269 = vst.msk [vmem:[%s118 + $0xf68] sm:$0xff] %vm5775, %v5738
        %6270 = vst.msk [vmem:[%s118 + $0xf70] sm:$0xff] %vm5775, %v5740
        %6271 = vst.msk [vmem:[%s118 + $0xf78] sm:$0xff] %vm5775, %v5742
        %6272 = vst.msk [vmem:[%s118 + $0xf80] sm:$0xff] %vm5775, %v5744
        %6273 = vst.msk [vmem:[%s118 + $0xf88] sm:$0xff] %vm5775, %v5746
        %6274 = vst.msk [vmem:[%s118 + $0xf90] sm:$0xff] %vm5775, %v5748
        %6275 = vst.msk [vmem:[%s118 + $0xf98] sm:$0xff] %vm5775, %v5750
        %6276 = vst.msk [vmem:[%s118 + $0xfa0] sm:$0xff] %vm5775, %v5752
        %6277 = vst.msk [vmem:[%s118 + $0xfa8] sm:$0xff] %vm5775, %v5754
        %6278 = vst.msk [vmem:[%s118 + $0xfb0] sm:$0xff] %vm5775, %v5756
        %6279 = vst.msk [vmem:[%s118 + $0xfb8] sm:$0xff] %vm5775, %v5758
        %6280 = vst.msk [vmem:[%s118 + $0xfc0] sm:$0xff] %vm5775, %v5760
        %6281 = vst.msk [vmem:[%s118 + $0xfc8] sm:$0xff] %vm5775, %v5762
        %6282 = vst.msk [vmem:[%s118 + $0xfd0] sm:$0xff] %vm5775, %v5764
        %6283 = vst.msk [vmem:[%s118 + $0xfd8] sm:$0xff] %vm5775, %v5766
        %6284 = vst.msk [vmem:[%s118 + $0xfe0] sm:$0xff] %vm5775, %v5768
        %6285 = vst.msk [vmem:[%s118 + $0xfe8] sm:$0xff] %vm5775, %v5770
        %6286 = vst.msk [vmem:[%s118 + $0xff0] sm:$0xff] %vm5775, %v5772
        %6287 = vst.msk [vmem:[%s118 + $0xff8] sm:$0xff] %vm5775, %v5774
        %s6288 = sand.u32 %s46, 1
        %s6289 = sand.u32 %s46, 1
        %s6290 = smul.addr %s6289, 4096
        %s6291 = scalar_lea.vmem [#allocation2], %s6290
        // Predicated region
        $region25: #{tpu_custom_call.1} parent=23 // pred_check
          %p6292 = pneg %p56
        $region26: #{tpu_custom_call.1} parent=23 // pred_check_branch
          %6294 = sbr.rel (%p6292) target = $region28
        $region27: #{tpu_custom_call.1} parent=23 // pred_region
          %s6295 = smul.u32 512, %s12
          %s6296 = ssub.s32 625, %s6295
          %p6297 = scmp.lt.s32.totalorder %s6296, 512
          %s6298 = scalar_select %p6297, %s6296, 512
          %s6299 = smul.u32 128, %s6298
          %p6300 = scmp.ne.s32.totalorder 0, %s6299
          %s6301 = smul.addr %s6295, 8
          %s6302 = scalar_lea.vmem %s1, %s6301
          // Predicated region
          $region29: #{tpu_custom_call.1} parent=27 // pred_check
            %p6303 = pneg %p6300
          $region30: #{tpu_custom_call.1} parent=27 // pred_check_branch
            %6305 = sbr.rel (%p6303) target = $region32
          $region31: #{tpu_custom_call.1} parent=27 // pred_region
            // Predicated region
            $region33: #{tpu_custom_call.1} parent=31 // pred_check
              _
            $region34: #{tpu_custom_call.1} parent=31 // pred_check_branch
              %6307 = sbr.rel (0) target = $region36
            $region35: #{tpu_custom_call.1} parent=31 // pred_region
              // Predicated region
              $region55: #{tpu_custom_call.1} parent=35 // pred_check
                _
              $region56: #{tpu_custom_call.1} parent=35 // pred_check_branch
                %6482 = sbr.rel (0) target = $region58
              $region57: #{tpu_custom_call.1} parent=35 // pred_region
                %s6483 = sshrl.u32 %s6298, 6
                // While loop
                $region59: #{tpu_custom_call.1} parent=57 // loop_pre_header
                  _
                $region60: #{tpu_custom_call.1} parent=57 // loop_header
                  %s6485 = sphi 0, %s6487
                  %p6486 = scmp.ge.s32.totalorder %s6485, %s6483
                  %s6490 = sphi 0, %s6623
                  %s6491 = sphi %s6291, %s6626
                  %s6492 = sphi %s6302, %s6627
                $region61: #{tpu_custom_call.1} parent=57 // loop_header_branch
                  %6489 = sbr.rel (%p6486) target = $region65
                $region62: #{tpu_custom_call.1} parent=57 // loop_body
                  %v6493 = vld [vmem:[%s6491] sm:$0xff]
                  %6494 = vst [vmem:[%s6492] sm:$0xff] %v6493
                  %v6495 = vld [vmem:[%s6491 + $0x8] sm:$0xff]
                  %6496 = vst [vmem:[%s6492 + $0x8] sm:$0xff] %v6495
                  %v6497 = vld [vmem:[%s6491 + $0x10] sm:$0xff]
                  %6498 = vst [vmem:[%s6492 + $0x10] sm:$0xff] %v6497
                  %v6499 = vld [vmem:[%s6491 + $0x18] sm:$0xff]
                  %6500 = vst [vmem:[%s6492 + $0x18] sm:$0xff] %v6499
                  %v6501 = vld [vmem:[%s6491 + $0x20] sm:$0xff]
                  %6502 = vst [vmem:[%s6492 + $0x20] sm:$0xff] %v6501
                  %v6503 = vld [vmem:[%s6491 + $0x28] sm:$0xff]
                  %6504 = vst [vmem:[%s6492 + $0x28] sm:$0xff] %v6503
                  %v6505 = vld [vmem:[%s6491 + $0x30] sm:$0xff]
                  %6506 = vst [vmem:[%s6492 + $0x30] sm:$0xff] %v6505
                  %v6507 = vld [vmem:[%s6491 + $0x38] sm:$0xff]
                  %6508 = vst [vmem:[%s6492 + $0x38] sm:$0xff] %v6507
                  %v6509 = vld [vmem:[%s6491 + $0x40] sm:$0xff]
                  %6510 = vst [vmem:[%s6492 + $0x40] sm:$0xff] %v6509
                  %v6511 = vld [vmem:[%s6491 + $0x48] sm:$0xff]
                  %6512 = vst [vmem:[%s6492 + $0x48] sm:$0xff] %v6511
                  %v6513 = vld [vmem:[%s6491 + $0x50] sm:$0xff]
                  %6514 = vst [vmem:[%s6492 + $0x50] sm:$0xff] %v6513
                  %v6515 = vld [vmem:[%s6491 + $0x58] sm:$0xff]
                  %6516 = vst [vmem:[%s6492 + $0x58] sm:$0xff] %v6515
                  %v6517 = vld [vmem:[%s6491 + $0x60] sm:$0xff]
                  %6518 = vst [vmem:[%s6492 + $0x60] sm:$0xff] %v6517
                  %v6519 = vld [vmem:[%s6491 + $0x68] sm:$0xff]
                  %6520 = vst [vmem:[%s6492 + $0x68] sm:$0xff] %v6519
                  %v6521 = vld [vmem:[%s6491 + $0x70] sm:$0xff]
                  %6522 = vst [vmem:[%s6492 + $0x70] sm:$0xff] %v6521
                  %v6523 = vld [vmem:[%s6491 + $0x78] sm:$0xff]
                  %6524 = vst [vmem:[%s6492 + $0x78] sm:$0xff] %v6523
                  %v6525 = vld [vmem:[%s6491 + $0x80] sm:$0xff]
                  %6526 = vst [vmem:[%s6492 + $0x80] sm:$0xff] %v6525
                  %v6527 = vld [vmem:[%s6491 + $0x88] sm:$0xff]
                  %6528 = vst [vmem:[%s6492 + $0x88] sm:$0xff] %v6527
                  %v6529 = vld [vmem:[%s6491 + $0x90] sm:$0xff]
                  %6530 = vst [vmem:[%s6492 + $0x90] sm:$0xff] %v6529
                  %v6531 = vld [vmem:[%s6491 + $0x98] sm:$0xff]
                  %6532 = vst [vmem:[%s6492 + $0x98] sm:$0xff] %v6531
                  %v6533 = vld [vmem:[%s6491 + $0xa0] sm:$0xff]
                  %6534 = vst [vmem:[%s6492 + $0xa0] sm:$0xff] %v6533
                  %v6535 = vld [vmem:[%s6491 + $0xa8] sm:$0xff]
                  %6536 = vst [vmem:[%s6492 + $0xa8] sm:$0xff] %v6535
                  %v6537 = vld [vmem:[%s6491 + $0xb0] sm:$0xff]
                  %6538 = vst [vmem:[%s6492 + $0xb0] sm:$0xff] %v6537
                  %v6539 = vld [vmem:[%s6491 + $0xb8] sm:$0xff]
                  %6540 = vst [vmem:[%s6492 + $0xb8] sm:$0xff] %v6539
                  %v6541 = vld [vmem:[%s6491 + $0xc0] sm:$0xff]
                  %6542 = vst [vmem:[%s6492 + $0xc0] sm:$0xff] %v6541
                  %v6543 = vld [vmem:[%s6491 + $0xc8] sm:$0xff]
                  %6544 = vst [vmem:[%s6492 + $0xc8] sm:$0xff] %v6543
                  %v6545 = vld [vmem:[%s6491 + $0xd0] sm:$0xff]
                  %6546 = vst [vmem:[%s6492 + $0xd0] sm:$0xff] %v6545
                  %v6547 = vld [vmem:[%s6491 + $0xd8] sm:$0xff]
                  %6548 = vst [vmem:[%s6492 + $0xd8] sm:$0xff] %v6547
                  %v6549 = vld [vmem:[%s6491 + $0xe0] sm:$0xff]
                  %6550 = vst [vmem:[%s6492 + $0xe0] sm:$0xff] %v6549
                  %v6551 = vld [vmem:[%s6491 + $0xe8] sm:$0xff]
                  %6552 = vst [vmem:[%s6492 + $0xe8] sm:$0xff] %v6551
                  %v6553 = vld [vmem:[%s6491 + $0xf0] sm:$0xff]
                  %6554 = vst [vmem:[%s6492 + $0xf0] sm:$0xff] %v6553
                  %v6555 = vld [vmem:[%s6491 + $0xf8] sm:$0xff]
                  %6556 = vst [vmem:[%s6492 + $0xf8] sm:$0xff] %v6555
                  %v6557 = vld [vmem:[%s6491 + $0x100] sm:$0xff]
                  %6558 = vst [vmem:[%s6492 + $0x100] sm:$0xff] %v6557
                  %v6559 = vld [vmem:[%s6491 + $0x108] sm:$0xff]
                  %6560 = vst [vmem:[%s6492 + $0x108] sm:$0xff] %v6559
                  %v6561 = vld [vmem:[%s6491 + $0x110] sm:$0xff]
                  %6562 = vst [vmem:[%s6492 + $0x110] sm:$0xff] %v6561
                  %v6563 = vld [vmem:[%s6491 + $0x118] sm:$0xff]
                  %6564 = vst [vmem:[%s6492 + $0x118] sm:$0xff] %v6563
                  %v6565 = vld [vmem:[%s6491 + $0x120] sm:$0xff]
                  %6566 = vst [vmem:[%s6492 + $0x120] sm:$0xff] %v6565
                  %v6567 = vld [vmem:[%s6491 + $0x128] sm:$0xff]
                  %6568 = vst [vmem:[%s6492 + $0x128] sm:$0xff] %v6567
                  %v6569 = vld [vmem:[%s6491 + $0x130] sm:$0xff]
                  %6570 = vst [vmem:[%s6492 + $0x130] sm:$0xff] %v6569
                  %v6571 = vld [vmem:[%s6491 + $0x138] sm:$0xff]
                  %6572 = vst [vmem:[%s6492 + $0x138] sm:$0xff] %v6571
                  %v6573 = vld [vmem:[%s6491 + $0x140] sm:$0xff]
                  %6574 = vst [vmem:[%s6492 + $0x140] sm:$0xff] %v6573
                  %v6575 = vld [vmem:[%s6491 + $0x148] sm:$0xff]
                  %6576 = vst [vmem:[%s6492 + $0x148] sm:$0xff] %v6575
                  %v6577 = vld [vmem:[%s6491 + $0x150] sm:$0xff]
                  %6578 = vst [vmem:[%s6492 + $0x150] sm:$0xff] %v6577
                  %v6579 = vld [vmem:[%s6491 + $0x158] sm:$0xff]
                  %6580 = vst [vmem:[%s6492 + $0x158] sm:$0xff] %v6579
                  %v6581 = vld [vmem:[%s6491 + $0x160] sm:$0xff]
                  %6582 = vst [vmem:[%s6492 + $0x160] sm:$0xff] %v6581
                  %v6583 = vld [vmem:[%s6491 + $0x168] sm:$0xff]
                  %6584 = vst [vmem:[%s6492 + $0x168] sm:$0xff] %v6583
                  %v6585 = vld [vmem:[%s6491 + $0x170] sm:$0xff]
                  %6586 = vst [vmem:[%s6492 + $0x170] sm:$0xff] %v6585
                  %v6587 = vld [vmem:[%s6491 + $0x178] sm:$0xff]
                  %6588 = vst [vmem:[%s6492 + $0x178] sm:$0xff] %v6587
                  %v6589 = vld [vmem:[%s6491 + $0x180] sm:$0xff]
                  %6590 = vst [vmem:[%s6492 + $0x180] sm:$0xff] %v6589
                  %v6591 = vld [vmem:[%s6491 + $0x188] sm:$0xff]
                  %6592 = vst [vmem:[%s6492 + $0x188] sm:$0xff] %v6591
                  %v6593 = vld [vmem:[%s6491 + $0x190] sm:$0xff]
                  %6594 = vst [vmem:[%s6492 + $0x190] sm:$0xff] %v6593
                  %v6595 = vld [vmem:[%s6491 + $0x198] sm:$0xff]
                  %6596 = vst [vmem:[%s6492 + $0x198] sm:$0xff] %v6595
                  %v6597 = vld [vmem:[%s6491 + $0x1a0] sm:$0xff]
                  %6598 = vst [vmem:[%s6492 + $0x1a0] sm:$0xff] %v6597
                  %v6599 = vld [vmem:[%s6491 + $0x1a8] sm:$0xff]
                  %6600 = vst [vmem:[%s6492 + $0x1a8] sm:$0xff] %v6599
                  %v6601 = vld [vmem:[%s6491 + $0x1b0] sm:$0xff]
                  %6602 = vst [vmem:[%s6492 + $0x1b0] sm:$0xff] %v6601
                  %v6603 = vld [vmem:[%s6491 + $0x1b8] sm:$0xff]
                  %6604 = vst [vmem:[%s6492 + $0x1b8] sm:$0xff] %v6603
                  %v6605 = vld [vmem:[%s6491 + $0x1c0] sm:$0xff]
                  %6606 = vst [vmem:[%s6492 + $0x1c0] sm:$0xff] %v6605
                  %v6607 = vld [vmem:[%s6491 + $0x1c8] sm:$0xff]
                  %6608 = vst [vmem:[%s6492 + $0x1c8] sm:$0xff] %v6607
                  %v6609 = vld [vmem:[%s6491 + $0x1d0] sm:$0xff]
                  %6610 = vst [vmem:[%s6492 + $0x1d0] sm:$0xff] %v6609
                  %v6611 = vld [vmem:[%s6491 + $0x1d8] sm:$0xff]
                  %6612 = vst [vmem:[%s6492 + $0x1d8] sm:$0xff] %v6611
                  %v6613 = vld [vmem:[%s6491 + $0x1e0] sm:$0xff]
                  %6614 = vst [vmem:[%s6492 + $0x1e0] sm:$0xff] %v6613
                  %v6615 = vld [vmem:[%s6491 + $0x1e8] sm:$0xff]
                  %6616 = vst [vmem:[%s6492 + $0x1e8] sm:$0xff] %v6615
                  %v6617 = vld [vmem:[%s6491 + $0x1f0] sm:$0xff]
                  %6618 = vst [vmem:[%s6492 + $0x1f0] sm:$0xff] %v6617
                  %v6619 = vld [vmem:[%s6491 + $0x1f8] sm:$0xff]
                  %6620 = vst [vmem:[%s6492 + $0x1f8] sm:$0xff] %v6619
                  %s6621 = sadd.s32 1, %s6490
                  %p6622 = scmp.ge.s32.totalorder %s6621, %s6483
                  %s6623 = scalar_select %p6622, 0, %s6621
                  %s6624 = smul.u32 %s6623, 512
                  %s6625 = smul.u32 %s6623, 512
                  %s6626 = scalar_lea.vmem %s6291, %s6624 [#allocation2]
                  %s6627 = scalar_lea.vmem %s6302, %s6625
                $region63: #{tpu_custom_call.1} parent=57 // loop_footer
                  %s6487 = sadd.s32 %s6485, 1
                $region64: #{tpu_custom_call.1} parent=57 // loop_footer_branch
                  %6484 = sbr.rel target = $region60
                $region65: #{tpu_custom_call.1} parent=57 // loop_exit
                  _
                %s6628 = sshrl.u32 %s6298, 6
                %s6629 = sand.u32 %s6298, 63
                %s6630 = smul.u32 %s6628, 64
                %s6631 = smul.u32 8, %s6630
                %s6632 = scalar_lea.vmem %s6291, %s6631 [#allocation2]
                %s6633 = smul.u32 8, %s6630
                %s6634 = scalar_lea.vmem %s6302, %s6633
                // While loop
                $region66: #{tpu_custom_call.1} parent=57 // loop_pre_header
                  _
                $region67: #{tpu_custom_call.1} parent=57 // loop_header
                  %s6636 = sphi 0, %s6638
                  %p6637 = scmp.ge.s32.totalorder %s6636, %s6629
                  %s6641 = sphi 0, %s6648
                  %s6642 = sphi %s6632, %s6651
                  %s6643 = sphi %s6634, %s6652
                $region68: #{tpu_custom_call.1} parent=57 // loop_header_branch
                  %6640 = sbr.rel (%p6637) target = $region72
                $region69: #{tpu_custom_call.1} parent=57 // loop_body
                  %v6644 = vld [vmem:[%s6642] sm:$0xff]
                  %6645 = vst [vmem:[%s6643] sm:$0xff] %v6644
                  %s6646 = sadd.s32 1, %s6641
                  %p6647 = scmp.ge.s32.totalorder %s6646, %s6629
                  %s6648 = scalar_select %p6647, 0, %s6646
                  %s6649 = smul.u32 %s6648, 8
                  %s6650 = smul.u32 %s6648, 8
                  %s6651 = scalar_lea.vmem %s6632, %s6649 [#allocation2]
                  %s6652 = scalar_lea.vmem %s6634, %s6650
                $region70: #{tpu_custom_call.1} parent=57 // loop_footer
                  %s6638 = sadd.s32 %s6636, 1
                $region71: #{tpu_custom_call.1} parent=57 // loop_footer_branch
                  %6635 = sbr.rel target = $region67
                $region72: #{tpu_custom_call.1} parent=57 // loop_exit
                  _
              $region58: #{tpu_custom_call.1} parent=35 // pred_fallthru
                _
              // Predicated region
              $region73: #{tpu_custom_call.1} parent=35 // pred_check
                _
              $region74: #{tpu_custom_call.1} parent=35 // pred_check_branch
                %6654 = sbr.rel target = $region76
              $region75: #{tpu_custom_call.1} parent=35 // pred_region
                _
              $region76: #{tpu_custom_call.1} parent=35 // pred_fallthru
                _
            $region36: #{tpu_custom_call.1} parent=31 // pred_fallthru
              _
            // Predicated region
            $region37: #{tpu_custom_call.1} parent=31 // pred_check
              _
            $region38: #{tpu_custom_call.1} parent=31 // pred_check_branch
              %6309 = sbr.rel target = $region40
            $region39: #{tpu_custom_call.1} parent=31 // pred_region
              %s6311 = sshrl.u32 %s6298, 6
              // While loop
              $region41: #{tpu_custom_call.1} parent=39 // loop_pre_header
                _
              $region42: #{tpu_custom_call.1} parent=39 // loop_header
                %s6313 = sphi 0, %s6315
                %p6314 = scmp.ge.s32.totalorder %s6313, %s6311
                %s6318 = sphi 0, %s6451
                %s6319 = sphi %s6291, %s6454
                %s6320 = sphi %s6302, %s6455
              $region43: #{tpu_custom_call.1} parent=39 // loop_header_branch
                %6317 = sbr.rel (%p6314) target = $region47
              $region44: #{tpu_custom_call.1} parent=39 // loop_body
                %v6321 = vld [vmem:[%s6319] sm:$0xff]
                %6322 = vst [vmem:[%s6320] sm:$0xff] %v6321
                %v6323 = vld [vmem:[%s6319 + $0x8] sm:$0xff]
                %6324 = vst [vmem:[%s6320 + $0x8] sm:$0xff] %v6323
                %v6325 = vld [vmem:[%s6319 + $0x10] sm:$0xff]
                %6326 = vst [vmem:[%s6320 + $0x10] sm:$0xff] %v6325
                %v6327 = vld [vmem:[%s6319 + $0x18] sm:$0xff]
                %6328 = vst [vmem:[%s6320 + $0x18] sm:$0xff] %v6327
                %v6329 = vld [vmem:[%s6319 + $0x20] sm:$0xff]
                %6330 = vst [vmem:[%s6320 + $0x20] sm:$0xff] %v6329
                %v6331 = vld [vmem:[%s6319 + $0x28] sm:$0xff]
                %6332 = vst [vmem:[%s6320 + $0x28] sm:$0xff] %v6331
                %v6333 = vld [vmem:[%s6319 + $0x30] sm:$0xff]
                %6334 = vst [vmem:[%s6320 + $0x30] sm:$0xff] %v6333
                %v6335 = vld [vmem:[%s6319 + $0x38] sm:$0xff]
                %6336 = vst [vmem:[%s6320 + $0x38] sm:$0xff] %v6335
                %v6337 = vld [vmem:[%s6319 + $0x40] sm:$0xff]
                %6338 = vst [vmem:[%s6320 + $0x40] sm:$0xff] %v6337
                %v6339 = vld [vmem:[%s6319 + $0x48] sm:$0xff]
                %6340 = vst [vmem:[%s6320 + $0x48] sm:$0xff] %v6339
                %v6341 = vld [vmem:[%s6319 + $0x50] sm:$0xff]
                %6342 = vst [vmem:[%s6320 + $0x50] sm:$0xff] %v6341
                %v6343 = vld [vmem:[%s6319 + $0x58] sm:$0xff]
                %6344 = vst [vmem:[%s6320 + $0x58] sm:$0xff] %v6343
                %v6345 = vld [vmem:[%s6319 + $0x60] sm:$0xff]
                %6346 = vst [vmem:[%s6320 + $0x60] sm:$0xff] %v6345
                %v6347 = vld [vmem:[%s6319 + $0x68] sm:$0xff]
                %6348 = vst [vmem:[%s6320 + $0x68] sm:$0xff] %v6347
                %v6349 = vld [vmem:[%s6319 + $0x70] sm:$0xff]
                %6350 = vst [vmem:[%s6320 + $0x70] sm:$0xff] %v6349
                %v6351 = vld [vmem:[%s6319 + $0x78] sm:$0xff]
                %6352 = vst [vmem:[%s6320 + $0x78] sm:$0xff] %v6351
                %v6353 = vld [vmem:[%s6319 + $0x80] sm:$0xff]
                %6354 = vst [vmem:[%s6320 + $0x80] sm:$0xff] %v6353
                %v6355 = vld [vmem:[%s6319 + $0x88] sm:$0xff]
                %6356 = vst [vmem:[%s6320 + $0x88] sm:$0xff] %v6355
                %v6357 = vld [vmem:[%s6319 + $0x90] sm:$0xff]
                %6358 = vst [vmem:[%s6320 + $0x90] sm:$0xff] %v6357
                %v6359 = vld [vmem:[%s6319 + $0x98] sm:$0xff]
                %6360 = vst [vmem:[%s6320 + $0x98] sm:$0xff] %v6359
                %v6361 = vld [vmem:[%s6319 + $0xa0] sm:$0xff]
                %6362 = vst [vmem:[%s6320 + $0xa0] sm:$0xff] %v6361
                %v6363 = vld [vmem:[%s6319 + $0xa8] sm:$0xff]
                %6364 = vst [vmem:[%s6320 + $0xa8] sm:$0xff] %v6363
                %v6365 = vld [vmem:[%s6319 + $0xb0] sm:$0xff]
                %6366 = vst [vmem:[%s6320 + $0xb0] sm:$0xff] %v6365
                %v6367 = vld [vmem:[%s6319 + $0xb8] sm:$0xff]
                %6368 = vst [vmem:[%s6320 + $0xb8] sm:$0xff] %v6367
                %v6369 = vld [vmem:[%s6319 + $0xc0] sm:$0xff]
                %6370 = vst [vmem:[%s6320 + $0xc0] sm:$0xff] %v6369
                %v6371 = vld [vmem:[%s6319 + $0xc8] sm:$0xff]
                %6372 = vst [vmem:[%s6320 + $0xc8] sm:$0xff] %v6371
                %v6373 = vld [vmem:[%s6319 + $0xd0] sm:$0xff]
                %6374 = vst [vmem:[%s6320 + $0xd0] sm:$0xff] %v6373
                %v6375 = vld [vmem:[%s6319 + $0xd8] sm:$0xff]
                %6376 = vst [vmem:[%s6320 + $0xd8] sm:$0xff] %v6375
                %v6377 = vld [vmem:[%s6319 + $0xe0] sm:$0xff]
                %6378 = vst [vmem:[%s6320 + $0xe0] sm:$0xff] %v6377
                %v6379 = vld [vmem:[%s6319 + $0xe8] sm:$0xff]
                %6380 = vst [vmem:[%s6320 + $0xe8] sm:$0xff] %v6379
                %v6381 = vld [vmem:[%s6319 + $0xf0] sm:$0xff]
                %6382 = vst [vmem:[%s6320 + $0xf0] sm:$0xff] %v6381
                %v6383 = vld [vmem:[%s6319 + $0xf8] sm:$0xff]
                %6384 = vst [vmem:[%s6320 + $0xf8] sm:$0xff] %v6383
                %v6385 = vld [vmem:[%s6319 + $0x100] sm:$0xff]
                %6386 = vst [vmem:[%s6320 + $0x100] sm:$0xff] %v6385
                %v6387 = vld [vmem:[%s6319 + $0x108] sm:$0xff]
                %6388 = vst [vmem:[%s6320 + $0x108] sm:$0xff] %v6387
                %v6389 = vld [vmem:[%s6319 + $0x110] sm:$0xff]
                %6390 = vst [vmem:[%s6320 + $0x110] sm:$0xff] %v6389
                %v6391 = vld [vmem:[%s6319 + $0x118] sm:$0xff]
                %6392 = vst [vmem:[%s6320 + $0x118] sm:$0xff] %v6391
                %v6393 = vld [vmem:[%s6319 + $0x120] sm:$0xff]
                %6394 = vst [vmem:[%s6320 + $0x120] sm:$0xff] %v6393
                %v6395 = vld [vmem:[%s6319 + $0x128] sm:$0xff]
                %6396 = vst [vmem:[%s6320 + $0x128] sm:$0xff] %v6395
                %v6397 = vld [vmem:[%s6319 + $0x130] sm:$0xff]
                %6398 = vst [vmem:[%s6320 + $0x130] sm:$0xff] %v6397
                %v6399 = vld [vmem:[%s6319 + $0x138] sm:$0xff]
                %6400 = vst [vmem:[%s6320 + $0x138] sm:$0xff] %v6399
                %v6401 = vld [vmem:[%s6319 + $0x140] sm:$0xff]
                %6402 = vst [vmem:[%s6320 + $0x140] sm:$0xff] %v6401
                %v6403 = vld [vmem:[%s6319 + $0x148] sm:$0xff]
                %6404 = vst [vmem:[%s6320 + $0x148] sm:$0xff] %v6403
                %v6405 = vld [vmem:[%s6319 + $0x150] sm:$0xff]
                %6406 = vst [vmem:[%s6320 + $0x150] sm:$0xff] %v6405
                %v6407 = vld [vmem:[%s6319 + $0x158] sm:$0xff]
                %6408 = vst [vmem:[%s6320 + $0x158] sm:$0xff] %v6407
                %v6409 = vld [vmem:[%s6319 + $0x160] sm:$0xff]
                %6410 = vst [vmem:[%s6320 + $0x160] sm:$0xff] %v6409
                %v6411 = vld [vmem:[%s6319 + $0x168] sm:$0xff]
                %6412 = vst [vmem:[%s6320 + $0x168] sm:$0xff] %v6411
                %v6413 = vld [vmem:[%s6319 + $0x170] sm:$0xff]
                %6414 = vst [vmem:[%s6320 + $0x170] sm:$0xff] %v6413
                %v6415 = vld [vmem:[%s6319 + $0x178] sm:$0xff]
                %6416 = vst [vmem:[%s6320 + $0x178] sm:$0xff] %v6415
                %v6417 = vld [vmem:[%s6319 + $0x180] sm:$0xff]
                %6418 = vst [vmem:[%s6320 + $0x180] sm:$0xff] %v6417
                %v6419 = vld [vmem:[%s6319 + $0x188] sm:$0xff]
                %6420 = vst [vmem:[%s6320 + $0x188] sm:$0xff] %v6419
                %v6421 = vld [vmem:[%s6319 + $0x190] sm:$0xff]
                %6422 = vst [vmem:[%s6320 + $0x190] sm:$0xff] %v6421
                %v6423 = vld [vmem:[%s6319 + $0x198] sm:$0xff]
                %6424 = vst [vmem:[%s6320 + $0x198] sm:$0xff] %v6423
                %v6425 = vld [vmem:[%s6319 + $0x1a0] sm:$0xff]
                %6426 = vst [vmem:[%s6320 + $0x1a0] sm:$0xff] %v6425
                %v6427 = vld [vmem:[%s6319 + $0x1a8] sm:$0xff]
                %6428 = vst [vmem:[%s6320 + $0x1a8] sm:$0xff] %v6427
                %v6429 = vld [vmem:[%s6319 + $0x1b0] sm:$0xff]
                %6430 = vst [vmem:[%s6320 + $0x1b0] sm:$0xff] %v6429
                %v6431 = vld [vmem:[%s6319 + $0x1b8] sm:$0xff]
                %6432 = vst [vmem:[%s6320 + $0x1b8] sm:$0xff] %v6431
                %v6433 = vld [vmem:[%s6319 + $0x1c0] sm:$0xff]
                %6434 = vst [vmem:[%s6320 + $0x1c0] sm:$0xff] %v6433
                %v6435 = vld [vmem:[%s6319 + $0x1c8] sm:$0xff]
                %6436 = vst [vmem:[%s6320 + $0x1c8] sm:$0xff] %v6435
                %v6437 = vld [vmem:[%s6319 + $0x1d0] sm:$0xff]
                %6438 = vst [vmem:[%s6320 + $0x1d0] sm:$0xff] %v6437
                %v6439 = vld [vmem:[%s6319 + $0x1d8] sm:$0xff]
                %6440 = vst [vmem:[%s6320 + $0x1d8] sm:$0xff] %v6439
                %v6441 = vld [vmem:[%s6319 + $0x1e0] sm:$0xff]
                %6442 = vst [vmem:[%s6320 + $0x1e0] sm:$0xff] %v6441
                %v6443 = vld [vmem:[%s6319 + $0x1e8] sm:$0xff]
                %6444 = vst [vmem:[%s6320 + $0x1e8] sm:$0xff] %v6443
                %v6445 = vld [vmem:[%s6319 + $0x1f0] sm:$0xff]
                %6446 = vst [vmem:[%s6320 + $0x1f0] sm:$0xff] %v6445
                %v6447 = vld [vmem:[%s6319 + $0x1f8] sm:$0xff]
                %6448 = vst [vmem:[%s6320 + $0x1f8] sm:$0xff] %v6447
                %s6449 = sadd.s32 1, %s6318
                %p6450 = scmp.ge.s32.totalorder %s6449, %s6311
                %s6451 = scalar_select %p6450, 0, %s6449
                %s6452 = smul.u32 %s6451, 512
                %s6453 = smul.u32 %s6451, 512
                %s6454 = scalar_lea.vmem %s6291, %s6452 [#allocation2]
                %s6455 = scalar_lea.vmem %s6302, %s6453
              $region45: #{tpu_custom_call.1} parent=39 // loop_footer
                %s6315 = sadd.s32 %s6313, 1
              $region46: #{tpu_custom_call.1} parent=39 // loop_footer_branch
                %6312 = sbr.rel target = $region42
              $region47: #{tpu_custom_call.1} parent=39 // loop_exit
                _
              %s6456 = sshrl.u32 %s6298, 6
              %s6457 = sand.u32 %s6298, 63
              %s6458 = smul.u32 %s6456, 64
              %s6459 = smul.u32 8, %s6458
              %s6460 = scalar_lea.vmem %s6291, %s6459 [#allocation2]
              %s6461 = smul.u32 8, %s6458
              %s6462 = scalar_lea.vmem %s6302, %s6461
              // While loop
              $region48: #{tpu_custom_call.1} parent=39 // loop_pre_header
                _
              $region49: #{tpu_custom_call.1} parent=39 // loop_header
                %s6464 = sphi 0, %s6466
                %p6465 = scmp.ge.s32.totalorder %s6464, %s6457
                %s6469 = sphi 0, %s6476
                %s6470 = sphi %s6460, %s6479
                %s6471 = sphi %s6462, %s6480
              $region50: #{tpu_custom_call.1} parent=39 // loop_header_branch
                %6468 = sbr.rel (%p6465) target = $region54
              $region51: #{tpu_custom_call.1} parent=39 // loop_body
                %v6472 = vld [vmem:[%s6470] sm:$0xff]
                %6473 = vst [vmem:[%s6471] sm:$0xff] %v6472
                %s6474 = sadd.s32 1, %s6469
                %p6475 = scmp.ge.s32.totalorder %s6474, %s6457
                %s6476 = scalar_select %p6475, 0, %s6474
                %s6477 = smul.u32 %s6476, 8
                %s6478 = smul.u32 %s6476, 8
                %s6479 = scalar_lea.vmem %s6460, %s6477 [#allocation2]
                %s6480 = scalar_lea.vmem %s6462, %s6478
              $region52: #{tpu_custom_call.1} parent=39 // loop_footer
                %s6466 = sadd.s32 %s6464, 1
              $region53: #{tpu_custom_call.1} parent=39 // loop_footer_branch
                %6463 = sbr.rel target = $region49
              $region54: #{tpu_custom_call.1} parent=39 // loop_exit
                _
            $region40: #{tpu_custom_call.1} parent=31 // pred_fallthru
              _
          $region32: #{tpu_custom_call.1} parent=27 // pred_fallthru
            _
          %6655 = vnop
        $region28: #{tpu_custom_call.1} parent=23 // pred_fallthru
          _
      $region24: #{tpu_custom_call.1} parent=5 // pred_fallthru
        _
      %p6656 = scmp.le.s32.totalorder 2, %s7
      // Predicated region
      $region77: #{tpu_custom_call.1} parent=5 // pred_check
        %p6657 = pneg %p6656
      $region78: #{tpu_custom_call.1} parent=5 // pred_check_branch
        %6659 = sbr.rel (%p6657) target = $region80
      $region79: #{tpu_custom_call.1} parent=5 // pred_region
        %s6660 = ssub.s32 %s7, 2
        // Predicated region
        $region81: #{tpu_custom_call.1} parent=79 // pred_check
          %p6661 = pneg %p62
        $region82: #{tpu_custom_call.1} parent=79 // pred_check_branch
          %6663 = sbr.rel (%p6661) target = $region84
        $region83: #{tpu_custom_call.1} parent=79 // pred_region
          %s6664 = sand.u32 %s47, 1
          %s6665 = sand.u32 %s47, 1
          %s6666 = smul.addr %s6665, 4096
          %s6667 = scalar_lea.vmem [#allocation2], %s6666
        $region84: #{tpu_custom_call.1} parent=79 // pred_fallthru
          _
      $region80: #{tpu_custom_call.1} parent=5 // pred_fallthru
        _
    $region6: #{tpu_custom_call.1} parent=1 // loop_footer
      %s11 = sadd.s32 1, %s7
    $region7: #{tpu_custom_call.1} parent=1 // loop_footer_branch
      %6 = sbr.rel target = $region3
    $region8: #{tpu_custom_call.1} parent=1 // loop_exit
      _

</llo_original>
